<compile_context>
chip_gen: v7x
topology: tpu7x:2x2x1
jax: 0.10.0
libtpu: 0.0.40
codegen_flags: <defaults>
</compile_context>

<pallas_src>
import numpy as np
import jax
import jax.numpy as jnp
from jax.experimental import pallas as pl
from jax.experimental.pallas import tpu as pltpu

BN_EPS = 1e-5
C_PAD = 128  # pad output channels to a full lane width (lane-dense stores)


# ------------------------------------------------------------------- kernel --
def _branch_kernel(x_ref, a_ref, w_ref, g_ref, b_ref, o_ref, sum_ref, ssq_ref):
    # x_ref:   (1, H*W, Cin)      current batch element (grid over N)
    # a_ref:   (9, Ho*Wo, H*W)    pool + zero-pad + 3x3-shift matrices (per tap)
    # w_ref:   (9, Cin, C_PAD)    conv weights per tap, channels zero-padded
    # g_ref:   (1, C_PAD)         BN gamma (zero-padded)
    # b_ref:   (1, C_PAD)         BN beta  (zero-padded)
    # o_ref:   (N*Ho*Wo, C_PAD)   VMEM-resident output slab (lane-dense)
    # sum_ref: (1, C_PAD)         per-channel running sum     (VMEM scratch)
    # ssq_ref: (1, C_PAD)         per-channel running sum-sq  (VMEM scratch)
    n = pl.program_id(0)
    num_n = pl.num_programs(0)
    hw_o = a_ref.shape[1]          # Ho*Wo
    cpad = w_ref.shape[2]

    @pl.when(n == 0)
    def _init():
        sum_ref[...] = jnp.zeros_like(sum_ref)
        ssq_ref[...] = jnp.zeros_like(ssq_ref)

    x = x_ref[0]                                    # (H*W, Cin)
    acc = jnp.zeros((hw_o, cpad), jnp.float32)
    for k in range(9):                              # static 3x3 taps, unrolled
        # pooled + shifted window for tap k, K = H*W (lane aligned)
        win = jnp.dot(a_ref[k], x, preferred_element_type=jnp.float32)      # (Ho*Wo, Cin)
        acc = acc + jnp.dot(win, w_ref[k], preferred_element_type=jnp.float32)

    start = n * hw_o
    if hw_o % 8 == 0:
        start = pl.multiple_of(start, 8)
    o_ref[pl.ds(start, hw_o), :] = acc              # pre-BN activations
    # single-pass batch statistics (sum + sum of squares)
    sum_ref[...] += jnp.sum(acc, axis=0, keepdims=True)
    ssq_ref[...] += jnp.sum(acc * acc, axis=0, keepdims=True)

    @pl.when(n == num_n - 1)
    def _finalize():
        cnt = float(o_ref.shape[0])                 # N * Ho * Wo
        mean = sum_ref[...] / cnt
        var = ssq_ref[...] / cnt - mean * mean      # biased var (training-mode BN)
        scale = g_ref[...] * jax.lax.rsqrt(var + BN_EPS)   # EUP
        shift = b_ref[...] - mean * scale
        o_ref[...] = o_ref[...] * scale + shift     # single FMA epilogue (no ReLU)


def fused_pool_conv_bn(x_cl, taps, w9, gamma_p, beta_p):
    """x_cl (N, H*W, Cin) channels-last -> (N*Ho*Wo, C_PAD) normalized output."""
    N, HW, Cin = x_cl.shape
    _, HoWo, _ = taps.shape
    cpad = w9.shape[2]
    return pl.pallas_call(
        _branch_kernel,
        grid=(N,),
        in_specs=[
            pl.BlockSpec((1, HW, Cin), lambda n: (n, 0, 0)),     # streamed per batch
            pl.BlockSpec((9, HoWo, HW), lambda n: (0, 0, 0)),    # resident constants
            pl.BlockSpec((9, Cin, cpad), lambda n: (0, 0, 0)),
            pl.BlockSpec((1, cpad), lambda n: (0, 0)),
            pl.BlockSpec((1, cpad), lambda n: (0, 0)),
        ],
        out_specs=pl.BlockSpec((N * HoWo, cpad), lambda n: (0, 0)),  # resident output
        out_shape=jax.ShapeDtypeStruct((N * HoWo, cpad), jnp.float32),
        scratch_shapes=[pltpu.VMEM((1, cpad), jnp.float32),
                        pltpu.VMEM((1, cpad), jnp.float32)],
        compiler_params=pltpu.CompilerParams(
            dimension_semantics=("arbitrary",),     # cross-batch BN accumulation
            vmem_limit_bytes=32 * 1024 * 1024),
    )(x_cl, taps, w9, gamma_p, beta_p)


# ------------------------------------------------------------ host-side prep --
def adaptive_pool_matrix(in_size, out_size):
    """Row-stochastic matrix replicating torch.nn.AdaptiveAvgPool2d's bin rule."""
    P = np.zeros((out_size, in_size), np.float32)
    for i in range(out_size):
        s = (i * in_size) // out_size
        e = -((-(i + 1) * in_size) // out_size)     # ceil((i+1)*in/out)
        P[i, s:e] = 1.0 / (e - s)
    return P


def _pool_conv_taps(H, W, Ho, Wo):
    """9 matrices (Ho*Wo, H*W) folding adaptive-avg-pool, zero pad and 3x3 shift."""
    Ph = adaptive_pool_matrix(H, Ho)                # (Ho, H)
    Pw = adaptive_pool_matrix(W, Wo)                # (Wo, W)
    p2 = np.zeros((Ho + 2, Wo + 2, H, W), np.float32)
    p2[1:Ho + 1, 1:Wo + 1] = np.einsum("oh,pw->ophw", Ph, Pw)
    taps = [p2[dh:dh + Ho, dw:dw + Wo].reshape(Ho * Wo, H * W)
            for dh in range(3) for dw in range(3)]
    return np.stack(taps, axis=0)                   # (9, Ho*Wo, H*W)


def _conv_weight_taps(w_oihw, c_pad):
    """PyTorch (Cout, Cin, 3, 3) -> (9, Cin, c_pad), output channels zero-padded."""
    cout, cin, kh, kw = w_oihw.shape
    w9 = jnp.transpose(w_oihw, (2, 3, 1, 0)).reshape(kh * kw, cin, cout)
    return jnp.pad(w9, ((0, 0), (0, 0), (0, c_pad - cout))).astype(jnp.float32)


def _pad_vec(v, c_pad):
    return jnp.pad(v.astype(jnp.float32), (0, c_pad - v.shape[0])).reshape(1, c_pad)


# --------------------------------------------------------------- module fwd --
def first_octave_cb_forward(x_nchw, params):
    """FirstOctaveCB.forward: x (N, Cin, H, W) float32 -> (x_h, x_l), both NCHW.

    TODO(synk): the literal PyTorch module is not runnable as written (the a2a
    branch has out_channels - 2*int(alpha*out_channels) == 0 channels for
    alpha=0.5 and FirstOctaveConv returns 3 tensors while FirstOctaveCB unpacks
    only 2).  We implement the unique channel-consistent mapping
    x_h <- bn_h(b2b(pool_0.75(x))), x_l <- bn_l(c2c(pool_0.5(x))), which is only
    well-defined when bn_h channels == b2b out-channels, i.e. alpha == 0.5.
    """
    N, Cin, H, W = x_nchw.shape
    Hb, Wb = int(0.75 * H), int(0.75 * W)
    Hc, Wc = int(0.5 * H), int(0.5 * W)

    # one boundary relayout NCHW -> channels-last (N, H*W, Cin); everything else
    # stays inside the fused kernels (no intermediate HBM round trips).
    x_cl = jnp.transpose(x_nchw, (0, 2, 3, 1)).reshape(N, H * W, Cin)

    def run_branch(Ho, Wo, w_oihw, gamma, beta):
        cout = w_oihw.shape[0]
        taps = jnp.asarray(_pool_conv_taps(H, W, Ho, Wo))
        w9 = _conv_weight_taps(w_oihw, C_PAD)
        y = fused_pool_conv_bn(x_cl, taps, w9,
                               _pad_vec(gamma, C_PAD), _pad_vec(beta, C_PAD))
        y = y.reshape(N, Ho, Wo, C_PAD)[..., :cout]
        return jnp.transpose(y, (0, 3, 1, 2))       # back to NCHW

    x_h = run_branch(Hb, Wb, params["w_b2b"], params["gamma_h"], params["beta_h"])
    x_l = run_branch(Hc, Wc, params["w_c2c"], params["gamma_l"], params["beta_l"])
    return x_h, x_l


# ---------------------------------------------------------------- reference --
def reference_forward(x_nchw, params):
    """Pure-JAX reference (adaptive pool + lax conv + training-mode BN, no ReLU)."""
    def adaptive_pool_ref(x, out_hw):
        _, _, H, W = x.shape
        Ph = jnp.asarray(adaptive_pool_matrix(H, out_hw[0]))
        Pw = jnp.asarray(adaptive_pool_matrix(W, out_hw[1]))
        return jnp.einsum("oh,nchw,pw->ncop", Ph, x, Pw)

    def conv(x, w):
        return jax.lax.conv_general_dilated(
            x, w, window_strides=(1, 1), padding=((1, 1), (1, 1)),
            dimension_numbers=("NCHW", "OIHW", "NCHW"))

    def bn(x, g, b):
        mean = jnp.mean(x, axis=(0, 2, 3), keepdims=True)
        var = jnp.mean(jnp.square(x - mean), axis=(0, 2, 3), keepdims=True)
        y = (x - mean) / jnp.sqrt(var + BN_EPS)
        return y * g.reshape(1, -1, 1, 1) + b.reshape(1, -1, 1, 1)

    _, _, H, W = x_nchw.shape
    xb = adaptive_pool_ref(x_nchw, (int(0.75 * H), int(0.75 * W)))
    xc = adaptive_pool_ref(x_nchw, (int(0.5 * H), int(0.5 * W)))
    x_h = bn(conv(xb, params["w_b2b"]), params["gamma_h"], params["beta_h"])
    x_l = bn(conv(xc, params["w_c2c"]), params["gamma_l"], params["beta_l"])
    return x_h, x_l


# --------------------------------------------------------------------- main --
if __name__ == "__main__":
    key = jax.random.PRNGKey(0)
    k_x, k_wb, k_wc, k_gh, k_bh, k_gl, k_bl = jax.random.split(key, 7)

    N, Cin, H, W = 2, 4, 16, 16
    out_channels, alpha = 8, 0.5
    c_h = int(out_channels * (1 - alpha))   # bn_h channels = 4
    c_l = int(out_channels * alpha)         # bn_l channels = b2b/c2c out-channels = 4
    # The source's b2b conv has int(alpha*out) outputs but is normalized by bn_h
    # (c_h channels); only consistent when alpha == 0.5.
    assert c_h == c_l, "FirstOctaveCB channel mapping only consistent for alpha=0.5"

    x = jax.random.normal(k_x, (N, Cin, H, W), jnp.float32)
    params = dict(
        w_b2b=0.1 * jax.random.normal(k_wb, (c_h, Cin, 3, 3), jnp.float32),
        w_c2c=0.1 * jax.random.normal(k_wc, (c_l, Cin, 3, 3), jnp.float32),
        gamma_h=1.0 + 0.1 * jax.random.normal(k_gh, (c_h,), jnp.float32),
        beta_h=0.1 * jax.random.normal(k_bh, (c_h,), jnp.float32),
        gamma_l=1.0 + 0.1 * jax.random.normal(k_gl, (c_l,), jnp.float32),
        beta_l=0.1 * jax.random.normal(k_bl, (c_l,), jnp.float32),
    )

    x_h, x_l = first_octave_cb_forward(x, params)
    jax.block_until_ready((x_h, x_l))

    r_h, r_l = reference_forward(x, params)
    np.testing.assert_allclose(np.asarray(x_h), np.asarray(r_h), rtol=1e-4, atol=1e-4)
    np.testing.assert_allclose(np.asarray(x_l), np.asarray(r_l), rtol=1e-4, atol=1e-4)

    print("KERNEL_OK")
</pallas_src>

<mosaic_0001>
module attributes {stable_mosaic.version = 11 : i64} {
  func.func @_branch_kernel(%arg0: i32, %arg1: memref<1x256x4xf32, #tpu.memory_space<vmem>>, %arg2: memref<9x144x256xf32, #tpu.memory_space<vmem>>, %arg3: memref<9x4x128xf32, #tpu.memory_space<vmem>>, %arg4: memref<1x128xf32, #tpu.memory_space<vmem>>, %arg5: memref<1x128xf32, #tpu.memory_space<vmem>>, %arg6: memref<288x128xf32, #tpu.memory_space<vmem>>, %arg7: memref<1x128xf32, #tpu.memory_space<vmem>>, %arg8: memref<1x128xf32, #tpu.memory_space<vmem>>) attributes {dimension_semantics = [#tpu.dimension_semantics<arbitrary>], iteration_bounds = array<i64: 2>, scalar_prefetch = 0 : i64, scratch_operands = 2 : i64, tpu.core_type = #tpu.core_type<tc>, window_params = [{transform_indices = @transform_0, window_bounds = array<i64: 1, 256, 4>}, {pipeline_mode = #tpu.pipeline_mode<synchronous>, transform_indices = @transform_1, window_bounds = array<i64: 9, 144, 256>}, {pipeline_mode = #tpu.pipeline_mode<synchronous>, transform_indices = @transform_2, window_bounds = array<i64: 9, 4, 128>}, {pipeline_mode = #tpu.pipeline_mode<synchronous>, transform_indices = @transform_3, window_bounds = array<i64: 1, 128>}, {pipeline_mode = #tpu.pipeline_mode<synchronous>, transform_indices = @transform_4, window_bounds = array<i64: 1, 128>}, {pipeline_mode = #tpu.pipeline_mode<synchronous>, transform_indices = @transform_5, window_bounds = array<i64: 288, 128>}]} {
    %c0_i32 = arith.constant 0 : i32
    %0 = arith.cmpi eq, %arg0, %c0_i32 : i32
    %1 = arith.extui %0 : i1 to i32
    %c0_i32_0 = arith.constant 0 : i32
    %2 = arith.cmpi ne, %1, %c0_i32_0 : i32
    scf.if %2 {
      %cst_79 = arith.constant 0.000000e+00 : f32
      %87 = vector.broadcast %cst_79 : f32 to vector<1x128xf32>
      %c0_80 = arith.constant 0 : index
      %c0_81 = arith.constant 0 : index
      %88 = vector.load %arg7[%c0_80, %c0_81] : memref<1x128xf32, #tpu.memory_space<vmem>>, vector<1x128xf32>
      tpu.vector_store %arg7[%c0_80, %c0_81], %87 {strides = array<i32>} : memref<1x128xf32, #tpu.memory_space<vmem>>, vector<1x128xf32>,
      %cst_82 = arith.constant 0.000000e+00 : f32
      %89 = vector.broadcast %cst_82 : f32 to vector<1x128xf32>
      %c0_83 = arith.constant 0 : index
      %c0_84 = arith.constant 0 : index
      %90 = vector.load %arg8[%c0_83, %c0_84] : memref<1x128xf32, #tpu.memory_space<vmem>>, vector<1x128xf32>
      tpu.vector_store %arg8[%c0_83, %c0_84], %89 {strides = array<i32>} : memref<1x128xf32, #tpu.memory_space<vmem>>, vector<1x128xf32>,
    } else {
    }
    %c0 = arith.constant 0 : index
    %c0_1 = arith.constant 0 : index
    %c0_2 = arith.constant 0 : index
    %3 = vector.load %arg1[%c0, %c0_1, %c0_2] : memref<1x256x4xf32, #tpu.memory_space<vmem>>, vector<1x256x4xf32>
    %4 = vector.shape_cast %3 : vector<1x256x4xf32> to vector<256x4xf32>
    %cst = arith.constant 0.000000e+00 : f32
    %5 = vector.broadcast %cst : f32 to vector<144x128xf32>
    %c0_3 = arith.constant 0 : index
    %c0_4 = arith.constant 0 : index
    %c0_5 = arith.constant 0 : index
    %6 = vector.load %arg2[%c0_3, %c0_4, %c0_5] : memref<9x144x256xf32, #tpu.memory_space<vmem>>, vector<1x144x256xf32>
    %7 = vector.shape_cast %6 : vector<1x144x256xf32> to vector<144x256xf32>
    %cst_6 = arith.constant dense<0.000000e+00> : vector<144x4xf32>
    %8 = tpu.matmul %7, %4, %cst_6 {dimension_numbers = #tpu.dot_dimension_numbers<[1], [0], [0], [1], [0, 0, 1, 1], [], []>} : vector<144x256xf32>, vector<256x4xf32>, vector<144x4xf32> -> vector<144x4xf32>
    %c0_7 = arith.constant 0 : index
    %c0_8 = arith.constant 0 : index
    %c0_9 = arith.constant 0 : index
    %9 = vector.load %arg3[%c0_7, %c0_8, %c0_9] : memref<9x4x128xf32, #tpu.memory_space<vmem>>, vector<1x4x128xf32>
    %10 = vector.shape_cast %9 : vector<1x4x128xf32> to vector<4x128xf32>
    %cst_10 = arith.constant dense<0.000000e+00> : vector<144x128xf32>
    %11 = tpu.matmul %8, %10, %cst_10 {dimension_numbers = #tpu.dot_dimension_numbers<[1], [0], [0], [1], [0, 0, 1, 1], [], []>} : vector<144x4xf32>, vector<4x128xf32>, vector<144x128xf32> -> vector<144x128xf32>
    %12 = arith.addf %5, %11 : vector<144x128xf32>
    %c1 = arith.constant 1 : index
    %c0_11 = arith.constant 0 : index
    %c0_12 = arith.constant 0 : index
    %13 = vector.load %arg2[%c1, %c0_11, %c0_12] : memref<9x144x256xf32, #tpu.memory_space<vmem>>, vector<1x144x256xf32>
    %14 = vector.shape_cast %13 : vector<1x144x256xf32> to vector<144x256xf32>
    %cst_13 = arith.constant dense<0.000000e+00> : vector<144x4xf32>
    %15 = tpu.matmul %14, %4, %cst_13 {dimension_numbers = #tpu.dot_dimension_numbers<[1], [0], [0], [1], [0, 0, 1, 1], [], []>} : vector<144x256xf32>, vector<256x4xf32>, vector<144x4xf32> -> vector<144x4xf32>
    %c1_14 = arith.constant 1 : index
    %c0_15 = arith.constant 0 : index
    %c0_16 = arith.constant 0 : index
    %16 = vector.load %arg3[%c1_14, %c0_15, %c0_16] : memref<9x4x128xf32, #tpu.memory_space<vmem>>, vector<1x4x128xf32>
    %17 = vector.shape_cast %16 : vector<1x4x128xf32> to vector<4x128xf32>
    %cst_17 = arith.constant dense<0.000000e+00> : vector<144x128xf32>
    %18 = tpu.matmul %15, %17, %cst_17 {dimension_numbers = #tpu.dot_dimension_numbers<[1], [0], [0], [1], [0, 0, 1, 1], [], []>} : vector<144x4xf32>, vector<4x128xf32>, vector<144x128xf32> -> vector<144x128xf32>
    %19 = arith.addf %12, %18 : vector<144x128xf32>
    %c2 = arith.constant 2 : index
    %c0_18 = arith.constant 0 : index
    %c0_19 = arith.constant 0 : index
    %20 = vector.load %arg2[%c2, %c0_18, %c0_19] : memref<9x144x256xf32, #tpu.memory_space<vmem>>, vector<1x144x256xf32>
    %21 = vector.shape_cast %20 : vector<1x144x256xf32> to vector<144x256xf32>
    %cst_20 = arith.constant dense<0.000000e+00> : vector<144x4xf32>
    %22 = tpu.matmul %21, %4, %cst_20 {dimension_numbers = #tpu.dot_dimension_numbers<[1], [0], [0], [1], [0, 0, 1, 1], [], []>} : vector<144x256xf32>, vector<256x4xf32>, vector<144x4xf32> -> vector<144x4xf32>
    %c2_21 = arith.constant 2 : index
    %c0_22 = arith.constant 0 : index
    %c0_23 = arith.constant 0 : index
    %23 = vector.load %arg3[%c2_21, %c0_22, %c0_23] : memref<9x4x128xf32, #tpu.memory_space<vmem>>, vector<1x4x128xf32>
    %24 = vector.shape_cast %23 : vector<1x4x128xf32> to vector<4x128xf32>
    %cst_24 = arith.constant dense<0.000000e+00> : vector<144x128xf32>
    %25 = tpu.matmul %22, %24, %cst_24 {dimension_numbers = #tpu.dot_dimension_numbers<[1], [0], [0], [1], [0, 0, 1, 1], [], []>} : vector<144x4xf32>, vector<4x128xf32>, vector<144x128xf32> -> vector<144x128xf32>
    %26 = arith.addf %19, %25 : vector<144x128xf32>
    %c3 = arith.constant 3 : index
    %c0_25 = arith.constant 0 : index
    %c0_26 = arith.constant 0 : index
    %27 = vector.load %arg2[%c3, %c0_25, %c0_26] : memref<9x144x256xf32, #tpu.memory_space<vmem>>, vector<1x144x256xf32>
    %28 = vector.shape_cast %27 : vector<1x144x256xf32> to vector<144x256xf32>
    %cst_27 = arith.constant dense<0.000000e+00> : vector<144x4xf32>
    %29 = tpu.matmul %28, %4, %cst_27 {dimension_numbers = #tpu.dot_dimension_numbers<[1], [0], [0], [1], [0, 0, 1, 1], [], []>} : vector<144x256xf32>, vector<256x4xf32>, vector<144x4xf32> -> vector<144x4xf32>
    %c3_28 = arith.constant 3 : index
    %c0_29 = arith.constant 0 : index
    %c0_30 = arith.constant 0 : index
    %30 = vector.load %arg3[%c3_28, %c0_29, %c0_30] : memref<9x4x128xf32, #tpu.memory_space<vmem>>, vector<1x4x128xf32>
    %31 = vector.shape_cast %30 : vector<1x4x128xf32> to vector<4x128xf32>
    %cst_31 = arith.constant dense<0.000000e+00> : vector<144x128xf32>
    %32 = tpu.matmul %29, %31, %cst_31 {dimension_numbers = #tpu.dot_dimension_numbers<[1], [0], [0], [1], [0, 0, 1, 1], [], []>} : vector<144x4xf32>, vector<4x128xf32>, vector<144x128xf32> -> vector<144x128xf32>
    %33 = arith.addf %26, %32 : vector<144x128xf32>
    %c4 = arith.constant 4 : index
    %c0_32 = arith.constant 0 : index
    %c0_33 = arith.constant 0 : index
    %34 = vector.load %arg2[%c4, %c0_32, %c0_33] : memref<9x144x256xf32, #tpu.memory_space<vmem>>, vector<1x144x256xf32>
    %35 = vector.shape_cast %34 : vector<1x144x256xf32> to vector<144x256xf32>
    %cst_34 = arith.constant dense<0.000000e+00> : vector<144x4xf32>
    %36 = tpu.matmul %35, %4, %cst_34 {dimension_numbers = #tpu.dot_dimension_numbers<[1], [0], [0], [1], [0, 0, 1, 1], [], []>} : vector<144x256xf32>, vector<256x4xf32>, vector<144x4xf32> -> vector<144x4xf32>
    %c4_35 = arith.constant 4 : index
    %c0_36 = arith.constant 0 : index
    %c0_37 = arith.constant 0 : index
    %37 = vector.load %arg3[%c4_35, %c0_36, %c0_37] : memref<9x4x128xf32, #tpu.memory_space<vmem>>, vector<1x4x128xf32>
    %38 = vector.shape_cast %37 : vector<1x4x128xf32> to vector<4x128xf32>
    %cst_38 = arith.constant dense<0.000000e+00> : vector<144x128xf32>
    %39 = tpu.matmul %36, %38, %cst_38 {dimension_numbers = #tpu.dot_dimension_numbers<[1], [0], [0], [1], [0, 0, 1, 1], [], []>} : vector<144x4xf32>, vector<4x128xf32>, vector<144x128xf32> -> vector<144x128xf32>
    %40 = arith.addf %33, %39 : vector<144x128xf32>
    %c5 = arith.constant 5 : index
    %c0_39 = arith.constant 0 : index
    %c0_40 = arith.constant 0 : index
    %41 = vector.load %arg2[%c5, %c0_39, %c0_40] : memref<9x144x256xf32, #tpu.memory_space<vmem>>, vector<1x144x256xf32>
    %42 = vector.shape_cast %41 : vector<1x144x256xf32> to vector<144x256xf32>
    %cst_41 = arith.constant dense<0.000000e+00> : vector<144x4xf32>
    %43 = tpu.matmul %42, %4, %cst_41 {dimension_numbers = #tpu.dot_dimension_numbers<[1], [0], [0], [1], [0, 0, 1, 1], [], []>} : vector<144x256xf32>, vector<256x4xf32>, vector<144x4xf32> -> vector<144x4xf32>
    %c5_42 = arith.constant 5 : index
    %c0_43 = arith.constant 0 : index
    %c0_44 = arith.constant 0 : index
    %44 = vector.load %arg3[%c5_42, %c0_43, %c0_44] : memref<9x4x128xf32, #tpu.memory_space<vmem>>, vector<1x4x128xf32>
    %45 = vector.shape_cast %44 : vector<1x4x128xf32> to vector<4x128xf32>
    %cst_45 = arith.constant dense<0.000000e+00> : vector<144x128xf32>
    %46 = tpu.matmul %43, %45, %cst_45 {dimension_numbers = #tpu.dot_dimension_numbers<[1], [0], [0], [1], [0, 0, 1, 1], [], []>} : vector<144x4xf32>, vector<4x128xf32>, vector<144x128xf32> -> vector<144x128xf32>
    %47 = arith.addf %40, %46 : vector<144x128xf32>
    %c6 = arith.constant 6 : index
    %c0_46 = arith.constant 0 : index
    %c0_47 = arith.constant 0 : index
    %48 = vector.load %arg2[%c6, %c0_46, %c0_47] : memref<9x144x256xf32, #tpu.memory_space<vmem>>, vector<1x144x256xf32>
    %49 = vector.shape_cast %48 : vector<1x144x256xf32> to vector<144x256xf32>
    %cst_48 = arith.constant dense<0.000000e+00> : vector<144x4xf32>
    %50 = tpu.matmul %49, %4, %cst_48 {dimension_numbers = #tpu.dot_dimension_numbers<[1], [0], [0], [1], [0, 0, 1, 1], [], []>} : vector<144x256xf32>, vector<256x4xf32>, vector<144x4xf32> -> vector<144x4xf32>
    %c6_49 = arith.constant 6 : index
    %c0_50 = arith.constant 0 : index
    %c0_51 = arith.constant 0 : index
    %51 = vector.load %arg3[%c6_49, %c0_50, %c0_51] : memref<9x4x128xf32, #tpu.memory_space<vmem>>, vector<1x4x128xf32>
    %52 = vector.shape_cast %51 : vector<1x4x128xf32> to vector<4x128xf32>
    %cst_52 = arith.constant dense<0.000000e+00> : vector<144x128xf32>
    %53 = tpu.matmul %50, %52, %cst_52 {dimension_numbers = #tpu.dot_dimension_numbers<[1], [0], [0], [1], [0, 0, 1, 1], [], []>} : vector<144x4xf32>, vector<4x128xf32>, vector<144x128xf32> -> vector<144x128xf32>
    %54 = arith.addf %47, %53 : vector<144x128xf32>
    %c7 = arith.constant 7 : index
    %c0_53 = arith.constant 0 : index
    %c0_54 = arith.constant 0 : index
    %55 = vector.load %arg2[%c7, %c0_53, %c0_54] : memref<9x144x256xf32, #tpu.memory_space<vmem>>, vector<1x144x256xf32>
    %56 = vector.shape_cast %55 : vector<1x144x256xf32> to vector<144x256xf32>
    %cst_55 = arith.constant dense<0.000000e+00> : vector<144x4xf32>
    %57 = tpu.matmul %56, %4, %cst_55 {dimension_numbers = #tpu.dot_dimension_numbers<[1], [0], [0], [1], [0, 0, 1, 1], [], []>} : vector<144x256xf32>, vector<256x4xf32>, vector<144x4xf32> -> vector<144x4xf32>
    %c7_56 = arith.constant 7 : index
    %c0_57 = arith.constant 0 : index
    %c0_58 = arith.constant 0 : index
    %58 = vector.load %arg3[%c7_56, %c0_57, %c0_58] : memref<9x4x128xf32, #tpu.memory_space<vmem>>, vector<1x4x128xf32>
    %59 = vector.shape_cast %58 : vector<1x4x128xf32> to vector<4x128xf32>
    %cst_59 = arith.constant dense<0.000000e+00> : vector<144x128xf32>
    %60 = tpu.matmul %57, %59, %cst_59 {dimension_numbers = #tpu.dot_dimension_numbers<[1], [0], [0], [1], [0, 0, 1, 1], [], []>} : vector<144x4xf32>, vector<4x128xf32>, vector<144x128xf32> -> vector<144x128xf32>
    %61 = arith.addf %54, %60 : vector<144x128xf32>
    %c8 = arith.constant 8 : index
    %c0_60 = arith.constant 0 : index
    %c0_61 = arith.constant 0 : index
    %62 = vector.load %arg2[%c8, %c0_60, %c0_61] : memref<9x144x256xf32, #tpu.memory_space<vmem>>, vector<1x144x256xf32>
    %63 = vector.shape_cast %62 : vector<1x144x256xf32> to vector<144x256xf32>
    %cst_62 = arith.constant dense<0.000000e+00> : vector<144x4xf32>
    %64 = tpu.matmul %63, %4, %cst_62 {dimension_numbers = #tpu.dot_dimension_numbers<[1], [0], [0], [1], [0, 0, 1, 1], [], []>} : vector<144x256xf32>, vector<256x4xf32>, vector<144x4xf32> -> vector<144x4xf32>
    %c8_63 = arith.constant 8 : index
    %c0_64 = arith.constant 0 : index
    %c0_65 = arith.constant 0 : index
    %65 = vector.load %arg3[%c8_63, %c0_64, %c0_65] : memref<9x4x128xf32, #tpu.memory_space<vmem>>, vector<1x4x128xf32>
    %66 = vector.shape_cast %65 : vector<1x4x128xf32> to vector<4x128xf32>
    %cst_66 = arith.constant dense<0.000000e+00> : vector<144x128xf32>
    %67 = tpu.matmul %64, %66, %cst_66 {dimension_numbers = #tpu.dot_dimension_numbers<[1], [0], [0], [1], [0, 0, 1, 1], [], []>} : vector<144x4xf32>, vector<4x128xf32>, vector<144x128xf32> -> vector<144x128xf32>
    %68 = arith.addf %61, %67 : vector<144x128xf32>
    %c144_i32 = arith.constant 144 : i32
    %69 = arith.muli %arg0, %c144_i32 : i32
    %70 = tpu.assume_multiple %69, 8 : i32
    %71 = arith.index_cast %70 : i32 to index
    %c0_67 = arith.constant 0 : index
    %72 = vector.load %arg6[%71, %c0_67] : memref<288x128xf32, #tpu.memory_space<vmem>>, vector<144x128xf32>
    tpu.vector_store %arg6[%71, %c0_67], %68 {strides = array<i32>} : memref<288x128xf32, #tpu.memory_space<vmem>>, vector<144x128xf32>,
    %c0_68 = arith.constant 0 : index
    %c0_69 = arith.constant 0 : index
    %73 = vector.load %arg7[%c0_68, %c0_69] : memref<1x128xf32, #tpu.memory_space<vmem>>, vector<1x128xf32>
    %cst_70 = arith.constant dense<0.000000e+00> : vector<128xf32>
    %74 = vector.multi_reduction <add>, %68, %cst_70 [0] : vector<144x128xf32> to vector<128xf32>
    %75 = vector.shape_cast %74 : vector<128xf32> to vector<1x128xf32>
    %76 = arith.addf %73, %75 : vector<1x128xf32>
    %c0_71 = arith.constant 0 : index
    %c0_72 = arith.constant 0 : index
    %77 = vector.load %arg7[%c0_71, %c0_72] : memref<1x128xf32, #tpu.memory_space<vmem>>, vector<1x128xf32>
    tpu.vector_store %arg7[%c0_71, %c0_72], %76 {strides = array<i32>} : memref<1x128xf32, #tpu.memory_space<vmem>>, vector<1x128xf32>,
    %c0_73 = arith.constant 0 : index
    %c0_74 = arith.constant 0 : index
    %78 = vector.load %arg8[%c0_73, %c0_74] : memref<1x128xf32, #tpu.memory_space<vmem>>, vector<1x128xf32>
    %79 = arith.mulf %68, %68 : vector<144x128xf32>
    %cst_75 = arith.constant dense<0.000000e+00> : vector<128xf32>
    %80 = vector.multi_reduction <add>, %79, %cst_75 [0] : vector<144x128xf32> to vector<128xf32>
    %81 = vector.shape_cast %80 : vector<128xf32> to vector<1x128xf32>
    %82 = arith.addf %78, %81 : vector<1x128xf32>
    %c0_76 = arith.constant 0 : index
    %c0_77 = arith.constant 0 : index
    %83 = vector.load %arg8[%c0_76, %c0_77] : memref<1x128xf32, #tpu.memory_space<vmem>>, vector<1x128xf32>
    tpu.vector_store %arg8[%c0_76, %c0_77], %82 {strides = array<i32>} : memref<1x128xf32, #tpu.memory_space<vmem>>, vector<1x128xf32>,
    %c1_i32 = arith.constant 1 : i32
    %84 = arith.cmpi eq, %arg0, %c1_i32 : i32
    %85 = arith.extui %84 : i1 to i32
    %c0_i32_78 = arith.constant 0 : i32
    %86 = arith.cmpi ne, %85, %c0_i32_78 : i32
    scf.if %86 {
      %c0_79 = arith.constant 0 : index
      %c0_80 = arith.constant 0 : index
      %87 = vector.load %arg7[%c0_79, %c0_80] : memref<1x128xf32, #tpu.memory_space<vmem>>, vector<1x128xf32>
      %cst_81 = arith.constant 2.880000e+02 : f32
      %88 = vector.broadcast %cst_81 : f32 to vector<1x128xf32>
      %89 = arith.divf %87, %88 : vector<1x128xf32>
      %c0_82 = arith.constant 0 : index
      %c0_83 = arith.constant 0 : index
      %90 = vector.load %arg8[%c0_82, %c0_83] : memref<1x128xf32, #tpu.memory_space<vmem>>, vector<1x128xf32>
      %cst_84 = arith.constant 2.880000e+02 : f32
      %91 = vector.broadcast %cst_84 : f32 to vector<1x128xf32>
      %92 = arith.divf %90, %91 : vector<1x128xf32>
      %93 = arith.mulf %89, %89 : vector<1x128xf32>
      %94 = arith.subf %92, %93 : vector<1x128xf32>
      %c0_85 = arith.constant 0 : index
      %c0_86 = arith.constant 0 : index
      %95 = vector.load %arg4[%c0_85, %c0_86] : memref<1x128xf32, #tpu.memory_space<vmem>>, vector<1x128xf32>
      %cst_87 = arith.constant 9.99999974E-6 : f32
      %96 = vector.broadcast %cst_87 : f32 to vector<1x128xf32>
      %97 = arith.addf %94, %96 : vector<1x128xf32>
      %98 = math.rsqrt %97 : vector<1x128xf32>
      %99 = arith.mulf %95, %98 : vector<1x128xf32>
      %c0_88 = arith.constant 0 : index
      %c0_89 = arith.constant 0 : index
      %100 = vector.load %arg5[%c0_88, %c0_89] : memref<1x128xf32, #tpu.memory_space<vmem>>, vector<1x128xf32>
      %101 = arith.mulf %89, %99 : vector<1x128xf32>
      %102 = arith.subf %100, %101 : vector<1x128xf32>
      %c0_90 = arith.constant 0 : index
      %c0_91 = arith.constant 0 : index
      %103 = vector.load %arg6[%c0_90, %c0_91] : memref<288x128xf32, #tpu.memory_space<vmem>>, vector<288x128xf32>
      %104 = vector.broadcast %99 : vector<1x128xf32> to vector<288x128xf32>
      %105 = arith.mulf %103, %104 : vector<288x128xf32>
      %106 = vector.broadcast %102 : vector<1x128xf32> to vector<288x128xf32>
      %107 = arith.addf %105, %106 : vector<288x128xf32>
      %c0_92 = arith.constant 0 : index
      %c0_93 = arith.constant 0 : index
      %108 = vector.load %arg6[%c0_92, %c0_93] : memref<288x128xf32, #tpu.memory_space<vmem>>, vector<288x128xf32>
      tpu.vector_store %arg6[%c0_92, %c0_93], %107 {strides = array<i32>} : memref<288x128xf32, #tpu.memory_space<vmem>>, vector<288x128xf32>,
    } else {
    }
    return
  }
  func.func @transform_0(%arg0: i32) -> (i32, i32, i32) {
    %c0_i32 = arith.constant 0 : i32
    %c0_i32_0 = arith.constant 0 : i32
    %c0_i32_1 = arith.constant 0 : i32
    return %arg0, %c0_i32, %c0_i32_0 : i32, i32, i32
  }
  func.func @transform_1(%arg0: i32) -> (i32, i32, i32) {
    %c0_i32 = arith.constant 0 : i32
    %c0_i32_0 = arith.constant 0 : i32
    %c0_i32_1 = arith.constant 0 : i32
    %c0_i32_2 = arith.constant 0 : i32
    return %c0_i32, %c0_i32_0, %c0_i32_1 : i32, i32, i32
  }
  func.func @transform_2(%arg0: i32) -> (i32, i32, i32) {
    %c0_i32 = arith.constant 0 : i32
    %c0_i32_0 = arith.constant 0 : i32
    %c0_i32_1 = arith.constant 0 : i32
    %c0_i32_2 = arith.constant 0 : i32
    return %c0_i32, %c0_i32_0, %c0_i32_1 : i32, i32, i32
  }
  func.func @transform_3(%arg0: i32) -> (i32, i32) {
    %c0_i32 = arith.constant 0 : i32
    %c0_i32_0 = arith.constant 0 : i32
    %c0_i32_1 = arith.constant 0 : i32
    return %c0_i32, %c0_i32_0 : i32, i32
  }
  func.func @transform_4(%arg0: i32) -> (i32, i32) {
    %c0_i32 = arith.constant 0 : i32
    %c0_i32_0 = arith.constant 0 : i32
    %c0_i32_1 = arith.constant 0 : i32
    return %c0_i32, %c0_i32_0 : i32, i32
  }
  func.func @transform_5(%arg0: i32) -> (i32, i32) {
    %c0_i32 = arith.constant 0 : i32
    %c0_i32_0 = arith.constant 0 : i32
    %c0_i32_1 = arith.constant 0 : i32
    return %c0_i32, %c0_i32_0 : i32, i32
  }
}

</mosaic_0001>

<llo_original>
// kernel: tpu_custom_call.1
$region0: #{tpu_custom_call.1}
  #allocation0 [shape = 'u32[]', space=smem, size = 0x4, offset = 0x4, fixed_abs, tag = 'smem constant byte address 0x4 - core index']
  #allocation1 [shape = 'u32[144,128]{1,0:T(1,128)}', space=vmem, size = 0x12000, scoped, tag = 'internal scratch']
  #allocation2 [shape = 'f32[1,128]{1,0:T(1,128)}', space=vmem, size = 0x200, scoped, tag = 'scratch operand']
  #allocation3 [shape = 'f32[1,128]{1,0:T(1,128)}', space=vmem, size = 0x200, scoped, tag = 'scratch operand']
  %s0 = inlined_call_operand.vmem [shape: f32[2,256,4], index: 0, kind: input, shape index: {}]
  %s1 = inlined_call_operand.hbm [shape: f32[9,144,256], index: 1, kind: input, shape index: {}]
  %s2 = inlined_call_operand.hbm [shape: f32[9,4,128], index: 2, kind: input, shape index: {}]
  %s3 = inlined_call_operand.hbm [shape: f32[1,128], index: 3, kind: input, shape index: {}]
  %s4 = inlined_call_operand.hbm [shape: f32[1,128], index: 4, kind: input, shape index: {}]
  %s5 = inlined_call_operand.hbm [shape: f32[288,128], index: 5, kind: output, shape index: {}]
  %s6 = sld [smem:[#allocation0]]
  $region77: #{tpu_custom_call.1} parent=0
    _
  %s8 = ssub.s32 1, %s6
  %s9 = scalar_select 0, %s8, %s6
  $region1: #{tpu_custom_call.1} parent=0
    #allocation4 [shape = 'u8[1327104]{0}', space=vmem, size = 0x144000, scoped, tag = 'input window, operand 1, single buffered']
    #allocation5 [shape = 's32[2]{0}', space=sflag, size = 0x8, scoped, tag = 'scoped memory for tpu_custom_call.1']
    #allocation6 [shape = 's32[2]{0}', space=sflag, size = 0x8, scoped, tag = 'scoped memory for tpu_custom_call.1']
    #allocation7 [shape = 'u8[18432]{0}', space=vmem, size = 0x4800, scoped, tag = 'input window, operand 2, single buffered']
    #allocation8 [shape = 's32[1]{0}', space=sflag, size = 0x4, scoped, tag = 'scoped memory for tpu_custom_call.1']
    #allocation9 [shape = 'u8[512]{0}', space=vmem, size = 0x400, scoped, tag = 'input window, operand 3, single buffered']
    #allocation10 [shape = 'u8[512]{0}', space=vmem, size = 0x400, scoped, tag = 'input window, operand 4, single buffered']
    #allocation11 [shape = 's32[1]{0}', space=sflag, size = 0x4, scoped, tag = 'scoped memory for tpu_custom_call.1']
    #allocation12 [shape = 'u8[147456]{0}', space=vmem, size = 0x24000, scoped, tag = 'output window, operand 0, single buffered']
    %10 = vsyncpa [#allocation5], 0
    %11 = vsyncpa [#allocation8], 0
    %12 = vsyncpa [#allocation11], 0
    %13 = vsyncpa [#allocation6], 0
    loop: start=0, step=1, limit=4
    $region2: #{tpu_custom_call.1} parent=1 // loop_pre_header
      _
    $region3: #{tpu_custom_call.1} parent=1 // loop_header
      %s15 = sphi 0, %s19
      %p16 = scmp.ge.s32.totalorder %s15, 4
      %s25 = sphi 0, %s27
      %s28 = sphi 0, %s25
      %s29 = sphi 0, %s28
      %s45 = sphi 0, %s29
      %s49 = sphi 0, %s49
      %s51 = sphi 0, %s49
      %s52 = sphi 0, %s51
      %s66 = sphi 0, %s52
      %s70 = sphi 0, %s70
      %s72 = sphi 0, %s70
      %s73 = sphi 0, %s72
      %s87 = sphi 0, %s73
      %s91 = sphi 0, %s91
      %s93 = sphi 0, %s91
      %s94 = sphi 0, %s93
      %s108 = sphi 0, %s94
      %s112 = sphi 0, %s112
      %s114 = sphi 0, %s112
      %s115 = sphi 0, %s114
      %s129 = sphi 0, %s115
      %s133 = sphi 0, %s133
      %s135 = sphi 0, %s133
      %s136 = sphi 0, %s135
      %s150 = sphi 0, %s136
    $region4: #{tpu_custom_call.1} parent=1 // loop_header_branch
      %18 = sbr.rel (%p16) target = $region8
    $region5: #{tpu_custom_call.1} parent=1 // loop_body
      %s20 = ssub.s32 %s15, 1
      %s21 = ssub.s32 %s15, 2
      %s22 = sadd.s32 %s15, 1
      %s23 = ssub.s32 %s15, %s22
      %p24 = scmp.eq.s32.totalorder %s23, 0
      %s26 = sadd.s32 %s25, 1
      %s27 = scalar_select %p24, %s25, %s26
      %p30 = pneg %p24
      %p31 = scmp.eq.s32.totalorder %s15, 1
      %p32 = por %p30, %p31
      %p33 = scmp.ne.s32.totalorder %s25, %s28
      %p34 = scmp.eq.s32.totalorder %s15, 0
      %p35 = por %p33, %p34
      %p36 = scmp.ne.s32.totalorder %s25, %s28
      %p37 = scmp.eq.s32.totalorder %s20, 1
      %p38 = por %p36, %p37
      %p39 = scmp.ne.s32.totalorder %s28, %s29
      %p40 = scmp.eq.s32.totalorder %s20, 0
      %p41 = por %p39, %p40
      %p42 = scmp.ne.s32.totalorder %s28, %s29
      %p43 = scmp.eq.s32.totalorder %s21, 1
      %p44 = por %p42, %p43
      %p46 = scmp.ne.s32.totalorder %s29, %s45
      %p47 = scmp.eq.s32.totalorder %s21, 0
      %p48 = por %p46, %p47
      %s50 = sadd.s32 %s49, 1
      %p53 = scmp.eq.s32.totalorder %s15, 1
      %p54 = scmp.ne.s32.totalorder %s49, %s51
      %p55 = scmp.eq.s32.totalorder %s15, 0
      %p56 = por %p54, %p55
      %p57 = scmp.ne.s32.totalorder %s49, %s51
      %p58 = scmp.eq.s32.totalorder %s20, 1
      %p59 = por %p57, %p58
      %p60 = scmp.ne.s32.totalorder %s51, %s52
      %p61 = scmp.eq.s32.totalorder %s20, 0
      %p62 = por %p60, %p61
      %p63 = scmp.ne.s32.totalorder %s51, %s52
      %p64 = scmp.eq.s32.totalorder %s21, 1
      %p65 = por %p63, %p64
      %p67 = scmp.ne.s32.totalorder %s52, %s66
      %p68 = scmp.eq.s32.totalorder %s21, 0
      %p69 = por %p67, %p68
      %s71 = sadd.s32 %s70, 1
      %p74 = scmp.eq.s32.totalorder %s15, 1
      %p75 = scmp.ne.s32.totalorder %s70, %s72
      %p76 = scmp.eq.s32.totalorder %s15, 0
      %p77 = por %p75, %p76
      %p78 = scmp.ne.s32.totalorder %s70, %s72
      %p79 = scmp.eq.s32.totalorder %s20, 1
      %p80 = por %p78, %p79
      %p81 = scmp.ne.s32.totalorder %s72, %s73
      %p82 = scmp.eq.s32.totalorder %s20, 0
      %p83 = por %p81, %p82
      %p84 = scmp.ne.s32.totalorder %s72, %s73
      %p85 = scmp.eq.s32.totalorder %s21, 1
      %p86 = por %p84, %p85
      %p88 = scmp.ne.s32.totalorder %s73, %s87
      %p89 = scmp.eq.s32.totalorder %s21, 0
      %p90 = por %p88, %p89
      %s92 = sadd.s32 %s91, 1
      %p95 = scmp.eq.s32.totalorder %s15, 1
      %p96 = scmp.ne.s32.totalorder %s91, %s93
      %p97 = scmp.eq.s32.totalorder %s15, 0
      %p98 = por %p96, %p97
      %p99 = scmp.ne.s32.totalorder %s91, %s93
      %p100 = scmp.eq.s32.totalorder %s20, 1
      %p101 = por %p99, %p100
      %p102 = scmp.ne.s32.totalorder %s93, %s94
      %p103 = scmp.eq.s32.totalorder %s20, 0
      %p104 = por %p102, %p103
      %p105 = scmp.ne.s32.totalorder %s93, %s94
      %p106 = scmp.eq.s32.totalorder %s21, 1
      %p107 = por %p105, %p106
      %p109 = scmp.ne.s32.totalorder %s94, %s108
      %p110 = scmp.eq.s32.totalorder %s21, 0
      %p111 = por %p109, %p110
      %s113 = sadd.s32 %s112, 1
      %p116 = scmp.eq.s32.totalorder %s15, 1
      %p117 = scmp.ne.s32.totalorder %s112, %s114
      %p118 = scmp.eq.s32.totalorder %s15, 0
      %p119 = por %p117, %p118
      %p120 = scmp.ne.s32.totalorder %s112, %s114
      %p121 = scmp.eq.s32.totalorder %s20, 1
      %p122 = por %p120, %p121
      %p123 = scmp.ne.s32.totalorder %s114, %s115
      %p124 = scmp.eq.s32.totalorder %s20, 0
      %p125 = por %p123, %p124
      %p126 = scmp.ne.s32.totalorder %s114, %s115
      %p127 = scmp.eq.s32.totalorder %s21, 1
      %p128 = por %p126, %p127
      %p130 = scmp.ne.s32.totalorder %s115, %s129
      %p131 = scmp.eq.s32.totalorder %s21, 0
      %p132 = por %p130, %p131
      %s134 = sadd.s32 %s133, 1
      %p137 = scmp.eq.s32.totalorder %s15, 1
      %p138 = scmp.ne.s32.totalorder %s133, %s135
      %p139 = scmp.eq.s32.totalorder %s15, 0
      %p140 = por %p138, %p139
      %p141 = scmp.ne.s32.totalorder %s133, %s135
      %p142 = scmp.eq.s32.totalorder %s20, 1
      %p143 = por %p141, %p142
      %p144 = scmp.ne.s32.totalorder %s135, %s136
      %p145 = scmp.eq.s32.totalorder %s20, 0
      %p146 = por %p144, %p145
      %p147 = scmp.ne.s32.totalorder %s135, %s136
      %p148 = scmp.eq.s32.totalorder %s21, 1
      %p149 = por %p147, %p148
      %p151 = scmp.ne.s32.totalorder %s136, %s150
      %p152 = scmp.eq.s32.totalorder %s21, 0
      %p153 = por %p151, %p152
      %p154 = scmp.le.s32.totalorder 1, %s15
      %p155 = scmp.lt.s32.totalorder %s15, 3
      %p156 = pnand %p154, %p155
      %p157 = pneg %p156
      // Predicated region
      $region9: #{tpu_custom_call.1} parent=5 // pred_check
        _
      $region10: #{tpu_custom_call.1} parent=5 // pred_check_branch
        %159 = sbr.rel (%p156) target = $region12
      $region11: #{tpu_custom_call.1} parent=5 // pred_region
        %s160 = ssub.s32 %s15, 1
        // Predicated region
        $region13: #{tpu_custom_call.1} parent=11 // pred_check
          %p161 = pneg %p62
        $region14: #{tpu_custom_call.1} parent=11 // pred_check_branch
          %163 = sbr.rel (%p161) target = $region16
        $region15: #{tpu_custom_call.1} parent=11 // pred_region
          %s165 = ssub.s32 41472, 41472
          %166 = vsyncadd [#allocation5], %s165
          %s167 = sshll.u32 [#allocation4], 4
          %s168 = int_to_ptr.vmem [resolvable:$true] %s167
          %173 = dma.hbm_to_vmem [thread:$0]  %s1, 41472, %s168, [#allocation5], 256, 256, 16
        $region16: #{tpu_custom_call.1} parent=11 // pred_fallthru
          _
        // Predicated region
        $region17: #{tpu_custom_call.1} parent=11 // pred_check
          %p174 = pneg %p83
        $region18: #{tpu_custom_call.1} parent=11 // pred_check_branch
          %176 = sbr.rel (%p174) target = $region20
        $region19: #{tpu_custom_call.1} parent=11 // pred_region
          %s178 = ssub.s32 576, 576
          %179 = vsyncadd [#allocation8], %s178
          %s180 = sshll.u32 [#allocation7], 4
          %s181 = int_to_ptr.vmem [resolvable:$true] %s180
          %186 = dma.hbm_to_vmem [thread:$0]  %s2, 576, %s181, [#allocation8], 64, 64, 4
        $region20: #{tpu_custom_call.1} parent=11 // pred_fallthru
          _
        // Predicated region
        $region21: #{tpu_custom_call.1} parent=11 // pred_check
          %p187 = pneg %p104
        $region22: #{tpu_custom_call.1} parent=11 // pred_check_branch
          %189 = sbr.rel (%p187) target = $region24
        $region23: #{tpu_custom_call.1} parent=11 // pred_region
          %s191 = ssub.s32 16, 16
          %192 = vsyncadd [#allocation8], %s191
          %s194 = sshll.u32 [#allocation9], 4
          %s195 = int_to_ptr.vmem [resolvable:$true] %s194
          %197 = dma.hbm_to_vmem [thread:$0]  %s3, 16, %s195, [#allocation8]
        $region24: #{tpu_custom_call.1} parent=11 // pred_fallthru
          _
        // Predicated region
        $region25: #{tpu_custom_call.1} parent=11 // pred_check
          %p198 = pneg %p125
        $region26: #{tpu_custom_call.1} parent=11 // pred_check_branch
          %200 = sbr.rel (%p198) target = $region28
        $region27: #{tpu_custom_call.1} parent=11 // pred_region
          %s202 = ssub.s32 16, 16
          %203 = vsyncadd [#allocation11], %s202
          %s205 = sshll.u32 [#allocation10], 4
          %s206 = int_to_ptr.vmem [resolvable:$true] %s205
          %208 = dma.hbm_to_vmem [thread:$0]  %s4, 16, %s206, [#allocation11]
        $region28: #{tpu_custom_call.1} parent=11 // pred_fallthru
          _
      $region12: #{tpu_custom_call.1} parent=5 // pred_fallthru
        _
      %p209 = scmp.lt.s32.totalorder %s15, 2
      // Predicated region
      $region29: #{tpu_custom_call.1} parent=5 // pred_check
        %p210 = pneg %p209
      $region30: #{tpu_custom_call.1} parent=5 // pred_check_branch
        %212 = sbr.rel (%p210) target = $region32
      $region31: #{tpu_custom_call.1} parent=5 // pred_region
        // Predicated region
        $region33: #{tpu_custom_call.1} parent=31 // pred_check
          %p213 = pneg %p35
        $region34: #{tpu_custom_call.1} parent=31 // pred_check_branch
          %215 = sbr.rel (%p213) target = $region36
        $region35: #{tpu_custom_call.1} parent=31 // pred_region
          %p216 = scmp.lt.s32.totalorder %s15, 1
          %s217 = scalar_select %p216, %s15, 1
          %s218 = smul.addr %s217, 32
          %s219 = smul.addr %s218, 8
          %s220 = scalar_lea.vmem %s0, %s219
        $region36: #{tpu_custom_call.1} parent=31 // pred_fallthru
          _
      $region32: #{tpu_custom_call.1} parent=5 // pred_fallthru
        _
      %p221 = scmp.le.s32.totalorder 1, %s15
      %p222 = scmp.lt.s32.totalorder %s15, 3
      %p223 = pnand %p221, %p222
      %p224 = pneg %p223
      // Predicated region
      $region37: #{tpu_custom_call.1} parent=5 // pred_check
        _
      $region38: #{tpu_custom_call.1} parent=5 // pred_check_branch
        %226 = sbr.rel (%p223) target = $region40
      $region39: #{tpu_custom_call.1} parent=5 // pred_region
        %s227 = ssub.s32 %s15, 1
        // Predicated region
        $region41: #{tpu_custom_call.1} parent=39 // pred_check
          %p228 = pneg %p62
        $region42: #{tpu_custom_call.1} parent=39 // pred_check_branch
          %230 = sbr.rel (%p228) target = $region44
        $region43: #{tpu_custom_call.1} parent=39 // pred_region
          %231 = dma.done [#allocation5], 41472
        $region44: #{tpu_custom_call.1} parent=39 // pred_fallthru
          _
        // Predicated region
        $region45: #{tpu_custom_call.1} parent=39 // pred_check
          %p232 = pneg %p83
        $region46: #{tpu_custom_call.1} parent=39 // pred_check_branch
          %234 = sbr.rel (%p232) target = $region48
        $region47: #{tpu_custom_call.1} parent=39 // pred_region
          %235 = dma.done [#allocation8], 576
        $region48: #{tpu_custom_call.1} parent=39 // pred_fallthru
          _
        // Predicated region
        $region49: #{tpu_custom_call.1} parent=39 // pred_check
          %p236 = pneg %p104
        $region50: #{tpu_custom_call.1} parent=39 // pred_check_branch
          %238 = sbr.rel (%p236) target = $region52
        $region51: #{tpu_custom_call.1} parent=39 // pred_region
          %239 = dma.done [#allocation8], 16
        $region52: #{tpu_custom_call.1} parent=39 // pred_fallthru
          _
        // Predicated region
        $region53: #{tpu_custom_call.1} parent=39 // pred_check
          %p240 = pneg %p125
        $region54: #{tpu_custom_call.1} parent=39 // pred_check_branch
          %242 = sbr.rel (%p240) target = $region56
        $region55: #{tpu_custom_call.1} parent=39 // pred_region
          %243 = dma.done [#allocation11], 16
        $region56: #{tpu_custom_call.1} parent=39 // pred_fallthru
          _
        %p244 = scmp.lt.s32.totalorder %s20, 1
        %s245 = scalar_select %p244, %s20, 1
        %s246 = smul.addr %s245, 32
        %s247 = smul.addr %s246, 8
        %s248 = scalar_lea.vmem %s0, %s247
        %p249 = pneg %p41
        %p250 = pneg %p38
        %p251 = pneg %p62
        %p252 = pneg %p59
        %p253 = pneg %p83
        %p254 = pneg %p80
        %p255 = pneg %p104
        %p256 = pneg %p101
        %p257 = pneg %p125
        %p258 = pneg %p122
        %p259 = pneg %p146
        %p260 = pneg %p143
        %p261 = scmp.lt.s32.totalorder %s20, 1
        %s262 = scalar_select %p261, %s20, 1
        %s263 = smul.addr %s262, 32
        %s264 = smul.addr %s263, 8
        %s265 = scalar_lea.vmem %s0, %s264
        %p266 = scmp.eq.s32.totalorder %s20, 0
        // Predicated region
        $region57: #{tpu_custom_call.1} parent=39 // pred_check
          %p267 = pneg %p266
        $region58: #{tpu_custom_call.1} parent=39 // pred_check_branch
          %269 = sbr.rel (%p267) target = $region60
        $region59: #{tpu_custom_call.1} parent=39 // pred_region
          %270 = vst [vmem:[#allocation2] sm:$0x1] 0.0
          %271 = vst [vmem:[#allocation3] sm:$0x1] 0.0
        $region60: #{tpu_custom_call.1} parent=39 // pred_fallthru
          _
        %v272 = vld [vmem:[%s265] sm:$0xff]
        %v273 = vld [vmem:[%s265 + $0x8] sm:$0xff]
        %v274 = vld [vmem:[%s265 + $0x10] sm:$0xff]
        %v275 = vld [vmem:[%s265 + $0x18] sm:$0xff]
        %v276 = vld [vmem:[%s265 + $0x20] sm:$0xff]
        %v277 = vld [vmem:[%s265 + $0x28] sm:$0xff]
        %v278 = vld [vmem:[%s265 + $0x30] sm:$0xff]
        %v279 = vld [vmem:[%s265 + $0x38] sm:$0xff]
        %v280 = vld [vmem:[%s265 + $0x40] sm:$0xff]
        %v281 = vld [vmem:[%s265 + $0x48] sm:$0xff]
        %v282 = vld [vmem:[%s265 + $0x50] sm:$0xff]
        %v283 = vld [vmem:[%s265 + $0x58] sm:$0xff]
        %v284 = vld [vmem:[%s265 + $0x60] sm:$0xff]
        %v285 = vld [vmem:[%s265 + $0x68] sm:$0xff]
        %v286 = vld [vmem:[%s265 + $0x70] sm:$0xff]
        %v287 = vld [vmem:[%s265 + $0x78] sm:$0xff]
        %v288 = vld [vmem:[%s265 + $0x80] sm:$0xff]
        %v289 = vld [vmem:[%s265 + $0x88] sm:$0xff]
        %v290 = vld [vmem:[%s265 + $0x90] sm:$0xff]
        %v291 = vld [vmem:[%s265 + $0x98] sm:$0xff]
        %v292 = vld [vmem:[%s265 + $0xa0] sm:$0xff]
        %v293 = vld [vmem:[%s265 + $0xa8] sm:$0xff]
        %v294 = vld [vmem:[%s265 + $0xb0] sm:$0xff]
        %v295 = vld [vmem:[%s265 + $0xb8] sm:$0xff]
        %v296 = vld [vmem:[%s265 + $0xc0] sm:$0xff]
        %v297 = vld [vmem:[%s265 + $0xc8] sm:$0xff]
        %v298 = vld [vmem:[%s265 + $0xd0] sm:$0xff]
        %v299 = vld [vmem:[%s265 + $0xd8] sm:$0xff]
        %v300 = vld [vmem:[%s265 + $0xe0] sm:$0xff]
        %v301 = vld [vmem:[%s265 + $0xe8] sm:$0xff]
        %v302 = vld [vmem:[%s265 + $0xf0] sm:$0xff]
        %v303 = vld [vmem:[%s265 + $0xf8] sm:$0xff]
        %v304 = vld [vmem:[#allocation4] sm:$0xff]
        %v305 = vld [vmem:[#allocation4 + $0x8] sm:$0xff]
        %v306 = vld [vmem:[#allocation4 + $0x10] sm:$0xff]
        %v307 = vld [vmem:[#allocation4 + $0x18] sm:$0xff]
        %v308 = vld [vmem:[#allocation4 + $0x20] sm:$0xff]
        %v309 = vld [vmem:[#allocation4 + $0x28] sm:$0xff]
        %v310 = vld [vmem:[#allocation4 + $0x30] sm:$0xff]
        %v311 = vld [vmem:[#allocation4 + $0x38] sm:$0xff]
        %v312 = vld [vmem:[#allocation4 + $0x40] sm:$0xff]
        %v313 = vld [vmem:[#allocation4 + $0x48] sm:$0xff]
        %v314 = vld [vmem:[#allocation4 + $0x50] sm:$0xff]
        %v315 = vld [vmem:[#allocation4 + $0x58] sm:$0xff]
        %v316 = vld [vmem:[#allocation4 + $0x60] sm:$0xff]
        %v317 = vld [vmem:[#allocation4 + $0x68] sm:$0xff]
        %v318 = vld [vmem:[#allocation4 + $0x70] sm:$0xff]
        %v319 = vld [vmem:[#allocation4 + $0x78] sm:$0xff]
        %v320 = vld [vmem:[#allocation4 + $0x80] sm:$0xff]
        %v321 = vld [vmem:[#allocation4 + $0x88] sm:$0xff]
        %v322 = vld [vmem:[#allocation4 + $0x90] sm:$0xff]
        %v323 = vld [vmem:[#allocation4 + $0x98] sm:$0xff]
        %v324 = vld [vmem:[#allocation4 + $0xa0] sm:$0xff]
        %v325 = vld [vmem:[#allocation4 + $0xa8] sm:$0xff]
        %v326 = vld [vmem:[#allocation4 + $0xb0] sm:$0xff]
        %v327 = vld [vmem:[#allocation4 + $0xb8] sm:$0xff]
        %v328 = vld [vmem:[#allocation4 + $0xc0] sm:$0xff]
        %v329 = vld [vmem:[#allocation4 + $0xc8] sm:$0xff]
        %v330 = vld [vmem:[#allocation4 + $0xd0] sm:$0xff]
        %v331 = vld [vmem:[#allocation4 + $0xd8] sm:$0xff]
        %v332 = vld [vmem:[#allocation4 + $0xe0] sm:$0xff]
        %v333 = vld [vmem:[#allocation4 + $0xe8] sm:$0xff]
        %v334 = vld [vmem:[#allocation4 + $0xf0] sm:$0xff]
        %v335 = vld [vmem:[#allocation4 + $0xf8] sm:$0xff]
        %v336 = vld [vmem:[#allocation4 + $0x100] sm:$0xff]
        %v337 = vld [vmem:[#allocation4 + $0x108] sm:$0xff]
        %v338 = vld [vmem:[#allocation4 + $0x110] sm:$0xff]
        %v339 = vld [vmem:[#allocation4 + $0x118] sm:$0xff]
        %340 = vmatprep.subr.mxu0 0.0
        %341 = vmatpush1.msra.mxu0 %v272
        %342 = vmatprep.subr.mxu0 0.0
        %343 = vmatpush1.msra.mxu0 %v273
        %344 = vmatprep.subr.mxu0 0.0
        %345 = vmatpush1.msra.mxu0 %v274
        %346 = vmatprep.subr.mxu0 0.0
        %347 = vmatpush1.msra.mxu0 %v275
        %348 = vmatprep.subr.mxu0 0.0
        %349 = vmatpush1.msra.mxu0 %v276
        %350 = vmatprep.subr.mxu0 0.0
        %351 = vmatpush1.msra.mxu0 %v277
        %352 = vmatprep.subr.mxu0 0.0
        %353 = vmatpush1.msra.mxu0 %v278
        %354 = vmatprep.subr.mxu0 0.0
        %355 = vmatpush1.msra.mxu0 %v279
        %356 = vmatprep.subr.mxu0 0.0
        %357 = vmatpush1.msra.mxu0 %v280
        %358 = vmatprep.subr.mxu0 0.0
        %359 = vmatpush1.msra.mxu0 %v281
        %360 = vmatprep.subr.mxu0 0.0
        %361 = vmatpush1.msra.mxu0 %v282
        %362 = vmatprep.subr.mxu0 0.0
        %363 = vmatpush1.msra.mxu0 %v283
        %364 = vmatprep.subr.mxu0 0.0
        %365 = vmatpush1.msra.mxu0 %v284
        %366 = vmatprep.subr.mxu0 0.0
        %367 = vmatpush1.msra.mxu0 %v285
        %368 = vmatprep.subr.mxu0 0.0
        %369 = vmatpush1.msra.mxu0 %v286
        %370 = vmatprep.subr.mxu0 0.0
        %371 = vmatpush1.msra.mxu0 %v287
        %372 = vmatprep.subr.mxu0 0.0
        %373 = vmatpush1.msra.mxu0 %v288
        %374 = vmatprep.subr.mxu0 0.0
        %375 = vmatpush1.msra.mxu0 %v289
        %376 = vmatprep.subr.mxu0 0.0
        %377 = vmatpush1.msra.mxu0 %v290
        %378 = vmatprep.subr.mxu0 0.0
        %379 = vmatpush1.msra.mxu0 %v291
        %380 = vmatprep.subr.mxu0 0.0
        %381 = vmatpush1.msra.mxu0 %v292
        %382 = vmatprep.subr.mxu0 0.0
        %383 = vmatpush1.msra.mxu0 %v293
        %384 = vmatprep.subr.mxu0 0.0
        %385 = vmatpush1.msra.mxu0 %v294
        %386 = vmatprep.subr.mxu0 0.0
        %387 = vmatpush1.msra.mxu0 %v295
        %388 = vmatprep.subr.mxu0 0.0
        %389 = vmatpush1.msra.mxu0 %v296
        %390 = vmatprep.subr.mxu0 0.0
        %391 = vmatpush1.msra.mxu0 %v297
        %392 = vmatprep.subr.mxu0 0.0
        %393 = vmatpush1.msra.mxu0 %v298
        %394 = vmatprep.subr.mxu0 0.0
        %395 = vmatpush1.msra.mxu0 %v299
        %396 = vmatprep.subr.mxu0 0.0
        %397 = vmatpush1.msra.mxu0 %v300
        %398 = vmatprep.subr.mxu0 0.0
        %399 = vmatpush1.msra.mxu0 %v301
        %400 = vmatprep.subr.mxu0 0.0
        %401 = vmatpush1.msra.mxu0 %v302
        %402 = vmatprep.subr.mxu0 0.0
        %403 = vmatpush1.msra.mxu0 %v303
        %404 = vmatprep.mubr.f32.mxu0 %v305
        %405 = vmatmul.mubr.f32.gmra.mrb[0].mxu0 %v304
        %v406 = vpop.f32.mrb[0].mxu0
        %v407 = vadd.f32 0.0, %v406
        %v408 = vpop.f32.mrb[0].mxu0
        %409 = vmatprep.mubr.f32.mxu0 %v307
        %410 = vmatmul.mubr.f32.gmra.mrb[0].mxu0 %v306
        %v411 = vpop.f32.mrb[0].mxu0
        %v412 = vadd.f32 0.0, %v411
        %v413 = vpop.f32.mrb[0].mxu0
        %414 = vmatprep.mubr.f32.mxu0 %v309
        %415 = vmatmul.mubr.f32.gmra.mrb[0].mxu0 %v308
        %v416 = vpop.f32.mrb[0].mxu0
        %v417 = vadd.f32 0.0, %v416
        %v418 = vpop.f32.mrb[0].mxu0
        %419 = vmatprep.mubr.f32.mxu0 %v311
        %420 = vmatmul.mubr.f32.gmra.mrb[0].mxu0 %v310
        %v421 = vpop.f32.mrb[0].mxu0
        %v422 = vadd.f32 0.0, %v421
        %v423 = vpop.f32.mrb[0].mxu0
        %424 = vmatprep.mubr.f32.mxu0 %v313
        %425 = vmatmul.mubr.f32.gmra.mrb[0].mxu0 %v312
        %v426 = vpop.f32.mrb[0].mxu0
        %v427 = vadd.f32 0.0, %v426
        %v428 = vpop.f32.mrb[0].mxu0
        %429 = vmatprep.mubr.f32.mxu0 %v315
        %430 = vmatmul.mubr.f32.gmra.mrb[0].mxu0 %v314
        %v431 = vpop.f32.mrb[0].mxu0
        %v432 = vadd.f32 0.0, %v431
        %v433 = vpop.f32.mrb[0].mxu0
        %434 = vmatprep.mubr.f32.mxu0 %v317
        %435 = vmatmul.mubr.f32.gmra.mrb[0].mxu0 %v316
        %v436 = vpop.f32.mrb[0].mxu0
        %v437 = vadd.f32 0.0, %v436
        %v438 = vpop.f32.mrb[0].mxu0
        %439 = vmatprep.mubr.f32.mxu0 %v319
        %440 = vmatmul.mubr.f32.gmra.mrb[0].mxu0 %v318
        %v441 = vpop.f32.mrb[0].mxu0
        %v442 = vadd.f32 0.0, %v441
        %v443 = vpop.f32.mrb[0].mxu0
        %444 = vmatprep.mubr.f32.mxu0 %v321
        %445 = vmatmul.mubr.f32.gmra.mrb[0].mxu0 %v320
        %v446 = vpop.f32.mrb[0].mxu0
        %v447 = vadd.f32 0.0, %v446
        %v448 = vpop.f32.mrb[0].mxu0
        %449 = vmatprep.mubr.f32.mxu0 %v323
        %450 = vmatmul.mubr.f32.gmra.mrb[0].mxu0 %v322
        %v451 = vpop.f32.mrb[0].mxu0
        %v452 = vadd.f32 0.0, %v451
        %v453 = vpop.f32.mrb[0].mxu0
        %454 = vmatprep.mubr.f32.mxu0 %v325
        %455 = vmatmul.mubr.f32.gmra.mrb[0].mxu0 %v324
        %v456 = vpop.f32.mrb[0].mxu0
        %v457 = vadd.f32 0.0, %v456
        %v458 = vpop.f32.mrb[0].mxu0
        %459 = vmatprep.mubr.f32.mxu0 %v327
        %460 = vmatmul.mubr.f32.gmra.mrb[0].mxu0 %v326
        %v461 = vpop.f32.mrb[0].mxu0
        %v462 = vadd.f32 0.0, %v461
        %v463 = vpop.f32.mrb[0].mxu0
        %464 = vmatprep.mubr.f32.mxu0 %v329
        %465 = vmatmul.mubr.f32.gmra.mrb[0].mxu0 %v328
        %v466 = vpop.f32.mrb[0].mxu0
        %v467 = vadd.f32 0.0, %v466
        %v468 = vpop.f32.mrb[0].mxu0
        %469 = vmatprep.mubr.f32.mxu0 %v331
        %470 = vmatmul.mubr.f32.gmra.mrb[0].mxu0 %v330
        %v471 = vpop.f32.mrb[0].mxu0
        %v472 = vadd.f32 0.0, %v471
        %v473 = vpop.f32.mrb[0].mxu0
        %474 = vmatprep.mubr.f32.mxu0 %v333
        %475 = vmatmul.mubr.f32.gmra.mrb[0].mxu0 %v332
        %v476 = vpop.f32.mrb[0].mxu0
        %v477 = vadd.f32 0.0, %v476
        %v478 = vpop.f32.mrb[0].mxu0
        %479 = vmatprep.mubr.f32.mxu0 %v335
        %480 = vmatmul.mubr.f32.gmra.mrb[0].mxu0 %v334
        %v481 = vpop.f32.mrb[0].mxu0
        %v482 = vadd.f32 0.0, %v481
        %v483 = vpop.f32.mrb[0].mxu0
        %484 = vmatprep.mubr.f32.mxu0 %v337
        %485 = vmatmul.mubr.f32.gmra.mrb[0].mxu0 %v336
        %v486 = vpop.f32.mrb[0].mxu0
        %v487 = vadd.f32 0.0, %v486
        %v488 = vpop.f32.mrb[0].mxu0
        %489 = vmatprep.mubr.f32.mxu0 %v339
        %490 = vmatmul.mubr.f32.gmra.mrb[0].mxu0 %v338
        %v491 = vpop.f32.mrb[0].mxu0
        %v492 = vadd.f32 0.0, %v491
        %v493 = vpop.f32.mrb[0].mxu0
        %494 = vdwg.mxu0
        %v495 = vld [vmem:[#allocation7] sm:$0xf]
        %s496 = scalar_lea.vmem [#allocation4], 288
        %v497 = vld [vmem:[%s496] sm:$0xff]
        %v498 = vld [vmem:[%s496 + $0x8] sm:$0xff]
        %v499 = vld [vmem:[%s496 + $0x10] sm:$0xff]
        %v500 = vld [vmem:[%s496 + $0x18] sm:$0xff]
        %v501 = vld [vmem:[%s496 + $0x20] sm:$0xff]
        %v502 = vld [vmem:[%s496 + $0x28] sm:$0xff]
        %v503 = vld [vmem:[%s496 + $0x30] sm:$0xff]
        %v504 = vld [vmem:[%s496 + $0x38] sm:$0xff]
        %v505 = vld [vmem:[%s496 + $0x40] sm:$0xff]
        %v506 = vld [vmem:[%s496 + $0x48] sm:$0xff]
        %v507 = vld [vmem:[%s496 + $0x50] sm:$0xff]
        %v508 = vld [vmem:[%s496 + $0x58] sm:$0xff]
        %v509 = vld [vmem:[%s496 + $0x60] sm:$0xff]
        %v510 = vld [vmem:[%s496 + $0x68] sm:$0xff]
        %v511 = vld [vmem:[%s496 + $0x70] sm:$0xff]
        %v512 = vld [vmem:[%s496 + $0x78] sm:$0xff]
        %v513 = vld [vmem:[%s496 + $0x80] sm:$0xff]
        %v514 = vld [vmem:[%s496 + $0x88] sm:$0xff]
        %v515 = vld [vmem:[%s496 + $0x90] sm:$0xff]
        %v516 = vld [vmem:[%s496 + $0x98] sm:$0xff]
        %v517 = vld [vmem:[%s496 + $0xa0] sm:$0xff]
        %v518 = vld [vmem:[%s496 + $0xa8] sm:$0xff]
        %v519 = vld [vmem:[%s496 + $0xb0] sm:$0xff]
        %v520 = vld [vmem:[%s496 + $0xb8] sm:$0xff]
        %v521 = vld [vmem:[%s496 + $0xc0] sm:$0xff]
        %v522 = vld [vmem:[%s496 + $0xc8] sm:$0xff]
        %v523 = vld [vmem:[%s496 + $0xd0] sm:$0xff]
        %v524 = vld [vmem:[%s496 + $0xd8] sm:$0xff]
        %v525 = vld [vmem:[%s496 + $0xe0] sm:$0xff]
        %v526 = vld [vmem:[%s496 + $0xe8] sm:$0xff]
        %v527 = vld [vmem:[%s496 + $0xf0] sm:$0xff]
        %v528 = vld [vmem:[%s496 + $0xf8] sm:$0xff]
        %v529 = vld [vmem:[%s496 + $0x100] sm:$0xff]
        %v530 = vld [vmem:[%s496 + $0x108] sm:$0xff]
        %v531 = vld [vmem:[%s496 + $0x110] sm:$0xff]
        %v532 = vld [vmem:[%s496 + $0x118] sm:$0xff]
        %533 = vmatprep.subr.mxu0 0.0
        %534 = vmatpush1.msra.mxu0 %v272
        %535 = vmatprep.subr.mxu0 0.0
        %536 = vmatpush1.msra.mxu0 %v273
        %537 = vmatprep.subr.mxu0 0.0
        %538 = vmatpush1.msra.mxu0 %v274
        %539 = vmatprep.subr.mxu0 0.0
        %540 = vmatpush1.msra.mxu0 %v275
        %541 = vmatprep.subr.mxu0 0.0
        %542 = vmatpush1.msra.mxu0 %v276
        %543 = vmatprep.subr.mxu0 0.0
        %544 = vmatpush1.msra.mxu0 %v277
        %545 = vmatprep.subr.mxu0 0.0
        %546 = vmatpush1.msra.mxu0 %v278
        %547 = vmatprep.subr.mxu0 0.0
        %548 = vmatpush1.msra.mxu0 %v279
        %549 = vmatprep.subr.mxu0 0.0
        %550 = vmatpush1.msra.mxu0 %v280
        %551 = vmatprep.subr.mxu0 0.0
        %552 = vmatpush1.msra.mxu0 %v281
        %553 = vmatprep.subr.mxu0 0.0
        %554 = vmatpush1.msra.mxu0 %v282
        %555 = vmatprep.subr.mxu0 0.0
        %556 = vmatpush1.msra.mxu0 %v283
        %557 = vmatprep.subr.mxu0 0.0
        %558 = vmatpush1.msra.mxu0 %v284
        %559 = vmatprep.subr.mxu0 0.0
        %560 = vmatpush1.msra.mxu0 %v285
        %561 = vmatprep.subr.mxu0 0.0
        %562 = vmatpush1.msra.mxu0 %v286
        %563 = vmatprep.subr.mxu0 0.0
        %564 = vmatpush1.msra.mxu0 %v287
        %565 = vmatprep.subr.mxu0 0.0
        %566 = vmatpush1.msra.mxu0 %v288
        %567 = vmatprep.subr.mxu0 0.0
        %568 = vmatpush1.msra.mxu0 %v289
        %569 = vmatprep.subr.mxu0 0.0
        %570 = vmatpush1.msra.mxu0 %v290
        %571 = vmatprep.subr.mxu0 0.0
        %572 = vmatpush1.msra.mxu0 %v291
        %573 = vmatprep.subr.mxu0 0.0
        %574 = vmatpush1.msra.mxu0 %v292
        %575 = vmatprep.subr.mxu0 0.0
        %576 = vmatpush1.msra.mxu0 %v293
        %577 = vmatprep.subr.mxu0 0.0
        %578 = vmatpush1.msra.mxu0 %v294
        %579 = vmatprep.subr.mxu0 0.0
        %580 = vmatpush1.msra.mxu0 %v295
        %581 = vmatprep.subr.mxu0 0.0
        %582 = vmatpush1.msra.mxu0 %v296
        %583 = vmatprep.subr.mxu0 0.0
        %584 = vmatpush1.msra.mxu0 %v297
        %585 = vmatprep.subr.mxu0 0.0
        %586 = vmatpush1.msra.mxu0 %v298
        %587 = vmatprep.subr.mxu0 0.0
        %588 = vmatpush1.msra.mxu0 %v299
        %589 = vmatprep.subr.mxu0 0.0
        %590 = vmatpush1.msra.mxu0 %v300
        %591 = vmatprep.subr.mxu0 0.0
        %592 = vmatpush1.msra.mxu0 %v301
        %593 = vmatprep.subr.mxu0 0.0
        %594 = vmatpush1.msra.mxu0 %v302
        %595 = vmatprep.subr.mxu0 0.0
        %596 = vmatpush1.msra.mxu0 %v303
        %597 = vmatprep.mubr.f32.mxu0 %v498
        %598 = vmatmul.mubr.f32.gmra.mrb[0].mxu0 %v497
        %v599 = vpop.f32.mrb[0].mxu0
        %v600 = vadd.f32 0.0, %v599
        %v601 = vpop.f32.mrb[0].mxu0
        %602 = vmatprep.mubr.f32.mxu0 %v500
        %603 = vmatmul.mubr.f32.gmra.mrb[0].mxu0 %v499
        %v604 = vpop.f32.mrb[0].mxu0
        %v605 = vadd.f32 0.0, %v604
        %v606 = vpop.f32.mrb[0].mxu0
        %607 = vmatprep.mubr.f32.mxu0 %v502
        %608 = vmatmul.mubr.f32.gmra.mrb[0].mxu0 %v501
        %v609 = vpop.f32.mrb[0].mxu0
        %v610 = vadd.f32 0.0, %v609
        %v611 = vpop.f32.mrb[0].mxu0
        %612 = vmatprep.mubr.f32.mxu0 %v504
        %613 = vmatmul.mubr.f32.gmra.mrb[0].mxu0 %v503
        %v614 = vpop.f32.mrb[0].mxu0
        %v615 = vadd.f32 0.0, %v614
        %v616 = vpop.f32.mrb[0].mxu0
        %617 = vmatprep.mubr.f32.mxu0 %v506
        %618 = vmatmul.mubr.f32.gmra.mrb[0].mxu0 %v505
        %v619 = vpop.f32.mrb[0].mxu0
        %v620 = vadd.f32 0.0, %v619
        %v621 = vpop.f32.mrb[0].mxu0
        %622 = vmatprep.mubr.f32.mxu0 %v508
        %623 = vmatmul.mubr.f32.gmra.mrb[0].mxu0 %v507
        %v624 = vpop.f32.mrb[0].mxu0
        %v625 = vadd.f32 0.0, %v624
        %v626 = vpop.f32.mrb[0].mxu0
        %627 = vmatprep.mubr.f32.mxu0 %v510
        %628 = vmatmul.mubr.f32.gmra.mrb[0].mxu0 %v509
        %v629 = vpop.f32.mrb[0].mxu0
        %v630 = vadd.f32 0.0, %v629
        %v631 = vpop.f32.mrb[0].mxu0
        %632 = vmatprep.mubr.f32.mxu0 %v512
        %633 = vmatmul.mubr.f32.gmra.mrb[0].mxu0 %v511
        %v634 = vpop.f32.mrb[0].mxu0
        %v635 = vadd.f32 0.0, %v634
        %v636 = vpop.f32.mrb[0].mxu0
        %637 = vmatprep.mubr.f32.mxu0 %v514
        %638 = vmatmul.mubr.f32.gmra.mrb[0].mxu0 %v513
        %v639 = vpop.f32.mrb[0].mxu0
        %v640 = vadd.f32 0.0, %v639
        %v641 = vpop.f32.mrb[0].mxu0
        %642 = vmatprep.mubr.f32.mxu0 %v516
        %643 = vmatmul.mubr.f32.gmra.mrb[0].mxu0 %v515
        %v644 = vpop.f32.mrb[0].mxu0
        %v645 = vadd.f32 0.0, %v644
        %v646 = vpop.f32.mrb[0].mxu0
        %647 = vmatprep.mubr.f32.mxu0 %v518
        %648 = vmatmul.mubr.f32.gmra.mrb[0].mxu0 %v517
        %v649 = vpop.f32.mrb[0].mxu0
        %v650 = vadd.f32 0.0, %v649
        %v651 = vpop.f32.mrb[0].mxu0
        %652 = vmatprep.mubr.f32.mxu0 %v520
        %653 = vmatmul.mubr.f32.gmra.mrb[0].mxu0 %v519
        %v654 = vpop.f32.mrb[0].mxu0
        %v655 = vadd.f32 0.0, %v654
        %v656 = vpop.f32.mrb[0].mxu0
        %657 = vmatprep.mubr.f32.mxu0 %v522
        %658 = vmatmul.mubr.f32.gmra.mrb[0].mxu0 %v521
        %v659 = vpop.f32.mrb[0].mxu0
        %v660 = vadd.f32 0.0, %v659
        %v661 = vpop.f32.mrb[0].mxu0
        %662 = vmatprep.mubr.f32.mxu0 %v524
        %663 = vmatmul.mubr.f32.gmra.mrb[0].mxu0 %v523
        %v664 = vpop.f32.mrb[0].mxu0
        %v665 = vadd.f32 0.0, %v664
        %v666 = vpop.f32.mrb[0].mxu0
        %667 = vmatprep.mubr.f32.mxu0 %v526
        %668 = vmatmul.mubr.f32.gmra.mrb[0].mxu0 %v525
        %v669 = vpop.f32.mrb[0].mxu0
        %v670 = vadd.f32 0.0, %v669
        %v671 = vpop.f32.mrb[0].mxu0
        %672 = vmatprep.mubr.f32.mxu0 %v528
        %673 = vmatmul.mubr.f32.gmra.mrb[0].mxu0 %v527
        %v674 = vpop.f32.mrb[0].mxu0
        %v675 = vadd.f32 0.0, %v674
        %v676 = vpop.f32.mrb[0].mxu0
        %677 = vmatprep.mubr.f32.mxu0 %v530
        %678 = vmatmul.mubr.f32.gmra.mrb[0].mxu0 %v529
        %v679 = vpop.f32.mrb[0].mxu0
        %v680 = vadd.f32 0.0, %v679
        %v681 = vpop.f32.mrb[0].mxu0
        %682 = vmatprep.mubr.f32.mxu0 %v532
        %683 = vmatmul.mubr.f32.gmra.mrb[0].mxu0 %v531
        %v684 = vpop.f32.mrb[0].mxu0
        %v685 = vadd.f32 0.0, %v684
        %v686 = vpop.f32.mrb[0].mxu0
        %687 = vdwg.mxu0
        %s688 = scalar_lea.vmem [#allocation7], 4
        %v689 = vld [vmem:[%s688] sm:$0xf]
        %vm690 = vcmask 31744
        %v692 = vsel %vm690, %v600, 0
        %v695 = vsel %vm690, %v605, 0
        %v698 = vsel %vm690, %v610, 0
        %v701 = vsel %vm690, %v615, 0
        %v704 = vsel %vm690, %v620, 0
        %v707 = vsel %vm690, %v625, 0
        %v710 = vsel %vm690, %v630, 0
        %v713 = vsel %vm690, %v635, 0
        %v716 = vsel %vm690, %v640, 0
        %v719 = vsel %vm690, %v645, 0
        %v722 = vsel %vm690, %v650, 0
        %v725 = vsel %vm690, %v655, 0
        %v728 = vsel %vm690, %v660, 0
        %v731 = vsel %vm690, %v665, 0
        %v734 = vsel %vm690, %v670, 0
        %v737 = vsel %vm690, %v675, 0
        %v740 = vsel %vm690, %v680, 0
        %v743 = vsel %vm690, %v685, 0
        %vm745 = vcmask 1043456
        %v747 = vsel %vm745, %v689, 0
        %749 = vmatprep.subr.mxu0 0.0
        %750 = vmatpush1.msra.mxu0 %v747
        %751 = vmatprep.subr.mxu0 0.0
        %752 = vmatpush1.msra.mxu0 0.0
        %753 = vmatprep.subr.mxu0 0.0
        %754 = vmatpush1.msra.mxu0 0.0
        %755 = vmatprep.subr.mxu0 0.0
        %756 = vmatpush1.msra.mxu0 0.0
        %757 = vmatprep.subr.mxu0 0.0
        %758 = vmatpush1.msra.mxu0 0.0
        %759 = vmatprep.subr.mxu0 0.0
        %760 = vmatpush1.msra.mxu0 0.0
        %761 = vmatprep.subr.mxu0 0.0
        %762 = vmatpush1.msra.mxu0 0.0
        %763 = vmatprep.subr.mxu0 0.0
        %764 = vmatpush1.msra.mxu0 0.0
        %765 = vmatprep.subr.mxu0 0.0
        %766 = vmatpush1.msra.mxu0 0.0
        %767 = vmatprep.subr.mxu0 0.0
        %768 = vmatpush1.msra.mxu0 0.0
        %769 = vmatprep.subr.mxu0 0.0
        %770 = vmatpush1.msra.mxu0 0.0
        %771 = vmatprep.subr.mxu0 0.0
        %772 = vmatpush1.msra.mxu0 0.0
        %773 = vmatprep.subr.mxu0 0.0
        %774 = vmatpush1.msra.mxu0 0.0
        %775 = vmatprep.subr.mxu0 0.0
        %776 = vmatpush1.msra.mxu0 0.0
        %777 = vmatprep.subr.mxu0 0.0
        %778 = vmatpush1.msra.mxu0 0.0
        %779 = vmatprep.subr.mxu0 0.0
        %780 = vmatpush1.msra.mxu0 0.0
        %781 = vmatprep.subr.mxu0 0.0
        %782 = vmatpush1.msra.mxu0 0.0
        %783 = vmatprep.subr.mxu0 0.0
        %784 = vmatpush1.msra.mxu0 0.0
        %785 = vmatprep.subr.mxu0 0.0
        %786 = vmatpush1.msra.mxu0 0.0
        %787 = vmatprep.subr.mxu0 0.0
        %788 = vmatpush1.msra.mxu0 0.0
        %789 = vmatprep.subr.mxu0 0.0
        %790 = vmatpush1.msra.mxu0 0.0
        %791 = vmatprep.subr.mxu0 0.0
        %792 = vmatpush1.msra.mxu0 0.0
        %793 = vmatprep.subr.mxu0 0.0
        %794 = vmatpush1.msra.mxu0 0.0
        %795 = vmatprep.subr.mxu0 0.0
        %796 = vmatpush1.msra.mxu0 0.0
        %797 = vmatprep.subr.mxu0 0.0
        %798 = vmatpush1.msra.mxu0 0.0
        %799 = vmatprep.subr.mxu0 0.0
        %800 = vmatpush1.msra.mxu0 0.0
        %801 = vmatprep.subr.mxu0 0.0
        %802 = vmatpush1.msra.mxu0 0.0
        %803 = vmatprep.subr.mxu0 0.0
        %804 = vmatpush1.msra.mxu0 0.0
        %805 = vmatprep.subr.mxu0 0.0
        %806 = vmatpush1.msra.mxu0 0.0
        %807 = vmatprep.subr.mxu0 0.0
        %808 = vmatpush1.msra.mxu0 0.0
        %809 = vmatprep.subr.mxu0 0.0
        %810 = vmatpush1.msra.mxu0 0.0
        %811 = vmatprep.subr.mxu0 0.0
        %812 = vmatpush1.msra.mxu0 0.0
        %813 = vmatprep.mubr.f32.mxu0 0.0
        %814 = vmatmul.mubr.f32.gmra.mrb[0].mxu0 %v692
        %v815 = vpop.f32.mrb[0].mxu0
        %v816 = vadd.f32 0.0, %v815
        %v817 = vpop.f32.mrb[0].mxu0
        %818 = vmatprep.mubr.f32.mxu0 0.0
        %819 = vmatmul.mubr.f32.gmra.mrb[0].mxu0 %v695
        %v820 = vpop.f32.mrb[0].mxu0
        %v821 = vadd.f32 0.0, %v820
        %v822 = vpop.f32.mrb[0].mxu0
        %823 = vmatprep.mubr.f32.mxu0 0.0
        %824 = vmatmul.mubr.f32.gmra.mrb[0].mxu0 %v698
        %v825 = vpop.f32.mrb[0].mxu0
        %v826 = vadd.f32 0.0, %v825
        %v827 = vpop.f32.mrb[0].mxu0
        %828 = vmatprep.mubr.f32.mxu0 0.0
        %829 = vmatmul.mubr.f32.gmra.mrb[0].mxu0 %v701
        %v830 = vpop.f32.mrb[0].mxu0
        %v831 = vadd.f32 0.0, %v830
        %v832 = vpop.f32.mrb[0].mxu0
        %833 = vmatprep.mubr.f32.mxu0 0.0
        %834 = vmatmul.mubr.f32.gmra.mrb[0].mxu0 %v704
        %v835 = vpop.f32.mrb[0].mxu0
        %v836 = vadd.f32 0.0, %v835
        %v837 = vpop.f32.mrb[0].mxu0
        %838 = vmatprep.mubr.f32.mxu0 0.0
        %839 = vmatmul.mubr.f32.gmra.mrb[0].mxu0 %v707
        %v840 = vpop.f32.mrb[0].mxu0
        %v841 = vadd.f32 0.0, %v840
        %v842 = vpop.f32.mrb[0].mxu0
        %843 = vmatprep.mubr.f32.mxu0 0.0
        %844 = vmatmul.mubr.f32.gmra.mrb[0].mxu0 %v710
        %v845 = vpop.f32.mrb[0].mxu0
        %v846 = vadd.f32 0.0, %v845
        %v847 = vpop.f32.mrb[0].mxu0
        %848 = vmatprep.mubr.f32.mxu0 0.0
        %849 = vmatmul.mubr.f32.gmra.mrb[0].mxu0 %v713
        %v850 = vpop.f32.mrb[0].mxu0
        %v851 = vadd.f32 0.0, %v850
        %v852 = vpop.f32.mrb[0].mxu0
        %853 = vmatprep.mubr.f32.mxu0 0.0
        %854 = vmatmul.mubr.f32.gmra.mrb[0].mxu0 %v716
        %v855 = vpop.f32.mrb[0].mxu0
        %v856 = vadd.f32 0.0, %v855
        %v857 = vpop.f32.mrb[0].mxu0
        %858 = vmatprep.mubr.f32.mxu0 0.0
        %859 = vmatmul.mubr.f32.gmra.mrb[0].mxu0 %v719
        %v860 = vpop.f32.mrb[0].mxu0
        %v861 = vadd.f32 0.0, %v860
        %v862 = vpop.f32.mrb[0].mxu0
        %863 = vmatprep.mubr.f32.mxu0 0.0
        %864 = vmatmul.mubr.f32.gmra.mrb[0].mxu0 %v722
        %v865 = vpop.f32.mrb[0].mxu0
        %v866 = vadd.f32 0.0, %v865
        %v867 = vpop.f32.mrb[0].mxu0
        %868 = vmatprep.mubr.f32.mxu0 0.0
        %869 = vmatmul.mubr.f32.gmra.mrb[0].mxu0 %v725
        %v870 = vpop.f32.mrb[0].mxu0
        %v871 = vadd.f32 0.0, %v870
        %v872 = vpop.f32.mrb[0].mxu0
        %873 = vmatprep.mubr.f32.mxu0 0.0
        %874 = vmatmul.mubr.f32.gmra.mrb[0].mxu0 %v728
        %v875 = vpop.f32.mrb[0].mxu0
        %v876 = vadd.f32 0.0, %v875
        %v877 = vpop.f32.mrb[0].mxu0
        %878 = vmatprep.mubr.f32.mxu0 0.0
        %879 = vmatmul.mubr.f32.gmra.mrb[0].mxu0 %v731
        %v880 = vpop.f32.mrb[0].mxu0
        %v881 = vadd.f32 0.0, %v880
        %v882 = vpop.f32.mrb[0].mxu0
        %883 = vmatprep.mubr.f32.mxu0 0.0
        %884 = vmatmul.mubr.f32.gmra.mrb[0].mxu0 %v734
        %v885 = vpop.f32.mrb[0].mxu0
        %v886 = vadd.f32 0.0, %v885
        %v887 = vpop.f32.mrb[0].mxu0
        %888 = vmatprep.mubr.f32.mxu0 0.0
        %889 = vmatmul.mubr.f32.gmra.mrb[0].mxu0 %v737
        %v890 = vpop.f32.mrb[0].mxu0
        %v891 = vadd.f32 0.0, %v890
        %v892 = vpop.f32.mrb[0].mxu0
        %893 = vmatprep.mubr.f32.mxu0 0.0
        %894 = vmatmul.mubr.f32.gmra.mrb[0].mxu0 %v740
        %v895 = vpop.f32.mrb[0].mxu0
        %v896 = vadd.f32 0.0, %v895
        %v897 = vpop.f32.mrb[0].mxu0
        %898 = vmatprep.mubr.f32.mxu0 0.0
        %899 = vmatmul.mubr.f32.gmra.mrb[0].mxu0 %v743
        %v900 = vpop.f32.mrb[0].mxu0
        %v901 = vadd.f32 0.0, %v900
        %v902 = vpop.f32.mrb[0].mxu0
        %903 = vdwg.mxu0
        %v905 = vsel %vm690, %v407, 0
        %v908 = vsel %vm690, %v412, 0
        %v911 = vsel %vm690, %v417, 0
        %v914 = vsel %vm690, %v422, 0
        %v917 = vsel %vm690, %v427, 0
        %v920 = vsel %vm690, %v432, 0
        %v923 = vsel %vm690, %v437, 0
        %v926 = vsel %vm690, %v442, 0
        %v929 = vsel %vm690, %v447, 0
        %v932 = vsel %vm690, %v452, 0
        %v935 = vsel %vm690, %v457, 0
        %v938 = vsel %vm690, %v462, 0
        %v941 = vsel %vm690, %v467, 0
        %v944 = vsel %vm690, %v472, 0
        %v947 = vsel %vm690, %v477, 0
        %v950 = vsel %vm690, %v482, 0
        %v953 = vsel %vm690, %v487, 0
        %v956 = vsel %vm690, %v492, 0
        %v959 = vsel %vm745, %v495, 0
        %961 = vmatprep.subr.mxu0 0.0
        %962 = vmatpush1.msra.mxu0 %v959
        %963 = vmatprep.subr.mxu0 0.0
        %964 = vmatpush1.msra.mxu0 0.0
        %965 = vmatprep.subr.mxu0 0.0
        %966 = vmatpush1.msra.mxu0 0.0
        %967 = vmatprep.subr.mxu0 0.0
        %968 = vmatpush1.msra.mxu0 0.0
        %969 = vmatprep.subr.mxu0 0.0
        %970 = vmatpush1.msra.mxu0 0.0
        %971 = vmatprep.subr.mxu0 0.0
        %972 = vmatpush1.msra.mxu0 0.0
        %973 = vmatprep.subr.mxu0 0.0
        %974 = vmatpush1.msra.mxu0 0.0
        %975 = vmatprep.subr.mxu0 0.0
        %976 = vmatpush1.msra.mxu0 0.0
        %977 = vmatprep.subr.mxu0 0.0
        %978 = vmatpush1.msra.mxu0 0.0
        %979 = vmatprep.subr.mxu0 0.0
        %980 = vmatpush1.msra.mxu0 0.0
        %981 = vmatprep.subr.mxu0 0.0
        %982 = vmatpush1.msra.mxu0 0.0
        %983 = vmatprep.subr.mxu0 0.0
        %984 = vmatpush1.msra.mxu0 0.0
        %985 = vmatprep.subr.mxu0 0.0
        %986 = vmatpush1.msra.mxu0 0.0
        %987 = vmatprep.subr.mxu0 0.0
        %988 = vmatpush1.msra.mxu0 0.0
        %989 = vmatprep.subr.mxu0 0.0
        %990 = vmatpush1.msra.mxu0 0.0
        %991 = vmatprep.subr.mxu0 0.0
        %992 = vmatpush1.msra.mxu0 0.0
        %993 = vmatprep.subr.mxu0 0.0
        %994 = vmatpush1.msra.mxu0 0.0
        %995 = vmatprep.subr.mxu0 0.0
        %996 = vmatpush1.msra.mxu0 0.0
        %997 = vmatprep.subr.mxu0 0.0
        %998 = vmatpush1.msra.mxu0 0.0
        %999 = vmatprep.subr.mxu0 0.0
        %1000 = vmatpush1.msra.mxu0 0.0
        %1001 = vmatprep.subr.mxu0 0.0
        %1002 = vmatpush1.msra.mxu0 0.0
        %1003 = vmatprep.subr.mxu0 0.0
        %1004 = vmatpush1.msra.mxu0 0.0
        %1005 = vmatprep.subr.mxu0 0.0
        %1006 = vmatpush1.msra.mxu0 0.0
        %1007 = vmatprep.subr.mxu0 0.0
        %1008 = vmatpush1.msra.mxu0 0.0
        %1009 = vmatprep.subr.mxu0 0.0
        %1010 = vmatpush1.msra.mxu0 0.0
        %1011 = vmatprep.subr.mxu0 0.0
        %1012 = vmatpush1.msra.mxu0 0.0
        %1013 = vmatprep.subr.mxu0 0.0
        %1014 = vmatpush1.msra.mxu0 0.0
        %1015 = vmatprep.subr.mxu0 0.0
        %1016 = vmatpush1.msra.mxu0 0.0
        %1017 = vmatprep.subr.mxu0 0.0
        %1018 = vmatpush1.msra.mxu0 0.0
        %1019 = vmatprep.subr.mxu0 0.0
        %1020 = vmatpush1.msra.mxu0 0.0
        %1021 = vmatprep.subr.mxu0 0.0
        %1022 = vmatpush1.msra.mxu0 0.0
        %1023 = vmatprep.subr.mxu0 0.0
        %1024 = vmatpush1.msra.mxu0 0.0
        %1025 = vmatprep.mubr.f32.mxu0 0.0
        %1026 = vmatmul.mubr.f32.gmra.mrb[0].mxu0 %v905
        %v1027 = vpop.f32.mrb[0].mxu0
        %v1028 = vadd.f32 %v816, %v1027
        %v1029 = vpop.f32.mrb[0].mxu0
        %1030 = vmatprep.mubr.f32.mxu0 0.0
        %1031 = vmatmul.mubr.f32.gmra.mrb[0].mxu0 %v908
        %v1032 = vpop.f32.mrb[0].mxu0
        %v1033 = vadd.f32 %v821, %v1032
        %v1034 = vpop.f32.mrb[0].mxu0
        %1035 = vmatprep.mubr.f32.mxu0 0.0
        %1036 = vmatmul.mubr.f32.gmra.mrb[0].mxu0 %v911
        %v1037 = vpop.f32.mrb[0].mxu0
        %v1038 = vadd.f32 %v826, %v1037
        %v1039 = vpop.f32.mrb[0].mxu0
        %1040 = vmatprep.mubr.f32.mxu0 0.0
        %1041 = vmatmul.mubr.f32.gmra.mrb[0].mxu0 %v914
        %v1042 = vpop.f32.mrb[0].mxu0
        %v1043 = vadd.f32 %v831, %v1042
        %v1044 = vpop.f32.mrb[0].mxu0
        %1045 = vmatprep.mubr.f32.mxu0 0.0
        %1046 = vmatmul.mubr.f32.gmra.mrb[0].mxu0 %v917
        %v1047 = vpop.f32.mrb[0].mxu0
        %v1048 = vadd.f32 %v836, %v1047
        %v1049 = vpop.f32.mrb[0].mxu0
        %1050 = vmatprep.mubr.f32.mxu0 0.0
        %1051 = vmatmul.mubr.f32.gmra.mrb[0].mxu0 %v920
        %v1052 = vpop.f32.mrb[0].mxu0
        %v1053 = vadd.f32 %v841, %v1052
        %v1054 = vpop.f32.mrb[0].mxu0
        %1055 = vmatprep.mubr.f32.mxu0 0.0
        %1056 = vmatmul.mubr.f32.gmra.mrb[0].mxu0 %v923
        %v1057 = vpop.f32.mrb[0].mxu0
        %v1058 = vadd.f32 %v846, %v1057
        %v1059 = vpop.f32.mrb[0].mxu0
        %1060 = vmatprep.mubr.f32.mxu0 0.0
        %1061 = vmatmul.mubr.f32.gmra.mrb[0].mxu0 %v926
        %v1062 = vpop.f32.mrb[0].mxu0
        %v1063 = vadd.f32 %v851, %v1062
        %v1064 = vpop.f32.mrb[0].mxu0
        %1065 = vmatprep.mubr.f32.mxu0 0.0
        %1066 = vmatmul.mubr.f32.gmra.mrb[0].mxu0 %v929
        %v1067 = vpop.f32.mrb[0].mxu0
        %v1068 = vadd.f32 %v856, %v1067
        %v1069 = vpop.f32.mrb[0].mxu0
        %1070 = vmatprep.mubr.f32.mxu0 0.0
        %1071 = vmatmul.mubr.f32.gmra.mrb[0].mxu0 %v932
        %v1072 = vpop.f32.mrb[0].mxu0
        %v1073 = vadd.f32 %v861, %v1072
        %v1074 = vpop.f32.mrb[0].mxu0
        %1075 = vmatprep.mubr.f32.mxu0 0.0
        %1076 = vmatmul.mubr.f32.gmra.mrb[0].mxu0 %v935
        %v1077 = vpop.f32.mrb[0].mxu0
        %v1078 = vadd.f32 %v866, %v1077
        %v1079 = vpop.f32.mrb[0].mxu0
        %1080 = vmatprep.mubr.f32.mxu0 0.0
        %1081 = vmatmul.mubr.f32.gmra.mrb[0].mxu0 %v938
        %v1082 = vpop.f32.mrb[0].mxu0
        %v1083 = vadd.f32 %v871, %v1082
        %v1084 = vpop.f32.mrb[0].mxu0
        %1085 = vmatprep.mubr.f32.mxu0 0.0
        %1086 = vmatmul.mubr.f32.gmra.mrb[0].mxu0 %v941
        %v1087 = vpop.f32.mrb[0].mxu0
        %v1088 = vadd.f32 %v876, %v1087
        %v1089 = vpop.f32.mrb[0].mxu0
        %1090 = vmatprep.mubr.f32.mxu0 0.0
        %1091 = vmatmul.mubr.f32.gmra.mrb[0].mxu0 %v944
        %v1092 = vpop.f32.mrb[0].mxu0
        %v1093 = vadd.f32 %v881, %v1092
        %v1094 = vpop.f32.mrb[0].mxu0
        %1095 = vmatprep.mubr.f32.mxu0 0.0
        %1096 = vmatmul.mubr.f32.gmra.mrb[0].mxu0 %v947
        %v1097 = vpop.f32.mrb[0].mxu0
        %v1098 = vadd.f32 %v886, %v1097
        %v1099 = vpop.f32.mrb[0].mxu0
        %1100 = vmatprep.mubr.f32.mxu0 0.0
        %1101 = vmatmul.mubr.f32.gmra.mrb[0].mxu0 %v950
        %v1102 = vpop.f32.mrb[0].mxu0
        %v1103 = vadd.f32 %v891, %v1102
        %v1104 = vpop.f32.mrb[0].mxu0
        %1105 = vmatprep.mubr.f32.mxu0 0.0
        %1106 = vmatmul.mubr.f32.gmra.mrb[0].mxu0 %v953
        %v1107 = vpop.f32.mrb[0].mxu0
        %v1108 = vadd.f32 %v896, %v1107
        %v1109 = vpop.f32.mrb[0].mxu0
        %1110 = vmatprep.mubr.f32.mxu0 0.0
        %1111 = vmatmul.mubr.f32.gmra.mrb[0].mxu0 %v956
        %v1112 = vpop.f32.mrb[0].mxu0
        %v1113 = vadd.f32 %v901, %v1112
        %v1114 = vpop.f32.mrb[0].mxu0
        %1115 = vdwg.mxu0
        %s1116 = scalar_lea.vmem [#allocation4], 576
        %v1117 = vld [vmem:[%s1116] sm:$0xff]
        %v1118 = vld [vmem:[%s1116 + $0x8] sm:$0xff]
        %v1119 = vld [vmem:[%s1116 + $0x10] sm:$0xff]
        %v1120 = vld [vmem:[%s1116 + $0x18] sm:$0xff]
        %v1121 = vld [vmem:[%s1116 + $0x20] sm:$0xff]
        %v1122 = vld [vmem:[%s1116 + $0x28] sm:$0xff]
        %v1123 = vld [vmem:[%s1116 + $0x30] sm:$0xff]
        %v1124 = vld [vmem:[%s1116 + $0x38] sm:$0xff]
        %v1125 = vld [vmem:[%s1116 + $0x40] sm:$0xff]
        %v1126 = vld [vmem:[%s1116 + $0x48] sm:$0xff]
        %v1127 = vld [vmem:[%s1116 + $0x50] sm:$0xff]
        %v1128 = vld [vmem:[%s1116 + $0x58] sm:$0xff]
        %v1129 = vld [vmem:[%s1116 + $0x60] sm:$0xff]
        %v1130 = vld [vmem:[%s1116 + $0x68] sm:$0xff]
        %v1131 = vld [vmem:[%s1116 + $0x70] sm:$0xff]
        %v1132 = vld [vmem:[%s1116 + $0x78] sm:$0xff]
        %v1133 = vld [vmem:[%s1116 + $0x80] sm:$0xff]
        %v1134 = vld [vmem:[%s1116 + $0x88] sm:$0xff]
        %v1135 = vld [vmem:[%s1116 + $0x90] sm:$0xff]
        %v1136 = vld [vmem:[%s1116 + $0x98] sm:$0xff]
        %v1137 = vld [vmem:[%s1116 + $0xa0] sm:$0xff]
        %v1138 = vld [vmem:[%s1116 + $0xa8] sm:$0xff]
        %v1139 = vld [vmem:[%s1116 + $0xb0] sm:$0xff]
        %v1140 = vld [vmem:[%s1116 + $0xb8] sm:$0xff]
        %v1141 = vld [vmem:[%s1116 + $0xc0] sm:$0xff]
        %v1142 = vld [vmem:[%s1116 + $0xc8] sm:$0xff]
        %v1143 = vld [vmem:[%s1116 + $0xd0] sm:$0xff]
        %v1144 = vld [vmem:[%s1116 + $0xd8] sm:$0xff]
        %v1145 = vld [vmem:[%s1116 + $0xe0] sm:$0xff]
        %v1146 = vld [vmem:[%s1116 + $0xe8] sm:$0xff]
        %v1147 = vld [vmem:[%s1116 + $0xf0] sm:$0xff]
        %v1148 = vld [vmem:[%s1116 + $0xf8] sm:$0xff]
        %v1149 = vld [vmem:[%s1116 + $0x100] sm:$0xff]
        %v1150 = vld [vmem:[%s1116 + $0x108] sm:$0xff]
        %v1151 = vld [vmem:[%s1116 + $0x110] sm:$0xff]
        %v1152 = vld [vmem:[%s1116 + $0x118] sm:$0xff]
        %1153 = vmatprep.subr.mxu0 0.0
        %1154 = vmatpush1.msra.mxu0 %v272
        %1155 = vmatprep.subr.mxu0 0.0
        %1156 = vmatpush1.msra.mxu0 %v273
        %1157 = vmatprep.subr.mxu0 0.0
        %1158 = vmatpush1.msra.mxu0 %v274
        %1159 = vmatprep.subr.mxu0 0.0
        %1160 = vmatpush1.msra.mxu0 %v275
        %1161 = vmatprep.subr.mxu0 0.0
        %1162 = vmatpush1.msra.mxu0 %v276
        %1163 = vmatprep.subr.mxu0 0.0
        %1164 = vmatpush1.msra.mxu0 %v277
        %1165 = vmatprep.subr.mxu0 0.0
        %1166 = vmatpush1.msra.mxu0 %v278
        %1167 = vmatprep.subr.mxu0 0.0
        %1168 = vmatpush1.msra.mxu0 %v279
        %1169 = vmatprep.subr.mxu0 0.0
        %1170 = vmatpush1.msra.mxu0 %v280
        %1171 = vmatprep.subr.mxu0 0.0
        %1172 = vmatpush1.msra.mxu0 %v281
        %1173 = vmatprep.subr.mxu0 0.0
        %1174 = vmatpush1.msra.mxu0 %v282
        %1175 = vmatprep.subr.mxu0 0.0
        %1176 = vmatpush1.msra.mxu0 %v283
        %1177 = vmatprep.subr.mxu0 0.0
        %1178 = vmatpush1.msra.mxu0 %v284
        %1179 = vmatprep.subr.mxu0 0.0
        %1180 = vmatpush1.msra.mxu0 %v285
        %1181 = vmatprep.subr.mxu0 0.0
        %1182 = vmatpush1.msra.mxu0 %v286
        %1183 = vmatprep.subr.mxu0 0.0
        %1184 = vmatpush1.msra.mxu0 %v287
        %1185 = vmatprep.subr.mxu0 0.0
        %1186 = vmatpush1.msra.mxu0 %v288
        %1187 = vmatprep.subr.mxu0 0.0
        %1188 = vmatpush1.msra.mxu0 %v289
        %1189 = vmatprep.subr.mxu0 0.0
        %1190 = vmatpush1.msra.mxu0 %v290
        %1191 = vmatprep.subr.mxu0 0.0
        %1192 = vmatpush1.msra.mxu0 %v291
        %1193 = vmatprep.subr.mxu0 0.0
        %1194 = vmatpush1.msra.mxu0 %v292
        %1195 = vmatprep.subr.mxu0 0.0
        %1196 = vmatpush1.msra.mxu0 %v293
        %1197 = vmatprep.subr.mxu0 0.0
        %1198 = vmatpush1.msra.mxu0 %v294
        %1199 = vmatprep.subr.mxu0 0.0
        %1200 = vmatpush1.msra.mxu0 %v295
        %1201 = vmatprep.subr.mxu0 0.0
        %1202 = vmatpush1.msra.mxu0 %v296
        %1203 = vmatprep.subr.mxu0 0.0
        %1204 = vmatpush1.msra.mxu0 %v297
        %1205 = vmatprep.subr.mxu0 0.0
        %1206 = vmatpush1.msra.mxu0 %v298
        %1207 = vmatprep.subr.mxu0 0.0
        %1208 = vmatpush1.msra.mxu0 %v299
        %1209 = vmatprep.subr.mxu0 0.0
        %1210 = vmatpush1.msra.mxu0 %v300
        %1211 = vmatprep.subr.mxu0 0.0
        %1212 = vmatpush1.msra.mxu0 %v301
        %1213 = vmatprep.subr.mxu0 0.0
        %1214 = vmatpush1.msra.mxu0 %v302
        %1215 = vmatprep.subr.mxu0 0.0
        %1216 = vmatpush1.msra.mxu0 %v303
        %1217 = vmatprep.mubr.f32.mxu0 %v1118
        %1218 = vmatmul.mubr.f32.gmra.mrb[0].mxu0 %v1117
        %v1219 = vpop.f32.mrb[0].mxu0
        %v1220 = vadd.f32 0.0, %v1219
        %v1221 = vpop.f32.mrb[0].mxu0
        %1222 = vmatprep.mubr.f32.mxu0 %v1120
        %1223 = vmatmul.mubr.f32.gmra.mrb[0].mxu0 %v1119
        %v1224 = vpop.f32.mrb[0].mxu0
        %v1225 = vadd.f32 0.0, %v1224
        %v1226 = vpop.f32.mrb[0].mxu0
        %1227 = vmatprep.mubr.f32.mxu0 %v1122
        %1228 = vmatmul.mubr.f32.gmra.mrb[0].mxu0 %v1121
        %v1229 = vpop.f32.mrb[0].mxu0
        %v1230 = vadd.f32 0.0, %v1229
        %v1231 = vpop.f32.mrb[0].mxu0
        %1232 = vmatprep.mubr.f32.mxu0 %v1124
        %1233 = vmatmul.mubr.f32.gmra.mrb[0].mxu0 %v1123
        %v1234 = vpop.f32.mrb[0].mxu0
        %v1235 = vadd.f32 0.0, %v1234
        %v1236 = vpop.f32.mrb[0].mxu0
        %1237 = vmatprep.mubr.f32.mxu0 %v1126
        %1238 = vmatmul.mubr.f32.gmra.mrb[0].mxu0 %v1125
        %v1239 = vpop.f32.mrb[0].mxu0
        %v1240 = vadd.f32 0.0, %v1239
        %v1241 = vpop.f32.mrb[0].mxu0
        %1242 = vmatprep.mubr.f32.mxu0 %v1128
        %1243 = vmatmul.mubr.f32.gmra.mrb[0].mxu0 %v1127
        %v1244 = vpop.f32.mrb[0].mxu0
        %v1245 = vadd.f32 0.0, %v1244
        %v1246 = vpop.f32.mrb[0].mxu0
        %1247 = vmatprep.mubr.f32.mxu0 %v1130
        %1248 = vmatmul.mubr.f32.gmra.mrb[0].mxu0 %v1129
        %v1249 = vpop.f32.mrb[0].mxu0
        %v1250 = vadd.f32 0.0, %v1249
        %v1251 = vpop.f32.mrb[0].mxu0
        %1252 = vmatprep.mubr.f32.mxu0 %v1132
        %1253 = vmatmul.mubr.f32.gmra.mrb[0].mxu0 %v1131
        %v1254 = vpop.f32.mrb[0].mxu0
        %v1255 = vadd.f32 0.0, %v1254
        %v1256 = vpop.f32.mrb[0].mxu0
        %1257 = vmatprep.mubr.f32.mxu0 %v1134
        %1258 = vmatmul.mubr.f32.gmra.mrb[0].mxu0 %v1133
        %v1259 = vpop.f32.mrb[0].mxu0
        %v1260 = vadd.f32 0.0, %v1259
        %v1261 = vpop.f32.mrb[0].mxu0
        %1262 = vmatprep.mubr.f32.mxu0 %v1136
        %1263 = vmatmul.mubr.f32.gmra.mrb[0].mxu0 %v1135
        %v1264 = vpop.f32.mrb[0].mxu0
        %v1265 = vadd.f32 0.0, %v1264
        %v1266 = vpop.f32.mrb[0].mxu0
        %1267 = vmatprep.mubr.f32.mxu0 %v1138
        %1268 = vmatmul.mubr.f32.gmra.mrb[0].mxu0 %v1137
        %v1269 = vpop.f32.mrb[0].mxu0
        %v1270 = vadd.f32 0.0, %v1269
        %v1271 = vpop.f32.mrb[0].mxu0
        %1272 = vmatprep.mubr.f32.mxu0 %v1140
        %1273 = vmatmul.mubr.f32.gmra.mrb[0].mxu0 %v1139
        %v1274 = vpop.f32.mrb[0].mxu0
        %v1275 = vadd.f32 0.0, %v1274
        %v1276 = vpop.f32.mrb[0].mxu0
        %1277 = vmatprep.mubr.f32.mxu0 %v1142
        %1278 = vmatmul.mubr.f32.gmra.mrb[0].mxu0 %v1141
        %v1279 = vpop.f32.mrb[0].mxu0
        %v1280 = vadd.f32 0.0, %v1279
        %v1281 = vpop.f32.mrb[0].mxu0
        %1282 = vmatprep.mubr.f32.mxu0 %v1144
        %1283 = vmatmul.mubr.f32.gmra.mrb[0].mxu0 %v1143
        %v1284 = vpop.f32.mrb[0].mxu0
        %v1285 = vadd.f32 0.0, %v1284
        %v1286 = vpop.f32.mrb[0].mxu0
        %1287 = vmatprep.mubr.f32.mxu0 %v1146
        %1288 = vmatmul.mubr.f32.gmra.mrb[0].mxu0 %v1145
        %v1289 = vpop.f32.mrb[0].mxu0
        %v1290 = vadd.f32 0.0, %v1289
        %v1291 = vpop.f32.mrb[0].mxu0
        %1292 = vmatprep.mubr.f32.mxu0 %v1148
        %1293 = vmatmul.mubr.f32.gmra.mrb[0].mxu0 %v1147
        %v1294 = vpop.f32.mrb[0].mxu0
        %v1295 = vadd.f32 0.0, %v1294
        %v1296 = vpop.f32.mrb[0].mxu0
        %1297 = vmatprep.mubr.f32.mxu0 %v1150
        %1298 = vmatmul.mubr.f32.gmra.mrb[0].mxu0 %v1149
        %v1299 = vpop.f32.mrb[0].mxu0
        %v1300 = vadd.f32 0.0, %v1299
        %v1301 = vpop.f32.mrb[0].mxu0
        %1302 = vmatprep.mubr.f32.mxu0 %v1152
        %1303 = vmatmul.mubr.f32.gmra.mrb[0].mxu0 %v1151
        %v1304 = vpop.f32.mrb[0].mxu0
        %v1305 = vadd.f32 0.0, %v1304
        %v1306 = vpop.f32.mrb[0].mxu0
        %1307 = vdwg.mxu0
        %s1308 = scalar_lea.vmem [#allocation7], 8
        %v1309 = vld [vmem:[%s1308] sm:$0xf]
        %v1311 = vsel %vm690, %v1220, 0
        %v1314 = vsel %vm690, %v1225, 0
        %v1317 = vsel %vm690, %v1230, 0
        %v1320 = vsel %vm690, %v1235, 0
        %v1323 = vsel %vm690, %v1240, 0
        %v1326 = vsel %vm690, %v1245, 0
        %v1329 = vsel %vm690, %v1250, 0
        %v1332 = vsel %vm690, %v1255, 0
        %v1335 = vsel %vm690, %v1260, 0
        %v1338 = vsel %vm690, %v1265, 0
        %v1341 = vsel %vm690, %v1270, 0
        %v1344 = vsel %vm690, %v1275, 0
        %v1347 = vsel %vm690, %v1280, 0
        %v1350 = vsel %vm690, %v1285, 0
        %v1353 = vsel %vm690, %v1290, 0
        %v1356 = vsel %vm690, %v1295, 0
        %v1359 = vsel %vm690, %v1300, 0
        %v1362 = vsel %vm690, %v1305, 0
        %v1365 = vsel %vm745, %v1309, 0
        %1367 = vmatprep.subr.mxu0 0.0
        %1368 = vmatpush1.msra.mxu0 %v1365
        %1369 = vmatprep.subr.mxu0 0.0
        %1370 = vmatpush1.msra.mxu0 0.0
        %1371 = vmatprep.subr.mxu0 0.0
        %1372 = vmatpush1.msra.mxu0 0.0
        %1373 = vmatprep.subr.mxu0 0.0
        %1374 = vmatpush1.msra.mxu0 0.0
        %1375 = vmatprep.subr.mxu0 0.0
        %1376 = vmatpush1.msra.mxu0 0.0
        %1377 = vmatprep.subr.mxu0 0.0
        %1378 = vmatpush1.msra.mxu0 0.0
        %1379 = vmatprep.subr.mxu0 0.0
        %1380 = vmatpush1.msra.mxu0 0.0
        %1381 = vmatprep.subr.mxu0 0.0
        %1382 = vmatpush1.msra.mxu0 0.0
        %1383 = vmatprep.subr.mxu0 0.0
        %1384 = vmatpush1.msra.mxu0 0.0
        %1385 = vmatprep.subr.mxu0 0.0
        %1386 = vmatpush1.msra.mxu0 0.0
        %1387 = vmatprep.subr.mxu0 0.0
        %1388 = vmatpush1.msra.mxu0 0.0
        %1389 = vmatprep.subr.mxu0 0.0
        %1390 = vmatpush1.msra.mxu0 0.0
        %1391 = vmatprep.subr.mxu0 0.0
        %1392 = vmatpush1.msra.mxu0 0.0
        %1393 = vmatprep.subr.mxu0 0.0
        %1394 = vmatpush1.msra.mxu0 0.0
        %1395 = vmatprep.subr.mxu0 0.0
        %1396 = vmatpush1.msra.mxu0 0.0
        %1397 = vmatprep.subr.mxu0 0.0
        %1398 = vmatpush1.msra.mxu0 0.0
        %1399 = vmatprep.subr.mxu0 0.0
        %1400 = vmatpush1.msra.mxu0 0.0
        %1401 = vmatprep.subr.mxu0 0.0
        %1402 = vmatpush1.msra.mxu0 0.0
        %1403 = vmatprep.subr.mxu0 0.0
        %1404 = vmatpush1.msra.mxu0 0.0
        %1405 = vmatprep.subr.mxu0 0.0
        %1406 = vmatpush1.msra.mxu0 0.0
        %1407 = vmatprep.subr.mxu0 0.0
        %1408 = vmatpush1.msra.mxu0 0.0
        %1409 = vmatprep.subr.mxu0 0.0
        %1410 = vmatpush1.msra.mxu0 0.0
        %1411 = vmatprep.subr.mxu0 0.0
        %1412 = vmatpush1.msra.mxu0 0.0
        %1413 = vmatprep.subr.mxu0 0.0
        %1414 = vmatpush1.msra.mxu0 0.0
        %1415 = vmatprep.subr.mxu0 0.0
        %1416 = vmatpush1.msra.mxu0 0.0
        %1417 = vmatprep.subr.mxu0 0.0
        %1418 = vmatpush1.msra.mxu0 0.0
        %1419 = vmatprep.subr.mxu0 0.0
        %1420 = vmatpush1.msra.mxu0 0.0
        %1421 = vmatprep.subr.mxu0 0.0
        %1422 = vmatpush1.msra.mxu0 0.0
        %1423 = vmatprep.subr.mxu0 0.0
        %1424 = vmatpush1.msra.mxu0 0.0
        %1425 = vmatprep.subr.mxu0 0.0
        %1426 = vmatpush1.msra.mxu0 0.0
        %1427 = vmatprep.subr.mxu0 0.0
        %1428 = vmatpush1.msra.mxu0 0.0
        %1429 = vmatprep.subr.mxu0 0.0
        %1430 = vmatpush1.msra.mxu0 0.0
        %1431 = vmatprep.mubr.f32.mxu0 0.0
        %1432 = vmatmul.mubr.f32.gmra.mrb[0].mxu0 %v1311
        %v1433 = vpop.f32.mrb[0].mxu0
        %v1434 = vadd.f32 0.0, %v1433
        %v1435 = vpop.f32.mrb[0].mxu0
        %1436 = vmatprep.mubr.f32.mxu0 0.0
        %1437 = vmatmul.mubr.f32.gmra.mrb[0].mxu0 %v1314
        %v1438 = vpop.f32.mrb[0].mxu0
        %v1439 = vadd.f32 0.0, %v1438
        %v1440 = vpop.f32.mrb[0].mxu0
        %1441 = vmatprep.mubr.f32.mxu0 0.0
        %1442 = vmatmul.mubr.f32.gmra.mrb[0].mxu0 %v1317
        %v1443 = vpop.f32.mrb[0].mxu0
        %v1444 = vadd.f32 0.0, %v1443
        %v1445 = vpop.f32.mrb[0].mxu0
        %1446 = vmatprep.mubr.f32.mxu0 0.0
        %1447 = vmatmul.mubr.f32.gmra.mrb[0].mxu0 %v1320
        %v1448 = vpop.f32.mrb[0].mxu0
        %v1449 = vadd.f32 0.0, %v1448
        %v1450 = vpop.f32.mrb[0].mxu0
        %1451 = vmatprep.mubr.f32.mxu0 0.0
        %1452 = vmatmul.mubr.f32.gmra.mrb[0].mxu0 %v1323
        %v1453 = vpop.f32.mrb[0].mxu0
        %v1454 = vadd.f32 0.0, %v1453
        %v1455 = vpop.f32.mrb[0].mxu0
        %1456 = vmatprep.mubr.f32.mxu0 0.0
        %1457 = vmatmul.mubr.f32.gmra.mrb[0].mxu0 %v1326
        %v1458 = vpop.f32.mrb[0].mxu0
        %v1459 = vadd.f32 0.0, %v1458
        %v1460 = vpop.f32.mrb[0].mxu0
        %1461 = vmatprep.mubr.f32.mxu0 0.0
        %1462 = vmatmul.mubr.f32.gmra.mrb[0].mxu0 %v1329
        %v1463 = vpop.f32.mrb[0].mxu0
        %v1464 = vadd.f32 0.0, %v1463
        %v1465 = vpop.f32.mrb[0].mxu0
        %1466 = vmatprep.mubr.f32.mxu0 0.0
        %1467 = vmatmul.mubr.f32.gmra.mrb[0].mxu0 %v1332
        %v1468 = vpop.f32.mrb[0].mxu0
        %v1469 = vadd.f32 0.0, %v1468
        %v1470 = vpop.f32.mrb[0].mxu0
        %1471 = vmatprep.mubr.f32.mxu0 0.0
        %1472 = vmatmul.mubr.f32.gmra.mrb[0].mxu0 %v1335
        %v1473 = vpop.f32.mrb[0].mxu0
        %v1474 = vadd.f32 0.0, %v1473
        %v1475 = vpop.f32.mrb[0].mxu0
        %1476 = vmatprep.mubr.f32.mxu0 0.0
        %1477 = vmatmul.mubr.f32.gmra.mrb[0].mxu0 %v1338
        %v1478 = vpop.f32.mrb[0].mxu0
        %v1479 = vadd.f32 0.0, %v1478
        %v1480 = vpop.f32.mrb[0].mxu0
        %1481 = vmatprep.mubr.f32.mxu0 0.0
        %1482 = vmatmul.mubr.f32.gmra.mrb[0].mxu0 %v1341
        %v1483 = vpop.f32.mrb[0].mxu0
        %v1484 = vadd.f32 0.0, %v1483
        %v1485 = vpop.f32.mrb[0].mxu0
        %1486 = vmatprep.mubr.f32.mxu0 0.0
        %1487 = vmatmul.mubr.f32.gmra.mrb[0].mxu0 %v1344
        %v1488 = vpop.f32.mrb[0].mxu0
        %v1489 = vadd.f32 0.0, %v1488
        %v1490 = vpop.f32.mrb[0].mxu0
        %1491 = vmatprep.mubr.f32.mxu0 0.0
        %1492 = vmatmul.mubr.f32.gmra.mrb[0].mxu0 %v1347
        %v1493 = vpop.f32.mrb[0].mxu0
        %v1494 = vadd.f32 0.0, %v1493
        %v1495 = vpop.f32.mrb[0].mxu0
        %1496 = vmatprep.mubr.f32.mxu0 0.0
        %1497 = vmatmul.mubr.f32.gmra.mrb[0].mxu0 %v1350
        %v1498 = vpop.f32.mrb[0].mxu0
        %v1499 = vadd.f32 0.0, %v1498
        %v1500 = vpop.f32.mrb[0].mxu0
        %1501 = vmatprep.mubr.f32.mxu0 0.0
        %1502 = vmatmul.mubr.f32.gmra.mrb[0].mxu0 %v1353
        %v1503 = vpop.f32.mrb[0].mxu0
        %v1504 = vadd.f32 0.0, %v1503
        %v1505 = vpop.f32.mrb[0].mxu0
        %1506 = vmatprep.mubr.f32.mxu0 0.0
        %1507 = vmatmul.mubr.f32.gmra.mrb[0].mxu0 %v1356
        %v1508 = vpop.f32.mrb[0].mxu0
        %v1509 = vadd.f32 0.0, %v1508
        %v1510 = vpop.f32.mrb[0].mxu0
        %1511 = vmatprep.mubr.f32.mxu0 0.0
        %1512 = vmatmul.mubr.f32.gmra.mrb[0].mxu0 %v1359
        %v1513 = vpop.f32.mrb[0].mxu0
        %v1514 = vadd.f32 0.0, %v1513
        %v1515 = vpop.f32.mrb[0].mxu0
        %1516 = vmatprep.mubr.f32.mxu0 0.0
        %1517 = vmatmul.mubr.f32.gmra.mrb[0].mxu0 %v1362
        %v1518 = vpop.f32.mrb[0].mxu0
        %v1519 = vadd.f32 0.0, %v1518
        %v1520 = vpop.f32.mrb[0].mxu0
        %1521 = vdwg.mxu0
        %v1522 = vadd.f32 %v1028, %v1434
        %v1523 = vadd.f32 %v1033, %v1439
        %v1524 = vadd.f32 %v1038, %v1444
        %v1525 = vadd.f32 %v1043, %v1449
        %v1526 = vadd.f32 %v1048, %v1454
        %v1527 = vadd.f32 %v1053, %v1459
        %v1528 = vadd.f32 %v1058, %v1464
        %v1529 = vadd.f32 %v1063, %v1469
        %v1530 = vadd.f32 %v1068, %v1474
        %v1531 = vadd.f32 %v1073, %v1479
        %v1532 = vadd.f32 %v1078, %v1484
        %v1533 = vadd.f32 %v1083, %v1489
        %v1534 = vadd.f32 %v1088, %v1494
        %v1535 = vadd.f32 %v1093, %v1499
        %v1536 = vadd.f32 %v1098, %v1504
        %v1537 = vadd.f32 %v1103, %v1509
        %v1538 = vadd.f32 %v1108, %v1514
        %v1539 = vadd.f32 %v1113, %v1519
        %s1540 = scalar_lea.vmem [#allocation4], 864
        %v1541 = vld [vmem:[%s1540] sm:$0xff]
        %v1542 = vld [vmem:[%s1540 + $0x8] sm:$0xff]
        %v1543 = vld [vmem:[%s1540 + $0x10] sm:$0xff]
        %v1544 = vld [vmem:[%s1540 + $0x18] sm:$0xff]
        %v1545 = vld [vmem:[%s1540 + $0x20] sm:$0xff]
        %v1546 = vld [vmem:[%s1540 + $0x28] sm:$0xff]
        %v1547 = vld [vmem:[%s1540 + $0x30] sm:$0xff]
        %v1548 = vld [vmem:[%s1540 + $0x38] sm:$0xff]
        %v1549 = vld [vmem:[%s1540 + $0x40] sm:$0xff]
        %v1550 = vld [vmem:[%s1540 + $0x48] sm:$0xff]
        %v1551 = vld [vmem:[%s1540 + $0x50] sm:$0xff]
        %v1552 = vld [vmem:[%s1540 + $0x58] sm:$0xff]
        %v1553 = vld [vmem:[%s1540 + $0x60] sm:$0xff]
        %v1554 = vld [vmem:[%s1540 + $0x68] sm:$0xff]
        %v1555 = vld [vmem:[%s1540 + $0x70] sm:$0xff]
        %v1556 = vld [vmem:[%s1540 + $0x78] sm:$0xff]
        %v1557 = vld [vmem:[%s1540 + $0x80] sm:$0xff]
        %v1558 = vld [vmem:[%s1540 + $0x88] sm:$0xff]
        %v1559 = vld [vmem:[%s1540 + $0x90] sm:$0xff]
        %v1560 = vld [vmem:[%s1540 + $0x98] sm:$0xff]
        %v1561 = vld [vmem:[%s1540 + $0xa0] sm:$0xff]
        %v1562 = vld [vmem:[%s1540 + $0xa8] sm:$0xff]
        %v1563 = vld [vmem:[%s1540 + $0xb0] sm:$0xff]
        %v1564 = vld [vmem:[%s1540 + $0xb8] sm:$0xff]
        %v1565 = vld [vmem:[%s1540 + $0xc0] sm:$0xff]
        %v1566 = vld [vmem:[%s1540 + $0xc8] sm:$0xff]
        %v1567 = vld [vmem:[%s1540 + $0xd0] sm:$0xff]
        %v1568 = vld [vmem:[%s1540 + $0xd8] sm:$0xff]
        %v1569 = vld [vmem:[%s1540 + $0xe0] sm:$0xff]
        %v1570 = vld [vmem:[%s1540 + $0xe8] sm:$0xff]
        %v1571 = vld [vmem:[%s1540 + $0xf0] sm:$0xff]
        %v1572 = vld [vmem:[%s1540 + $0xf8] sm:$0xff]
        %v1573 = vld [vmem:[%s1540 + $0x100] sm:$0xff]
        %v1574 = vld [vmem:[%s1540 + $0x108] sm:$0xff]
        %v1575 = vld [vmem:[%s1540 + $0x110] sm:$0xff]
        %v1576 = vld [vmem:[%s1540 + $0x118] sm:$0xff]
        %1577 = vmatprep.subr.mxu0 0.0
        %1578 = vmatpush1.msra.mxu0 %v272
        %1579 = vmatprep.subr.mxu0 0.0
        %1580 = vmatpush1.msra.mxu0 %v273
        %1581 = vmatprep.subr.mxu0 0.0
        %1582 = vmatpush1.msra.mxu0 %v274
        %1583 = vmatprep.subr.mxu0 0.0
        %1584 = vmatpush1.msra.mxu0 %v275
        %1585 = vmatprep.subr.mxu0 0.0
        %1586 = vmatpush1.msra.mxu0 %v276
        %1587 = vmatprep.subr.mxu0 0.0
        %1588 = vmatpush1.msra.mxu0 %v277
        %1589 = vmatprep.subr.mxu0 0.0
        %1590 = vmatpush1.msra.mxu0 %v278
        %1591 = vmatprep.subr.mxu0 0.0
        %1592 = vmatpush1.msra.mxu0 %v279
        %1593 = vmatprep.subr.mxu0 0.0
        %1594 = vmatpush1.msra.mxu0 %v280
        %1595 = vmatprep.subr.mxu0 0.0
        %1596 = vmatpush1.msra.mxu0 %v281
        %1597 = vmatprep.subr.mxu0 0.0
        %1598 = vmatpush1.msra.mxu0 %v282
        %1599 = vmatprep.subr.mxu0 0.0
        %1600 = vmatpush1.msra.mxu0 %v283
        %1601 = vmatprep.subr.mxu0 0.0
        %1602 = vmatpush1.msra.mxu0 %v284
        %1603 = vmatprep.subr.mxu0 0.0
        %1604 = vmatpush1.msra.mxu0 %v285
        %1605 = vmatprep.subr.mxu0 0.0
        %1606 = vmatpush1.msra.mxu0 %v286
        %1607 = vmatprep.subr.mxu0 0.0
        %1608 = vmatpush1.msra.mxu0 %v287
        %1609 = vmatprep.subr.mxu0 0.0
        %1610 = vmatpush1.msra.mxu0 %v288
        %1611 = vmatprep.subr.mxu0 0.0
        %1612 = vmatpush1.msra.mxu0 %v289
        %1613 = vmatprep.subr.mxu0 0.0
        %1614 = vmatpush1.msra.mxu0 %v290
        %1615 = vmatprep.subr.mxu0 0.0
        %1616 = vmatpush1.msra.mxu0 %v291
        %1617 = vmatprep.subr.mxu0 0.0
        %1618 = vmatpush1.msra.mxu0 %v292
        %1619 = vmatprep.subr.mxu0 0.0
        %1620 = vmatpush1.msra.mxu0 %v293
        %1621 = vmatprep.subr.mxu0 0.0
        %1622 = vmatpush1.msra.mxu0 %v294
        %1623 = vmatprep.subr.mxu0 0.0
        %1624 = vmatpush1.msra.mxu0 %v295
        %1625 = vmatprep.subr.mxu0 0.0
        %1626 = vmatpush1.msra.mxu0 %v296
        %1627 = vmatprep.subr.mxu0 0.0
        %1628 = vmatpush1.msra.mxu0 %v297
        %1629 = vmatprep.subr.mxu0 0.0
        %1630 = vmatpush1.msra.mxu0 %v298
        %1631 = vmatprep.subr.mxu0 0.0
        %1632 = vmatpush1.msra.mxu0 %v299
        %1633 = vmatprep.subr.mxu0 0.0
        %1634 = vmatpush1.msra.mxu0 %v300
        %1635 = vmatprep.subr.mxu0 0.0
        %1636 = vmatpush1.msra.mxu0 %v301
        %1637 = vmatprep.subr.mxu0 0.0
        %1638 = vmatpush1.msra.mxu0 %v302
        %1639 = vmatprep.subr.mxu0 0.0
        %1640 = vmatpush1.msra.mxu0 %v303
        %1641 = vmatprep.mubr.f32.mxu0 %v1542
        %1642 = vmatmul.mubr.f32.gmra.mrb[0].mxu0 %v1541
        %v1643 = vpop.f32.mrb[0].mxu0
        %v1644 = vadd.f32 0.0, %v1643
        %v1645 = vpop.f32.mrb[0].mxu0
        %1646 = vmatprep.mubr.f32.mxu0 %v1544
        %1647 = vmatmul.mubr.f32.gmra.mrb[0].mxu0 %v1543
        %v1648 = vpop.f32.mrb[0].mxu0
        %v1649 = vadd.f32 0.0, %v1648
        %v1650 = vpop.f32.mrb[0].mxu0
        %1651 = vmatprep.mubr.f32.mxu0 %v1546
        %1652 = vmatmul.mubr.f32.gmra.mrb[0].mxu0 %v1545
        %v1653 = vpop.f32.mrb[0].mxu0
        %v1654 = vadd.f32 0.0, %v1653
        %v1655 = vpop.f32.mrb[0].mxu0
        %1656 = vmatprep.mubr.f32.mxu0 %v1548
        %1657 = vmatmul.mubr.f32.gmra.mrb[0].mxu0 %v1547
        %v1658 = vpop.f32.mrb[0].mxu0
        %v1659 = vadd.f32 0.0, %v1658
        %v1660 = vpop.f32.mrb[0].mxu0
        %1661 = vmatprep.mubr.f32.mxu0 %v1550
        %1662 = vmatmul.mubr.f32.gmra.mrb[0].mxu0 %v1549
        %v1663 = vpop.f32.mrb[0].mxu0
        %v1664 = vadd.f32 0.0, %v1663
        %v1665 = vpop.f32.mrb[0].mxu0
        %1666 = vmatprep.mubr.f32.mxu0 %v1552
        %1667 = vmatmul.mubr.f32.gmra.mrb[0].mxu0 %v1551
        %v1668 = vpop.f32.mrb[0].mxu0
        %v1669 = vadd.f32 0.0, %v1668
        %v1670 = vpop.f32.mrb[0].mxu0
        %1671 = vmatprep.mubr.f32.mxu0 %v1554
        %1672 = vmatmul.mubr.f32.gmra.mrb[0].mxu0 %v1553
        %v1673 = vpop.f32.mrb[0].mxu0
        %v1674 = vadd.f32 0.0, %v1673
        %v1675 = vpop.f32.mrb[0].mxu0
        %1676 = vmatprep.mubr.f32.mxu0 %v1556
        %1677 = vmatmul.mubr.f32.gmra.mrb[0].mxu0 %v1555
        %v1678 = vpop.f32.mrb[0].mxu0
        %v1679 = vadd.f32 0.0, %v1678
        %v1680 = vpop.f32.mrb[0].mxu0
        %1681 = vmatprep.mubr.f32.mxu0 %v1558
        %1682 = vmatmul.mubr.f32.gmra.mrb[0].mxu0 %v1557
        %v1683 = vpop.f32.mrb[0].mxu0
        %v1684 = vadd.f32 0.0, %v1683
        %v1685 = vpop.f32.mrb[0].mxu0
        %1686 = vmatprep.mubr.f32.mxu0 %v1560
        %1687 = vmatmul.mubr.f32.gmra.mrb[0].mxu0 %v1559
        %v1688 = vpop.f32.mrb[0].mxu0
        %v1689 = vadd.f32 0.0, %v1688
        %v1690 = vpop.f32.mrb[0].mxu0
        %1691 = vmatprep.mubr.f32.mxu0 %v1562
        %1692 = vmatmul.mubr.f32.gmra.mrb[0].mxu0 %v1561
        %v1693 = vpop.f32.mrb[0].mxu0
        %v1694 = vadd.f32 0.0, %v1693
        %v1695 = vpop.f32.mrb[0].mxu0
        %1696 = vmatprep.mubr.f32.mxu0 %v1564
        %1697 = vmatmul.mubr.f32.gmra.mrb[0].mxu0 %v1563
        %v1698 = vpop.f32.mrb[0].mxu0
        %v1699 = vadd.f32 0.0, %v1698
        %v1700 = vpop.f32.mrb[0].mxu0
        %1701 = vmatprep.mubr.f32.mxu0 %v1566
        %1702 = vmatmul.mubr.f32.gmra.mrb[0].mxu0 %v1565
        %v1703 = vpop.f32.mrb[0].mxu0
        %v1704 = vadd.f32 0.0, %v1703
        %v1705 = vpop.f32.mrb[0].mxu0
        %1706 = vmatprep.mubr.f32.mxu0 %v1568
        %1707 = vmatmul.mubr.f32.gmra.mrb[0].mxu0 %v1567
        %v1708 = vpop.f32.mrb[0].mxu0
        %v1709 = vadd.f32 0.0, %v1708
        %v1710 = vpop.f32.mrb[0].mxu0
        %1711 = vmatprep.mubr.f32.mxu0 %v1570
        %1712 = vmatmul.mubr.f32.gmra.mrb[0].mxu0 %v1569
        %v1713 = vpop.f32.mrb[0].mxu0
        %v1714 = vadd.f32 0.0, %v1713
        %v1715 = vpop.f32.mrb[0].mxu0
        %1716 = vmatprep.mubr.f32.mxu0 %v1572
        %1717 = vmatmul.mubr.f32.gmra.mrb[0].mxu0 %v1571
        %v1718 = vpop.f32.mrb[0].mxu0
        %v1719 = vadd.f32 0.0, %v1718
        %v1720 = vpop.f32.mrb[0].mxu0
        %1721 = vmatprep.mubr.f32.mxu0 %v1574
        %1722 = vmatmul.mubr.f32.gmra.mrb[0].mxu0 %v1573
        %v1723 = vpop.f32.mrb[0].mxu0
        %v1724 = vadd.f32 0.0, %v1723
        %v1725 = vpop.f32.mrb[0].mxu0
        %1726 = vmatprep.mubr.f32.mxu0 %v1576
        %1727 = vmatmul.mubr.f32.gmra.mrb[0].mxu0 %v1575
        %v1728 = vpop.f32.mrb[0].mxu0
        %v1729 = vadd.f32 0.0, %v1728
        %v1730 = vpop.f32.mrb[0].mxu0
        %1731 = vdwg.mxu0
        %s1732 = scalar_lea.vmem [#allocation7], 12
        %v1733 = vld [vmem:[%s1732] sm:$0xf]
        %v1735 = vsel %vm690, %v1644, 0
        %v1738 = vsel %vm690, %v1649, 0
        %v1741 = vsel %vm690, %v1654, 0
        %v1744 = vsel %vm690, %v1659, 0
        %v1747 = vsel %vm690, %v1664, 0
        %v1750 = vsel %vm690, %v1669, 0
        %v1753 = vsel %vm690, %v1674, 0
        %v1756 = vsel %vm690, %v1679, 0
        %v1759 = vsel %vm690, %v1684, 0
        %v1762 = vsel %vm690, %v1689, 0
        %v1765 = vsel %vm690, %v1694, 0
        %v1768 = vsel %vm690, %v1699, 0
        %v1771 = vsel %vm690, %v1704, 0
        %v1774 = vsel %vm690, %v1709, 0
        %v1777 = vsel %vm690, %v1714, 0
        %v1780 = vsel %vm690, %v1719, 0
        %v1783 = vsel %vm690, %v1724, 0
        %v1786 = vsel %vm690, %v1729, 0
        %v1789 = vsel %vm745, %v1733, 0
        %1791 = vmatprep.subr.mxu0 0.0
        %1792 = vmatpush1.msra.mxu0 %v1789
        %1793 = vmatprep.subr.mxu0 0.0
        %1794 = vmatpush1.msra.mxu0 0.0
        %1795 = vmatprep.subr.mxu0 0.0
        %1796 = vmatpush1.msra.mxu0 0.0
        %1797 = vmatprep.subr.mxu0 0.0
        %1798 = vmatpush1.msra.mxu0 0.0
        %1799 = vmatprep.subr.mxu0 0.0
        %1800 = vmatpush1.msra.mxu0 0.0
        %1801 = vmatprep.subr.mxu0 0.0
        %1802 = vmatpush1.msra.mxu0 0.0
        %1803 = vmatprep.subr.mxu0 0.0
        %1804 = vmatpush1.msra.mxu0 0.0
        %1805 = vmatprep.subr.mxu0 0.0
        %1806 = vmatpush1.msra.mxu0 0.0
        %1807 = vmatprep.subr.mxu0 0.0
        %1808 = vmatpush1.msra.mxu0 0.0
        %1809 = vmatprep.subr.mxu0 0.0
        %1810 = vmatpush1.msra.mxu0 0.0
        %1811 = vmatprep.subr.mxu0 0.0
        %1812 = vmatpush1.msra.mxu0 0.0
        %1813 = vmatprep.subr.mxu0 0.0
        %1814 = vmatpush1.msra.mxu0 0.0
        %1815 = vmatprep.subr.mxu0 0.0
        %1816 = vmatpush1.msra.mxu0 0.0
        %1817 = vmatprep.subr.mxu0 0.0
        %1818 = vmatpush1.msra.mxu0 0.0
        %1819 = vmatprep.subr.mxu0 0.0
        %1820 = vmatpush1.msra.mxu0 0.0
        %1821 = vmatprep.subr.mxu0 0.0
        %1822 = vmatpush1.msra.mxu0 0.0
        %1823 = vmatprep.subr.mxu0 0.0
        %1824 = vmatpush1.msra.mxu0 0.0
        %1825 = vmatprep.subr.mxu0 0.0
        %1826 = vmatpush1.msra.mxu0 0.0
        %1827 = vmatprep.subr.mxu0 0.0
        %1828 = vmatpush1.msra.mxu0 0.0
        %1829 = vmatprep.subr.mxu0 0.0
        %1830 = vmatpush1.msra.mxu0 0.0
        %1831 = vmatprep.subr.mxu0 0.0
        %1832 = vmatpush1.msra.mxu0 0.0
        %1833 = vmatprep.subr.mxu0 0.0
        %1834 = vmatpush1.msra.mxu0 0.0
        %1835 = vmatprep.subr.mxu0 0.0
        %1836 = vmatpush1.msra.mxu0 0.0
        %1837 = vmatprep.subr.mxu0 0.0
        %1838 = vmatpush1.msra.mxu0 0.0
        %1839 = vmatprep.subr.mxu0 0.0
        %1840 = vmatpush1.msra.mxu0 0.0
        %1841 = vmatprep.subr.mxu0 0.0
        %1842 = vmatpush1.msra.mxu0 0.0
        %1843 = vmatprep.subr.mxu0 0.0
        %1844 = vmatpush1.msra.mxu0 0.0
        %1845 = vmatprep.subr.mxu0 0.0
        %1846 = vmatpush1.msra.mxu0 0.0
        %1847 = vmatprep.subr.mxu0 0.0
        %1848 = vmatpush1.msra.mxu0 0.0
        %1849 = vmatprep.subr.mxu0 0.0
        %1850 = vmatpush1.msra.mxu0 0.0
        %1851 = vmatprep.subr.mxu0 0.0
        %1852 = vmatpush1.msra.mxu0 0.0
        %1853 = vmatprep.subr.mxu0 0.0
        %1854 = vmatpush1.msra.mxu0 0.0
        %1855 = vmatprep.mubr.f32.mxu0 0.0
        %1856 = vmatmul.mubr.f32.gmra.mrb[0].mxu0 %v1735
        %v1857 = vpop.f32.mrb[0].mxu0
        %v1858 = vadd.f32 0.0, %v1857
        %v1859 = vpop.f32.mrb[0].mxu0
        %1860 = vmatprep.mubr.f32.mxu0 0.0
        %1861 = vmatmul.mubr.f32.gmra.mrb[0].mxu0 %v1738
        %v1862 = vpop.f32.mrb[0].mxu0
        %v1863 = vadd.f32 0.0, %v1862
        %v1864 = vpop.f32.mrb[0].mxu0
        %1865 = vmatprep.mubr.f32.mxu0 0.0
        %1866 = vmatmul.mubr.f32.gmra.mrb[0].mxu0 %v1741
        %v1867 = vpop.f32.mrb[0].mxu0
        %v1868 = vadd.f32 0.0, %v1867
        %v1869 = vpop.f32.mrb[0].mxu0
        %1870 = vmatprep.mubr.f32.mxu0 0.0
        %1871 = vmatmul.mubr.f32.gmra.mrb[0].mxu0 %v1744
        %v1872 = vpop.f32.mrb[0].mxu0
        %v1873 = vadd.f32 0.0, %v1872
        %v1874 = vpop.f32.mrb[0].mxu0
        %1875 = vmatprep.mubr.f32.mxu0 0.0
        %1876 = vmatmul.mubr.f32.gmra.mrb[0].mxu0 %v1747
        %v1877 = vpop.f32.mrb[0].mxu0
        %v1878 = vadd.f32 0.0, %v1877
        %v1879 = vpop.f32.mrb[0].mxu0
        %1880 = vmatprep.mubr.f32.mxu0 0.0
        %1881 = vmatmul.mubr.f32.gmra.mrb[0].mxu0 %v1750
        %v1882 = vpop.f32.mrb[0].mxu0
        %v1883 = vadd.f32 0.0, %v1882
        %v1884 = vpop.f32.mrb[0].mxu0
        %1885 = vmatprep.mubr.f32.mxu0 0.0
        %1886 = vmatmul.mubr.f32.gmra.mrb[0].mxu0 %v1753
        %v1887 = vpop.f32.mrb[0].mxu0
        %v1888 = vadd.f32 0.0, %v1887
        %v1889 = vpop.f32.mrb[0].mxu0
        %1890 = vmatprep.mubr.f32.mxu0 0.0
        %1891 = vmatmul.mubr.f32.gmra.mrb[0].mxu0 %v1756
        %v1892 = vpop.f32.mrb[0].mxu0
        %v1893 = vadd.f32 0.0, %v1892
        %v1894 = vpop.f32.mrb[0].mxu0
        %1895 = vmatprep.mubr.f32.mxu0 0.0
        %1896 = vmatmul.mubr.f32.gmra.mrb[0].mxu0 %v1759
        %v1897 = vpop.f32.mrb[0].mxu0
        %v1898 = vadd.f32 0.0, %v1897
        %v1899 = vpop.f32.mrb[0].mxu0
        %1900 = vmatprep.mubr.f32.mxu0 0.0
        %1901 = vmatmul.mubr.f32.gmra.mrb[0].mxu0 %v1762
        %v1902 = vpop.f32.mrb[0].mxu0
        %v1903 = vadd.f32 0.0, %v1902
        %v1904 = vpop.f32.mrb[0].mxu0
        %1905 = vmatprep.mubr.f32.mxu0 0.0
        %1906 = vmatmul.mubr.f32.gmra.mrb[0].mxu0 %v1765
        %v1907 = vpop.f32.mrb[0].mxu0
        %v1908 = vadd.f32 0.0, %v1907
        %v1909 = vpop.f32.mrb[0].mxu0
        %1910 = vmatprep.mubr.f32.mxu0 0.0
        %1911 = vmatmul.mubr.f32.gmra.mrb[0].mxu0 %v1768
        %v1912 = vpop.f32.mrb[0].mxu0
        %v1913 = vadd.f32 0.0, %v1912
        %v1914 = vpop.f32.mrb[0].mxu0
        %1915 = vmatprep.mubr.f32.mxu0 0.0
        %1916 = vmatmul.mubr.f32.gmra.mrb[0].mxu0 %v1771
        %v1917 = vpop.f32.mrb[0].mxu0
        %v1918 = vadd.f32 0.0, %v1917
        %v1919 = vpop.f32.mrb[0].mxu0
        %1920 = vmatprep.mubr.f32.mxu0 0.0
        %1921 = vmatmul.mubr.f32.gmra.mrb[0].mxu0 %v1774
        %v1922 = vpop.f32.mrb[0].mxu0
        %v1923 = vadd.f32 0.0, %v1922
        %v1924 = vpop.f32.mrb[0].mxu0
        %1925 = vmatprep.mubr.f32.mxu0 0.0
        %1926 = vmatmul.mubr.f32.gmra.mrb[0].mxu0 %v1777
        %v1927 = vpop.f32.mrb[0].mxu0
        %v1928 = vadd.f32 0.0, %v1927
        %v1929 = vpop.f32.mrb[0].mxu0
        %1930 = vmatprep.mubr.f32.mxu0 0.0
        %1931 = vmatmul.mubr.f32.gmra.mrb[0].mxu0 %v1780
        %v1932 = vpop.f32.mrb[0].mxu0
        %v1933 = vadd.f32 0.0, %v1932
        %v1934 = vpop.f32.mrb[0].mxu0
        %1935 = vmatprep.mubr.f32.mxu0 0.0
        %1936 = vmatmul.mubr.f32.gmra.mrb[0].mxu0 %v1783
        %v1937 = vpop.f32.mrb[0].mxu0
        %v1938 = vadd.f32 0.0, %v1937
        %v1939 = vpop.f32.mrb[0].mxu0
        %1940 = vmatprep.mubr.f32.mxu0 0.0
        %1941 = vmatmul.mubr.f32.gmra.mrb[0].mxu0 %v1786
        %v1942 = vpop.f32.mrb[0].mxu0
        %v1943 = vadd.f32 0.0, %v1942
        %v1944 = vpop.f32.mrb[0].mxu0
        %1945 = vdwg.mxu0
        %v1946 = vadd.f32 %v1522, %v1858
        %v1947 = vadd.f32 %v1523, %v1863
        %v1948 = vadd.f32 %v1524, %v1868
        %v1949 = vadd.f32 %v1525, %v1873
        %v1950 = vadd.f32 %v1526, %v1878
        %v1951 = vadd.f32 %v1527, %v1883
        %v1952 = vadd.f32 %v1528, %v1888
        %v1953 = vadd.f32 %v1529, %v1893
        %v1954 = vadd.f32 %v1530, %v1898
        %v1955 = vadd.f32 %v1531, %v1903
        %v1956 = vadd.f32 %v1532, %v1908
        %v1957 = vadd.f32 %v1533, %v1913
        %v1958 = vadd.f32 %v1534, %v1918
        %v1959 = vadd.f32 %v1535, %v1923
        %v1960 = vadd.f32 %v1536, %v1928
        %v1961 = vadd.f32 %v1537, %v1933
        %v1962 = vadd.f32 %v1538, %v1938
        %v1963 = vadd.f32 %v1539, %v1943
        %s1964 = scalar_lea.vmem [#allocation4], 1152
        %v1965 = vld [vmem:[%s1964] sm:$0xff]
        %v1966 = vld [vmem:[%s1964 + $0x8] sm:$0xff]
        %v1967 = vld [vmem:[%s1964 + $0x10] sm:$0xff]
        %v1968 = vld [vmem:[%s1964 + $0x18] sm:$0xff]
        %v1969 = vld [vmem:[%s1964 + $0x20] sm:$0xff]
        %v1970 = vld [vmem:[%s1964 + $0x28] sm:$0xff]
        %v1971 = vld [vmem:[%s1964 + $0x30] sm:$0xff]
        %v1972 = vld [vmem:[%s1964 + $0x38] sm:$0xff]
        %v1973 = vld [vmem:[%s1964 + $0x40] sm:$0xff]
        %v1974 = vld [vmem:[%s1964 + $0x48] sm:$0xff]
        %v1975 = vld [vmem:[%s1964 + $0x50] sm:$0xff]
        %v1976 = vld [vmem:[%s1964 + $0x58] sm:$0xff]
        %v1977 = vld [vmem:[%s1964 + $0x60] sm:$0xff]
        %v1978 = vld [vmem:[%s1964 + $0x68] sm:$0xff]
        %v1979 = vld [vmem:[%s1964 + $0x70] sm:$0xff]
        %v1980 = vld [vmem:[%s1964 + $0x78] sm:$0xff]
        %v1981 = vld [vmem:[%s1964 + $0x80] sm:$0xff]
        %v1982 = vld [vmem:[%s1964 + $0x88] sm:$0xff]
        %v1983 = vld [vmem:[%s1964 + $0x90] sm:$0xff]
        %v1984 = vld [vmem:[%s1964 + $0x98] sm:$0xff]
        %v1985 = vld [vmem:[%s1964 + $0xa0] sm:$0xff]
        %v1986 = vld [vmem:[%s1964 + $0xa8] sm:$0xff]
        %v1987 = vld [vmem:[%s1964 + $0xb0] sm:$0xff]
        %v1988 = vld [vmem:[%s1964 + $0xb8] sm:$0xff]
        %v1989 = vld [vmem:[%s1964 + $0xc0] sm:$0xff]
        %v1990 = vld [vmem:[%s1964 + $0xc8] sm:$0xff]
        %v1991 = vld [vmem:[%s1964 + $0xd0] sm:$0xff]
        %v1992 = vld [vmem:[%s1964 + $0xd8] sm:$0xff]
        %v1993 = vld [vmem:[%s1964 + $0xe0] sm:$0xff]
        %v1994 = vld [vmem:[%s1964 + $0xe8] sm:$0xff]
        %v1995 = vld [vmem:[%s1964 + $0xf0] sm:$0xff]
        %v1996 = vld [vmem:[%s1964 + $0xf8] sm:$0xff]
        %v1997 = vld [vmem:[%s1964 + $0x100] sm:$0xff]
        %v1998 = vld [vmem:[%s1964 + $0x108] sm:$0xff]
        %v1999 = vld [vmem:[%s1964 + $0x110] sm:$0xff]
        %v2000 = vld [vmem:[%s1964 + $0x118] sm:$0xff]
        %2001 = vmatprep.subr.mxu0 0.0
        %2002 = vmatpush1.msra.mxu0 %v272
        %2003 = vmatprep.subr.mxu0 0.0
        %2004 = vmatpush1.msra.mxu0 %v273
        %2005 = vmatprep.subr.mxu0 0.0
        %2006 = vmatpush1.msra.mxu0 %v274
        %2007 = vmatprep.subr.mxu0 0.0
        %2008 = vmatpush1.msra.mxu0 %v275
        %2009 = vmatprep.subr.mxu0 0.0
        %2010 = vmatpush1.msra.mxu0 %v276
        %2011 = vmatprep.subr.mxu0 0.0
        %2012 = vmatpush1.msra.mxu0 %v277
        %2013 = vmatprep.subr.mxu0 0.0
        %2014 = vmatpush1.msra.mxu0 %v278
        %2015 = vmatprep.subr.mxu0 0.0
        %2016 = vmatpush1.msra.mxu0 %v279
        %2017 = vmatprep.subr.mxu0 0.0
        %2018 = vmatpush1.msra.mxu0 %v280
        %2019 = vmatprep.subr.mxu0 0.0
        %2020 = vmatpush1.msra.mxu0 %v281
        %2021 = vmatprep.subr.mxu0 0.0
        %2022 = vmatpush1.msra.mxu0 %v282
        %2023 = vmatprep.subr.mxu0 0.0
        %2024 = vmatpush1.msra.mxu0 %v283
        %2025 = vmatprep.subr.mxu0 0.0
        %2026 = vmatpush1.msra.mxu0 %v284
        %2027 = vmatprep.subr.mxu0 0.0
        %2028 = vmatpush1.msra.mxu0 %v285
        %2029 = vmatprep.subr.mxu0 0.0
        %2030 = vmatpush1.msra.mxu0 %v286
        %2031 = vmatprep.subr.mxu0 0.0
        %2032 = vmatpush1.msra.mxu0 %v287
        %2033 = vmatprep.subr.mxu0 0.0
        %2034 = vmatpush1.msra.mxu0 %v288
        %2035 = vmatprep.subr.mxu0 0.0
        %2036 = vmatpush1.msra.mxu0 %v289
        %2037 = vmatprep.subr.mxu0 0.0
        %2038 = vmatpush1.msra.mxu0 %v290
        %2039 = vmatprep.subr.mxu0 0.0
        %2040 = vmatpush1.msra.mxu0 %v291
        %2041 = vmatprep.subr.mxu0 0.0
        %2042 = vmatpush1.msra.mxu0 %v292
        %2043 = vmatprep.subr.mxu0 0.0
        %2044 = vmatpush1.msra.mxu0 %v293
        %2045 = vmatprep.subr.mxu0 0.0
        %2046 = vmatpush1.msra.mxu0 %v294
        %2047 = vmatprep.subr.mxu0 0.0
        %2048 = vmatpush1.msra.mxu0 %v295
        %2049 = vmatprep.subr.mxu0 0.0
        %2050 = vmatpush1.msra.mxu0 %v296
        %2051 = vmatprep.subr.mxu0 0.0
        %2052 = vmatpush1.msra.mxu0 %v297
        %2053 = vmatprep.subr.mxu0 0.0
        %2054 = vmatpush1.msra.mxu0 %v298
        %2055 = vmatprep.subr.mxu0 0.0
        %2056 = vmatpush1.msra.mxu0 %v299
        %2057 = vmatprep.subr.mxu0 0.0
        %2058 = vmatpush1.msra.mxu0 %v300
        %2059 = vmatprep.subr.mxu0 0.0
        %2060 = vmatpush1.msra.mxu0 %v301
        %2061 = vmatprep.subr.mxu0 0.0
        %2062 = vmatpush1.msra.mxu0 %v302
        %2063 = vmatprep.subr.mxu0 0.0
        %2064 = vmatpush1.msra.mxu0 %v303
        %2065 = vmatprep.mubr.f32.mxu0 %v1966
        %2066 = vmatmul.mubr.f32.gmra.mrb[0].mxu0 %v1965
        %v2067 = vpop.f32.mrb[0].mxu0
        %v2068 = vadd.f32 0.0, %v2067
        %v2069 = vpop.f32.mrb[0].mxu0
        %2070 = vmatprep.mubr.f32.mxu0 %v1968
        %2071 = vmatmul.mubr.f32.gmra.mrb[0].mxu0 %v1967
        %v2072 = vpop.f32.mrb[0].mxu0
        %v2073 = vadd.f32 0.0, %v2072
        %v2074 = vpop.f32.mrb[0].mxu0
        %2075 = vmatprep.mubr.f32.mxu0 %v1970
        %2076 = vmatmul.mubr.f32.gmra.mrb[0].mxu0 %v1969
        %v2077 = vpop.f32.mrb[0].mxu0
        %v2078 = vadd.f32 0.0, %v2077
        %v2079 = vpop.f32.mrb[0].mxu0
        %2080 = vmatprep.mubr.f32.mxu0 %v1972
        %2081 = vmatmul.mubr.f32.gmra.mrb[0].mxu0 %v1971
        %v2082 = vpop.f32.mrb[0].mxu0
        %v2083 = vadd.f32 0.0, %v2082
        %v2084 = vpop.f32.mrb[0].mxu0
        %2085 = vmatprep.mubr.f32.mxu0 %v1974
        %2086 = vmatmul.mubr.f32.gmra.mrb[0].mxu0 %v1973
        %v2087 = vpop.f32.mrb[0].mxu0
        %v2088 = vadd.f32 0.0, %v2087
        %v2089 = vpop.f32.mrb[0].mxu0
        %2090 = vmatprep.mubr.f32.mxu0 %v1976
        %2091 = vmatmul.mubr.f32.gmra.mrb[0].mxu0 %v1975
        %v2092 = vpop.f32.mrb[0].mxu0
        %v2093 = vadd.f32 0.0, %v2092
        %v2094 = vpop.f32.mrb[0].mxu0
        %2095 = vmatprep.mubr.f32.mxu0 %v1978
        %2096 = vmatmul.mubr.f32.gmra.mrb[0].mxu0 %v1977
        %v2097 = vpop.f32.mrb[0].mxu0
        %v2098 = vadd.f32 0.0, %v2097
        %v2099 = vpop.f32.mrb[0].mxu0
        %2100 = vmatprep.mubr.f32.mxu0 %v1980
        %2101 = vmatmul.mubr.f32.gmra.mrb[0].mxu0 %v1979
        %v2102 = vpop.f32.mrb[0].mxu0
        %v2103 = vadd.f32 0.0, %v2102
        %v2104 = vpop.f32.mrb[0].mxu0
        %2105 = vmatprep.mubr.f32.mxu0 %v1982
        %2106 = vmatmul.mubr.f32.gmra.mrb[0].mxu0 %v1981
        %v2107 = vpop.f32.mrb[0].mxu0
        %v2108 = vadd.f32 0.0, %v2107
        %v2109 = vpop.f32.mrb[0].mxu0
        %2110 = vmatprep.mubr.f32.mxu0 %v1984
        %2111 = vmatmul.mubr.f32.gmra.mrb[0].mxu0 %v1983
        %v2112 = vpop.f32.mrb[0].mxu0
        %v2113 = vadd.f32 0.0, %v2112
        %v2114 = vpop.f32.mrb[0].mxu0
        %2115 = vmatprep.mubr.f32.mxu0 %v1986
        %2116 = vmatmul.mubr.f32.gmra.mrb[0].mxu0 %v1985
        %v2117 = vpop.f32.mrb[0].mxu0
        %v2118 = vadd.f32 0.0, %v2117
        %v2119 = vpop.f32.mrb[0].mxu0
        %2120 = vmatprep.mubr.f32.mxu0 %v1988
        %2121 = vmatmul.mubr.f32.gmra.mrb[0].mxu0 %v1987
        %v2122 = vpop.f32.mrb[0].mxu0
        %v2123 = vadd.f32 0.0, %v2122
        %v2124 = vpop.f32.mrb[0].mxu0
        %2125 = vmatprep.mubr.f32.mxu0 %v1990
        %2126 = vmatmul.mubr.f32.gmra.mrb[0].mxu0 %v1989
        %v2127 = vpop.f32.mrb[0].mxu0
        %v2128 = vadd.f32 0.0, %v2127
        %v2129 = vpop.f32.mrb[0].mxu0
        %2130 = vmatprep.mubr.f32.mxu0 %v1992
        %2131 = vmatmul.mubr.f32.gmra.mrb[0].mxu0 %v1991
        %v2132 = vpop.f32.mrb[0].mxu0
        %v2133 = vadd.f32 0.0, %v2132
        %v2134 = vpop.f32.mrb[0].mxu0
        %2135 = vmatprep.mubr.f32.mxu0 %v1994
        %2136 = vmatmul.mubr.f32.gmra.mrb[0].mxu0 %v1993
        %v2137 = vpop.f32.mrb[0].mxu0
        %v2138 = vadd.f32 0.0, %v2137
        %v2139 = vpop.f32.mrb[0].mxu0
        %2140 = vmatprep.mubr.f32.mxu0 %v1996
        %2141 = vmatmul.mubr.f32.gmra.mrb[0].mxu0 %v1995
        %v2142 = vpop.f32.mrb[0].mxu0
        %v2143 = vadd.f32 0.0, %v2142
        %v2144 = vpop.f32.mrb[0].mxu0
        %2145 = vmatprep.mubr.f32.mxu0 %v1998
        %2146 = vmatmul.mubr.f32.gmra.mrb[0].mxu0 %v1997
        %v2147 = vpop.f32.mrb[0].mxu0
        %v2148 = vadd.f32 0.0, %v2147
        %v2149 = vpop.f32.mrb[0].mxu0
        %2150 = vmatprep.mubr.f32.mxu0 %v2000
        %2151 = vmatmul.mubr.f32.gmra.mrb[0].mxu0 %v1999
        %v2152 = vpop.f32.mrb[0].mxu0
        %v2153 = vadd.f32 0.0, %v2152
        %v2154 = vpop.f32.mrb[0].mxu0
        %2155 = vdwg.mxu0
        %s2156 = scalar_lea.vmem [#allocation7], 16
        %v2157 = vld [vmem:[%s2156] sm:$0xf]
        %v2159 = vsel %vm690, %v2068, 0
        %v2162 = vsel %vm690, %v2073, 0
        %v2165 = vsel %vm690, %v2078, 0
        %v2168 = vsel %vm690, %v2083, 0
        %v2171 = vsel %vm690, %v2088, 0
        %v2174 = vsel %vm690, %v2093, 0
        %v2177 = vsel %vm690, %v2098, 0
        %v2180 = vsel %vm690, %v2103, 0
        %v2183 = vsel %vm690, %v2108, 0
        %v2186 = vsel %vm690, %v2113, 0
        %v2189 = vsel %vm690, %v2118, 0
        %v2192 = vsel %vm690, %v2123, 0
        %v2195 = vsel %vm690, %v2128, 0
        %v2198 = vsel %vm690, %v2133, 0
        %v2201 = vsel %vm690, %v2138, 0
        %v2204 = vsel %vm690, %v2143, 0
        %v2207 = vsel %vm690, %v2148, 0
        %v2210 = vsel %vm690, %v2153, 0
        %v2213 = vsel %vm745, %v2157, 0
        %2215 = vmatprep.subr.mxu0 0.0
        %2216 = vmatpush1.msra.mxu0 %v2213
        %2217 = vmatprep.subr.mxu0 0.0
        %2218 = vmatpush1.msra.mxu0 0.0
        %2219 = vmatprep.subr.mxu0 0.0
        %2220 = vmatpush1.msra.mxu0 0.0
        %2221 = vmatprep.subr.mxu0 0.0
        %2222 = vmatpush1.msra.mxu0 0.0
        %2223 = vmatprep.subr.mxu0 0.0
        %2224 = vmatpush1.msra.mxu0 0.0
        %2225 = vmatprep.subr.mxu0 0.0
        %2226 = vmatpush1.msra.mxu0 0.0
        %2227 = vmatprep.subr.mxu0 0.0
        %2228 = vmatpush1.msra.mxu0 0.0
        %2229 = vmatprep.subr.mxu0 0.0
        %2230 = vmatpush1.msra.mxu0 0.0
        %2231 = vmatprep.subr.mxu0 0.0
        %2232 = vmatpush1.msra.mxu0 0.0
        %2233 = vmatprep.subr.mxu0 0.0
        %2234 = vmatpush1.msra.mxu0 0.0
        %2235 = vmatprep.subr.mxu0 0.0
        %2236 = vmatpush1.msra.mxu0 0.0
        %2237 = vmatprep.subr.mxu0 0.0
        %2238 = vmatpush1.msra.mxu0 0.0
        %2239 = vmatprep.subr.mxu0 0.0
        %2240 = vmatpush1.msra.mxu0 0.0
        %2241 = vmatprep.subr.mxu0 0.0
        %2242 = vmatpush1.msra.mxu0 0.0
        %2243 = vmatprep.subr.mxu0 0.0
        %2244 = vmatpush1.msra.mxu0 0.0
        %2245 = vmatprep.subr.mxu0 0.0
        %2246 = vmatpush1.msra.mxu0 0.0
        %2247 = vmatprep.subr.mxu0 0.0
        %2248 = vmatpush1.msra.mxu0 0.0
        %2249 = vmatprep.subr.mxu0 0.0
        %2250 = vmatpush1.msra.mxu0 0.0
        %2251 = vmatprep.subr.mxu0 0.0
        %2252 = vmatpush1.msra.mxu0 0.0
        %2253 = vmatprep.subr.mxu0 0.0
        %2254 = vmatpush1.msra.mxu0 0.0
        %2255 = vmatprep.subr.mxu0 0.0
        %2256 = vmatpush1.msra.mxu0 0.0
        %2257 = vmatprep.subr.mxu0 0.0
        %2258 = vmatpush1.msra.mxu0 0.0
        %2259 = vmatprep.subr.mxu0 0.0
        %2260 = vmatpush1.msra.mxu0 0.0
        %2261 = vmatprep.subr.mxu0 0.0
        %2262 = vmatpush1.msra.mxu0 0.0
        %2263 = vmatprep.subr.mxu0 0.0
        %2264 = vmatpush1.msra.mxu0 0.0
        %2265 = vmatprep.subr.mxu0 0.0
        %2266 = vmatpush1.msra.mxu0 0.0
        %2267 = vmatprep.subr.mxu0 0.0
        %2268 = vmatpush1.msra.mxu0 0.0
        %2269 = vmatprep.subr.mxu0 0.0
        %2270 = vmatpush1.msra.mxu0 0.0
        %2271 = vmatprep.subr.mxu0 0.0
        %2272 = vmatpush1.msra.mxu0 0.0
        %2273 = vmatprep.subr.mxu0 0.0
        %2274 = vmatpush1.msra.mxu0 0.0
        %2275 = vmatprep.subr.mxu0 0.0
        %2276 = vmatpush1.msra.mxu0 0.0
        %2277 = vmatprep.subr.mxu0 0.0
        %2278 = vmatpush1.msra.mxu0 0.0
        %2279 = vmatprep.mubr.f32.mxu0 0.0
        %2280 = vmatmul.mubr.f32.gmra.mrb[0].mxu0 %v2159
        %v2281 = vpop.f32.mrb[0].mxu0
        %v2282 = vadd.f32 0.0, %v2281
        %v2283 = vpop.f32.mrb[0].mxu0
        %2284 = vmatprep.mubr.f32.mxu0 0.0
        %2285 = vmatmul.mubr.f32.gmra.mrb[0].mxu0 %v2162
        %v2286 = vpop.f32.mrb[0].mxu0
        %v2287 = vadd.f32 0.0, %v2286
        %v2288 = vpop.f32.mrb[0].mxu0
        %2289 = vmatprep.mubr.f32.mxu0 0.0
        %2290 = vmatmul.mubr.f32.gmra.mrb[0].mxu0 %v2165
        %v2291 = vpop.f32.mrb[0].mxu0
        %v2292 = vadd.f32 0.0, %v2291
        %v2293 = vpop.f32.mrb[0].mxu0
        %2294 = vmatprep.mubr.f32.mxu0 0.0
        %2295 = vmatmul.mubr.f32.gmra.mrb[0].mxu0 %v2168
        %v2296 = vpop.f32.mrb[0].mxu0
        %v2297 = vadd.f32 0.0, %v2296
        %v2298 = vpop.f32.mrb[0].mxu0
        %2299 = vmatprep.mubr.f32.mxu0 0.0
        %2300 = vmatmul.mubr.f32.gmra.mrb[0].mxu0 %v2171
        %v2301 = vpop.f32.mrb[0].mxu0
        %v2302 = vadd.f32 0.0, %v2301
        %v2303 = vpop.f32.mrb[0].mxu0
        %2304 = vmatprep.mubr.f32.mxu0 0.0
        %2305 = vmatmul.mubr.f32.gmra.mrb[0].mxu0 %v2174
        %v2306 = vpop.f32.mrb[0].mxu0
        %v2307 = vadd.f32 0.0, %v2306
        %v2308 = vpop.f32.mrb[0].mxu0
        %2309 = vmatprep.mubr.f32.mxu0 0.0
        %2310 = vmatmul.mubr.f32.gmra.mrb[0].mxu0 %v2177
        %v2311 = vpop.f32.mrb[0].mxu0
        %v2312 = vadd.f32 0.0, %v2311
        %v2313 = vpop.f32.mrb[0].mxu0
        %2314 = vmatprep.mubr.f32.mxu0 0.0
        %2315 = vmatmul.mubr.f32.gmra.mrb[0].mxu0 %v2180
        %v2316 = vpop.f32.mrb[0].mxu0
        %v2317 = vadd.f32 0.0, %v2316
        %v2318 = vpop.f32.mrb[0].mxu0
        %2319 = vmatprep.mubr.f32.mxu0 0.0
        %2320 = vmatmul.mubr.f32.gmra.mrb[0].mxu0 %v2183
        %v2321 = vpop.f32.mrb[0].mxu0
        %v2322 = vadd.f32 0.0, %v2321
        %v2323 = vpop.f32.mrb[0].mxu0
        %2324 = vmatprep.mubr.f32.mxu0 0.0
        %2325 = vmatmul.mubr.f32.gmra.mrb[0].mxu0 %v2186
        %v2326 = vpop.f32.mrb[0].mxu0
        %v2327 = vadd.f32 0.0, %v2326
        %v2328 = vpop.f32.mrb[0].mxu0
        %2329 = vmatprep.mubr.f32.mxu0 0.0
        %2330 = vmatmul.mubr.f32.gmra.mrb[0].mxu0 %v2189
        %v2331 = vpop.f32.mrb[0].mxu0
        %v2332 = vadd.f32 0.0, %v2331
        %v2333 = vpop.f32.mrb[0].mxu0
        %2334 = vmatprep.mubr.f32.mxu0 0.0
        %2335 = vmatmul.mubr.f32.gmra.mrb[0].mxu0 %v2192
        %v2336 = vpop.f32.mrb[0].mxu0
        %v2337 = vadd.f32 0.0, %v2336
        %v2338 = vpop.f32.mrb[0].mxu0
        %2339 = vmatprep.mubr.f32.mxu0 0.0
        %2340 = vmatmul.mubr.f32.gmra.mrb[0].mxu0 %v2195
        %v2341 = vpop.f32.mrb[0].mxu0
        %v2342 = vadd.f32 0.0, %v2341
        %v2343 = vpop.f32.mrb[0].mxu0
        %2344 = vmatprep.mubr.f32.mxu0 0.0
        %2345 = vmatmul.mubr.f32.gmra.mrb[0].mxu0 %v2198
        %v2346 = vpop.f32.mrb[0].mxu0
        %v2347 = vadd.f32 0.0, %v2346
        %v2348 = vpop.f32.mrb[0].mxu0
        %2349 = vmatprep.mubr.f32.mxu0 0.0
        %2350 = vmatmul.mubr.f32.gmra.mrb[0].mxu0 %v2201
        %v2351 = vpop.f32.mrb[0].mxu0
        %v2352 = vadd.f32 0.0, %v2351
        %v2353 = vpop.f32.mrb[0].mxu0
        %2354 = vmatprep.mubr.f32.mxu0 0.0
        %2355 = vmatmul.mubr.f32.gmra.mrb[0].mxu0 %v2204
        %v2356 = vpop.f32.mrb[0].mxu0
        %v2357 = vadd.f32 0.0, %v2356
        %v2358 = vpop.f32.mrb[0].mxu0
        %2359 = vmatprep.mubr.f32.mxu0 0.0
        %2360 = vmatmul.mubr.f32.gmra.mrb[0].mxu0 %v2207
        %v2361 = vpop.f32.mrb[0].mxu0
        %v2362 = vadd.f32 0.0, %v2361
        %v2363 = vpop.f32.mrb[0].mxu0
        %2364 = vmatprep.mubr.f32.mxu0 0.0
        %2365 = vmatmul.mubr.f32.gmra.mrb[0].mxu0 %v2210
        %v2366 = vpop.f32.mrb[0].mxu0
        %v2367 = vadd.f32 0.0, %v2366
        %v2368 = vpop.f32.mrb[0].mxu0
        %2369 = vdwg.mxu0
        %v2370 = vadd.f32 %v1946, %v2282
        %v2371 = vadd.f32 %v1947, %v2287
        %v2372 = vadd.f32 %v1948, %v2292
        %v2373 = vadd.f32 %v1949, %v2297
        %v2374 = vadd.f32 %v1950, %v2302
        %v2375 = vadd.f32 %v1951, %v2307
        %v2376 = vadd.f32 %v1952, %v2312
        %v2377 = vadd.f32 %v1953, %v2317
        %v2378 = vadd.f32 %v1954, %v2322
        %v2379 = vadd.f32 %v1955, %v2327
        %v2380 = vadd.f32 %v1956, %v2332
        %v2381 = vadd.f32 %v1957, %v2337
        %v2382 = vadd.f32 %v1958, %v2342
        %v2383 = vadd.f32 %v1959, %v2347
        %v2384 = vadd.f32 %v1960, %v2352
        %v2385 = vadd.f32 %v1961, %v2357
        %v2386 = vadd.f32 %v1962, %v2362
        %v2387 = vadd.f32 %v1963, %v2367
        %s2388 = scalar_lea.vmem [#allocation4], 1440
        %v2389 = vld [vmem:[%s2388] sm:$0xff]
        %v2390 = vld [vmem:[%s2388 + $0x8] sm:$0xff]
        %v2391 = vld [vmem:[%s2388 + $0x10] sm:$0xff]
        %v2392 = vld [vmem:[%s2388 + $0x18] sm:$0xff]
        %v2393 = vld [vmem:[%s2388 + $0x20] sm:$0xff]
        %v2394 = vld [vmem:[%s2388 + $0x28] sm:$0xff]
        %v2395 = vld [vmem:[%s2388 + $0x30] sm:$0xff]
        %v2396 = vld [vmem:[%s2388 + $0x38] sm:$0xff]
        %v2397 = vld [vmem:[%s2388 + $0x40] sm:$0xff]
        %v2398 = vld [vmem:[%s2388 + $0x48] sm:$0xff]
        %v2399 = vld [vmem:[%s2388 + $0x50] sm:$0xff]
        %v2400 = vld [vmem:[%s2388 + $0x58] sm:$0xff]
        %v2401 = vld [vmem:[%s2388 + $0x60] sm:$0xff]
        %v2402 = vld [vmem:[%s2388 + $0x68] sm:$0xff]
        %v2403 = vld [vmem:[%s2388 + $0x70] sm:$0xff]
        %v2404 = vld [vmem:[%s2388 + $0x78] sm:$0xff]
        %v2405 = vld [vmem:[%s2388 + $0x80] sm:$0xff]
        %v2406 = vld [vmem:[%s2388 + $0x88] sm:$0xff]
        %v2407 = vld [vmem:[%s2388 + $0x90] sm:$0xff]
        %v2408 = vld [vmem:[%s2388 + $0x98] sm:$0xff]
        %v2409 = vld [vmem:[%s2388 + $0xa0] sm:$0xff]
        %v2410 = vld [vmem:[%s2388 + $0xa8] sm:$0xff]
        %v2411 = vld [vmem:[%s2388 + $0xb0] sm:$0xff]
        %v2412 = vld [vmem:[%s2388 + $0xb8] sm:$0xff]
        %v2413 = vld [vmem:[%s2388 + $0xc0] sm:$0xff]
        %v2414 = vld [vmem:[%s2388 + $0xc8] sm:$0xff]
        %v2415 = vld [vmem:[%s2388 + $0xd0] sm:$0xff]
        %v2416 = vld [vmem:[%s2388 + $0xd8] sm:$0xff]
        %v2417 = vld [vmem:[%s2388 + $0xe0] sm:$0xff]
        %v2418 = vld [vmem:[%s2388 + $0xe8] sm:$0xff]
        %v2419 = vld [vmem:[%s2388 + $0xf0] sm:$0xff]
        %v2420 = vld [vmem:[%s2388 + $0xf8] sm:$0xff]
        %v2421 = vld [vmem:[%s2388 + $0x100] sm:$0xff]
        %v2422 = vld [vmem:[%s2388 + $0x108] sm:$0xff]
        %v2423 = vld [vmem:[%s2388 + $0x110] sm:$0xff]
        %v2424 = vld [vmem:[%s2388 + $0x118] sm:$0xff]
        %2425 = vmatprep.subr.mxu0 0.0
        %2426 = vmatpush1.msra.mxu0 %v272
        %2427 = vmatprep.subr.mxu0 0.0
        %2428 = vmatpush1.msra.mxu0 %v273
        %2429 = vmatprep.subr.mxu0 0.0
        %2430 = vmatpush1.msra.mxu0 %v274
        %2431 = vmatprep.subr.mxu0 0.0
        %2432 = vmatpush1.msra.mxu0 %v275
        %2433 = vmatprep.subr.mxu0 0.0
        %2434 = vmatpush1.msra.mxu0 %v276
        %2435 = vmatprep.subr.mxu0 0.0
        %2436 = vmatpush1.msra.mxu0 %v277
        %2437 = vmatprep.subr.mxu0 0.0
        %2438 = vmatpush1.msra.mxu0 %v278
        %2439 = vmatprep.subr.mxu0 0.0
        %2440 = vmatpush1.msra.mxu0 %v279
        %2441 = vmatprep.subr.mxu0 0.0
        %2442 = vmatpush1.msra.mxu0 %v280
        %2443 = vmatprep.subr.mxu0 0.0
        %2444 = vmatpush1.msra.mxu0 %v281
        %2445 = vmatprep.subr.mxu0 0.0
        %2446 = vmatpush1.msra.mxu0 %v282
        %2447 = vmatprep.subr.mxu0 0.0
        %2448 = vmatpush1.msra.mxu0 %v283
        %2449 = vmatprep.subr.mxu0 0.0
        %2450 = vmatpush1.msra.mxu0 %v284
        %2451 = vmatprep.subr.mxu0 0.0
        %2452 = vmatpush1.msra.mxu0 %v285
        %2453 = vmatprep.subr.mxu0 0.0
        %2454 = vmatpush1.msra.mxu0 %v286
        %2455 = vmatprep.subr.mxu0 0.0
        %2456 = vmatpush1.msra.mxu0 %v287
        %2457 = vmatprep.subr.mxu0 0.0
        %2458 = vmatpush1.msra.mxu0 %v288
        %2459 = vmatprep.subr.mxu0 0.0
        %2460 = vmatpush1.msra.mxu0 %v289
        %2461 = vmatprep.subr.mxu0 0.0
        %2462 = vmatpush1.msra.mxu0 %v290
        %2463 = vmatprep.subr.mxu0 0.0
        %2464 = vmatpush1.msra.mxu0 %v291
        %2465 = vmatprep.subr.mxu0 0.0
        %2466 = vmatpush1.msra.mxu0 %v292
        %2467 = vmatprep.subr.mxu0 0.0
        %2468 = vmatpush1.msra.mxu0 %v293
        %2469 = vmatprep.subr.mxu0 0.0
        %2470 = vmatpush1.msra.mxu0 %v294
        %2471 = vmatprep.subr.mxu0 0.0
        %2472 = vmatpush1.msra.mxu0 %v295
        %2473 = vmatprep.subr.mxu0 0.0
        %2474 = vmatpush1.msra.mxu0 %v296
        %2475 = vmatprep.subr.mxu0 0.0
        %2476 = vmatpush1.msra.mxu0 %v297
        %2477 = vmatprep.subr.mxu0 0.0
        %2478 = vmatpush1.msra.mxu0 %v298
        %2479 = vmatprep.subr.mxu0 0.0
        %2480 = vmatpush1.msra.mxu0 %v299
        %2481 = vmatprep.subr.mxu0 0.0
        %2482 = vmatpush1.msra.mxu0 %v300
        %2483 = vmatprep.subr.mxu0 0.0
        %2484 = vmatpush1.msra.mxu0 %v301
        %2485 = vmatprep.subr.mxu0 0.0
        %2486 = vmatpush1.msra.mxu0 %v302
        %2487 = vmatprep.subr.mxu0 0.0
        %2488 = vmatpush1.msra.mxu0 %v303
        %2489 = vmatprep.mubr.f32.mxu0 %v2390
        %2490 = vmatmul.mubr.f32.gmra.mrb[0].mxu0 %v2389
        %v2491 = vpop.f32.mrb[0].mxu0
        %v2492 = vadd.f32 0.0, %v2491
        %v2493 = vpop.f32.mrb[0].mxu0
        %2494 = vmatprep.mubr.f32.mxu0 %v2392
        %2495 = vmatmul.mubr.f32.gmra.mrb[0].mxu0 %v2391
        %v2496 = vpop.f32.mrb[0].mxu0
        %v2497 = vadd.f32 0.0, %v2496
        %v2498 = vpop.f32.mrb[0].mxu0
        %2499 = vmatprep.mubr.f32.mxu0 %v2394
        %2500 = vmatmul.mubr.f32.gmra.mrb[0].mxu0 %v2393
        %v2501 = vpop.f32.mrb[0].mxu0
        %v2502 = vadd.f32 0.0, %v2501
        %v2503 = vpop.f32.mrb[0].mxu0
        %2504 = vmatprep.mubr.f32.mxu0 %v2396
        %2505 = vmatmul.mubr.f32.gmra.mrb[0].mxu0 %v2395
        %v2506 = vpop.f32.mrb[0].mxu0
        %v2507 = vadd.f32 0.0, %v2506
        %v2508 = vpop.f32.mrb[0].mxu0
        %2509 = vmatprep.mubr.f32.mxu0 %v2398
        %2510 = vmatmul.mubr.f32.gmra.mrb[0].mxu0 %v2397
        %v2511 = vpop.f32.mrb[0].mxu0
        %v2512 = vadd.f32 0.0, %v2511
        %v2513 = vpop.f32.mrb[0].mxu0
        %2514 = vmatprep.mubr.f32.mxu0 %v2400
        %2515 = vmatmul.mubr.f32.gmra.mrb[0].mxu0 %v2399
        %v2516 = vpop.f32.mrb[0].mxu0
        %v2517 = vadd.f32 0.0, %v2516
        %v2518 = vpop.f32.mrb[0].mxu0
        %2519 = vmatprep.mubr.f32.mxu0 %v2402
        %2520 = vmatmul.mubr.f32.gmra.mrb[0].mxu0 %v2401
        %v2521 = vpop.f32.mrb[0].mxu0
        %v2522 = vadd.f32 0.0, %v2521
        %v2523 = vpop.f32.mrb[0].mxu0
        %2524 = vmatprep.mubr.f32.mxu0 %v2404
        %2525 = vmatmul.mubr.f32.gmra.mrb[0].mxu0 %v2403
        %v2526 = vpop.f32.mrb[0].mxu0
        %v2527 = vadd.f32 0.0, %v2526
        %v2528 = vpop.f32.mrb[0].mxu0
        %2529 = vmatprep.mubr.f32.mxu0 %v2406
        %2530 = vmatmul.mubr.f32.gmra.mrb[0].mxu0 %v2405
        %v2531 = vpop.f32.mrb[0].mxu0
        %v2532 = vadd.f32 0.0, %v2531
        %v2533 = vpop.f32.mrb[0].mxu0
        %2534 = vmatprep.mubr.f32.mxu0 %v2408
        %2535 = vmatmul.mubr.f32.gmra.mrb[0].mxu0 %v2407
        %v2536 = vpop.f32.mrb[0].mxu0
        %v2537 = vadd.f32 0.0, %v2536
        %v2538 = vpop.f32.mrb[0].mxu0
        %2539 = vmatprep.mubr.f32.mxu0 %v2410
        %2540 = vmatmul.mubr.f32.gmra.mrb[0].mxu0 %v2409
        %v2541 = vpop.f32.mrb[0].mxu0
        %v2542 = vadd.f32 0.0, %v2541
        %v2543 = vpop.f32.mrb[0].mxu0
        %2544 = vmatprep.mubr.f32.mxu0 %v2412
        %2545 = vmatmul.mubr.f32.gmra.mrb[0].mxu0 %v2411
        %v2546 = vpop.f32.mrb[0].mxu0
        %v2547 = vadd.f32 0.0, %v2546
        %v2548 = vpop.f32.mrb[0].mxu0
        %2549 = vmatprep.mubr.f32.mxu0 %v2414
        %2550 = vmatmul.mubr.f32.gmra.mrb[0].mxu0 %v2413
        %v2551 = vpop.f32.mrb[0].mxu0
        %v2552 = vadd.f32 0.0, %v2551
        %v2553 = vpop.f32.mrb[0].mxu0
        %2554 = vmatprep.mubr.f32.mxu0 %v2416
        %2555 = vmatmul.mubr.f32.gmra.mrb[0].mxu0 %v2415
        %v2556 = vpop.f32.mrb[0].mxu0
        %v2557 = vadd.f32 0.0, %v2556
        %v2558 = vpop.f32.mrb[0].mxu0
        %2559 = vmatprep.mubr.f32.mxu0 %v2418
        %2560 = vmatmul.mubr.f32.gmra.mrb[0].mxu0 %v2417
        %v2561 = vpop.f32.mrb[0].mxu0
        %v2562 = vadd.f32 0.0, %v2561
        %v2563 = vpop.f32.mrb[0].mxu0
        %2564 = vmatprep.mubr.f32.mxu0 %v2420
        %2565 = vmatmul.mubr.f32.gmra.mrb[0].mxu0 %v2419
        %v2566 = vpop.f32.mrb[0].mxu0
        %v2567 = vadd.f32 0.0, %v2566
        %v2568 = vpop.f32.mrb[0].mxu0
        %2569 = vmatprep.mubr.f32.mxu0 %v2422
        %2570 = vmatmul.mubr.f32.gmra.mrb[0].mxu0 %v2421
        %v2571 = vpop.f32.mrb[0].mxu0
        %v2572 = vadd.f32 0.0, %v2571
        %v2573 = vpop.f32.mrb[0].mxu0
        %2574 = vmatprep.mubr.f32.mxu0 %v2424
        %2575 = vmatmul.mubr.f32.gmra.mrb[0].mxu0 %v2423
        %v2576 = vpop.f32.mrb[0].mxu0
        %v2577 = vadd.f32 0.0, %v2576
        %v2578 = vpop.f32.mrb[0].mxu0
        %2579 = vdwg.mxu0
        %s2580 = scalar_lea.vmem [#allocation7], 20
        %v2581 = vld [vmem:[%s2580] sm:$0xf]
        %v2583 = vsel %vm690, %v2492, 0
        %v2586 = vsel %vm690, %v2497, 0
        %v2589 = vsel %vm690, %v2502, 0
        %v2592 = vsel %vm690, %v2507, 0
        %v2595 = vsel %vm690, %v2512, 0
        %v2598 = vsel %vm690, %v2517, 0
        %v2601 = vsel %vm690, %v2522, 0
        %v2604 = vsel %vm690, %v2527, 0
        %v2607 = vsel %vm690, %v2532, 0
        %v2610 = vsel %vm690, %v2537, 0
        %v2613 = vsel %vm690, %v2542, 0
        %v2616 = vsel %vm690, %v2547, 0
        %v2619 = vsel %vm690, %v2552, 0
        %v2622 = vsel %vm690, %v2557, 0
        %v2625 = vsel %vm690, %v2562, 0
        %v2628 = vsel %vm690, %v2567, 0
        %v2631 = vsel %vm690, %v2572, 0
        %v2634 = vsel %vm690, %v2577, 0
        %v2637 = vsel %vm745, %v2581, 0
        %2639 = vmatprep.subr.mxu0 0.0
        %2640 = vmatpush1.msra.mxu0 %v2637
        %2641 = vmatprep.subr.mxu0 0.0
        %2642 = vmatpush1.msra.mxu0 0.0
        %2643 = vmatprep.subr.mxu0 0.0
        %2644 = vmatpush1.msra.mxu0 0.0
        %2645 = vmatprep.subr.mxu0 0.0
        %2646 = vmatpush1.msra.mxu0 0.0
        %2647 = vmatprep.subr.mxu0 0.0
        %2648 = vmatpush1.msra.mxu0 0.0
        %2649 = vmatprep.subr.mxu0 0.0
        %2650 = vmatpush1.msra.mxu0 0.0
        %2651 = vmatprep.subr.mxu0 0.0
        %2652 = vmatpush1.msra.mxu0 0.0
        %2653 = vmatprep.subr.mxu0 0.0
        %2654 = vmatpush1.msra.mxu0 0.0
        %2655 = vmatprep.subr.mxu0 0.0
        %2656 = vmatpush1.msra.mxu0 0.0
        %2657 = vmatprep.subr.mxu0 0.0
        %2658 = vmatpush1.msra.mxu0 0.0
        %2659 = vmatprep.subr.mxu0 0.0
        %2660 = vmatpush1.msra.mxu0 0.0
        %2661 = vmatprep.subr.mxu0 0.0
        %2662 = vmatpush1.msra.mxu0 0.0
        %2663 = vmatprep.subr.mxu0 0.0
        %2664 = vmatpush1.msra.mxu0 0.0
        %2665 = vmatprep.subr.mxu0 0.0
        %2666 = vmatpush1.msra.mxu0 0.0
        %2667 = vmatprep.subr.mxu0 0.0
        %2668 = vmatpush1.msra.mxu0 0.0
        %2669 = vmatprep.subr.mxu0 0.0
        %2670 = vmatpush1.msra.mxu0 0.0
        %2671 = vmatprep.subr.mxu0 0.0
        %2672 = vmatpush1.msra.mxu0 0.0
        %2673 = vmatprep.subr.mxu0 0.0
        %2674 = vmatpush1.msra.mxu0 0.0
        %2675 = vmatprep.subr.mxu0 0.0
        %2676 = vmatpush1.msra.mxu0 0.0
        %2677 = vmatprep.subr.mxu0 0.0
        %2678 = vmatpush1.msra.mxu0 0.0
        %2679 = vmatprep.subr.mxu0 0.0
        %2680 = vmatpush1.msra.mxu0 0.0
        %2681 = vmatprep.subr.mxu0 0.0
        %2682 = vmatpush1.msra.mxu0 0.0
        %2683 = vmatprep.subr.mxu0 0.0
        %2684 = vmatpush1.msra.mxu0 0.0
        %2685 = vmatprep.subr.mxu0 0.0
        %2686 = vmatpush1.msra.mxu0 0.0
        %2687 = vmatprep.subr.mxu0 0.0
        %2688 = vmatpush1.msra.mxu0 0.0
        %2689 = vmatprep.subr.mxu0 0.0
        %2690 = vmatpush1.msra.mxu0 0.0
        %2691 = vmatprep.subr.mxu0 0.0
        %2692 = vmatpush1.msra.mxu0 0.0
        %2693 = vmatprep.subr.mxu0 0.0
        %2694 = vmatpush1.msra.mxu0 0.0
        %2695 = vmatprep.subr.mxu0 0.0
        %2696 = vmatpush1.msra.mxu0 0.0
        %2697 = vmatprep.subr.mxu0 0.0
        %2698 = vmatpush1.msra.mxu0 0.0
        %2699 = vmatprep.subr.mxu0 0.0
        %2700 = vmatpush1.msra.mxu0 0.0
        %2701 = vmatprep.subr.mxu0 0.0
        %2702 = vmatpush1.msra.mxu0 0.0
        %2703 = vmatprep.mubr.f32.mxu0 0.0
        %2704 = vmatmul.mubr.f32.gmra.mrb[0].mxu0 %v2583
        %v2705 = vpop.f32.mrb[0].mxu0
        %v2706 = vadd.f32 0.0, %v2705
        %v2707 = vpop.f32.mrb[0].mxu0
        %2708 = vmatprep.mubr.f32.mxu0 0.0
        %2709 = vmatmul.mubr.f32.gmra.mrb[0].mxu0 %v2586
        %v2710 = vpop.f32.mrb[0].mxu0
        %v2711 = vadd.f32 0.0, %v2710
        %v2712 = vpop.f32.mrb[0].mxu0
        %2713 = vmatprep.mubr.f32.mxu0 0.0
        %2714 = vmatmul.mubr.f32.gmra.mrb[0].mxu0 %v2589
        %v2715 = vpop.f32.mrb[0].mxu0
        %v2716 = vadd.f32 0.0, %v2715
        %v2717 = vpop.f32.mrb[0].mxu0
        %2718 = vmatprep.mubr.f32.mxu0 0.0
        %2719 = vmatmul.mubr.f32.gmra.mrb[0].mxu0 %v2592
        %v2720 = vpop.f32.mrb[0].mxu0
        %v2721 = vadd.f32 0.0, %v2720
        %v2722 = vpop.f32.mrb[0].mxu0
        %2723 = vmatprep.mubr.f32.mxu0 0.0
        %2724 = vmatmul.mubr.f32.gmra.mrb[0].mxu0 %v2595
        %v2725 = vpop.f32.mrb[0].mxu0
        %v2726 = vadd.f32 0.0, %v2725
        %v2727 = vpop.f32.mrb[0].mxu0
        %2728 = vmatprep.mubr.f32.mxu0 0.0
        %2729 = vmatmul.mubr.f32.gmra.mrb[0].mxu0 %v2598
        %v2730 = vpop.f32.mrb[0].mxu0
        %v2731 = vadd.f32 0.0, %v2730
        %v2732 = vpop.f32.mrb[0].mxu0
        %2733 = vmatprep.mubr.f32.mxu0 0.0
        %2734 = vmatmul.mubr.f32.gmra.mrb[0].mxu0 %v2601
        %v2735 = vpop.f32.mrb[0].mxu0
        %v2736 = vadd.f32 0.0, %v2735
        %v2737 = vpop.f32.mrb[0].mxu0
        %2738 = vmatprep.mubr.f32.mxu0 0.0
        %2739 = vmatmul.mubr.f32.gmra.mrb[0].mxu0 %v2604
        %v2740 = vpop.f32.mrb[0].mxu0
        %v2741 = vadd.f32 0.0, %v2740
        %v2742 = vpop.f32.mrb[0].mxu0
        %2743 = vmatprep.mubr.f32.mxu0 0.0
        %2744 = vmatmul.mubr.f32.gmra.mrb[0].mxu0 %v2607
        %v2745 = vpop.f32.mrb[0].mxu0
        %v2746 = vadd.f32 0.0, %v2745
        %v2747 = vpop.f32.mrb[0].mxu0
        %2748 = vmatprep.mubr.f32.mxu0 0.0
        %2749 = vmatmul.mubr.f32.gmra.mrb[0].mxu0 %v2610
        %v2750 = vpop.f32.mrb[0].mxu0
        %v2751 = vadd.f32 0.0, %v2750
        %v2752 = vpop.f32.mrb[0].mxu0
        %2753 = vmatprep.mubr.f32.mxu0 0.0
        %2754 = vmatmul.mubr.f32.gmra.mrb[0].mxu0 %v2613
        %v2755 = vpop.f32.mrb[0].mxu0
        %v2756 = vadd.f32 0.0, %v2755
        %v2757 = vpop.f32.mrb[0].mxu0
        %2758 = vmatprep.mubr.f32.mxu0 0.0
        %2759 = vmatmul.mubr.f32.gmra.mrb[0].mxu0 %v2616
        %v2760 = vpop.f32.mrb[0].mxu0
        %v2761 = vadd.f32 0.0, %v2760
        %v2762 = vpop.f32.mrb[0].mxu0
        %2763 = vmatprep.mubr.f32.mxu0 0.0
        %2764 = vmatmul.mubr.f32.gmra.mrb[0].mxu0 %v2619
        %v2765 = vpop.f32.mrb[0].mxu0
        %v2766 = vadd.f32 0.0, %v2765
        %v2767 = vpop.f32.mrb[0].mxu0
        %2768 = vmatprep.mubr.f32.mxu0 0.0
        %2769 = vmatmul.mubr.f32.gmra.mrb[0].mxu0 %v2622
        %v2770 = vpop.f32.mrb[0].mxu0
        %v2771 = vadd.f32 0.0, %v2770
        %v2772 = vpop.f32.mrb[0].mxu0
        %2773 = vmatprep.mubr.f32.mxu0 0.0
        %2774 = vmatmul.mubr.f32.gmra.mrb[0].mxu0 %v2625
        %v2775 = vpop.f32.mrb[0].mxu0
        %v2776 = vadd.f32 0.0, %v2775
        %v2777 = vpop.f32.mrb[0].mxu0
        %2778 = vmatprep.mubr.f32.mxu0 0.0
        %2779 = vmatmul.mubr.f32.gmra.mrb[0].mxu0 %v2628
        %v2780 = vpop.f32.mrb[0].mxu0
        %v2781 = vadd.f32 0.0, %v2780
        %v2782 = vpop.f32.mrb[0].mxu0
        %2783 = vmatprep.mubr.f32.mxu0 0.0
        %2784 = vmatmul.mubr.f32.gmra.mrb[0].mxu0 %v2631
        %v2785 = vpop.f32.mrb[0].mxu0
        %v2786 = vadd.f32 0.0, %v2785
        %v2787 = vpop.f32.mrb[0].mxu0
        %2788 = vmatprep.mubr.f32.mxu0 0.0
        %2789 = vmatmul.mubr.f32.gmra.mrb[0].mxu0 %v2634
        %v2790 = vpop.f32.mrb[0].mxu0
        %v2791 = vadd.f32 0.0, %v2790
        %v2792 = vpop.f32.mrb[0].mxu0
        %2793 = vdwg.mxu0
        %v2794 = vadd.f32 %v2370, %v2706
        %v2795 = vadd.f32 %v2371, %v2711
        %v2796 = vadd.f32 %v2372, %v2716
        %v2797 = vadd.f32 %v2373, %v2721
        %v2798 = vadd.f32 %v2374, %v2726
        %v2799 = vadd.f32 %v2375, %v2731
        %v2800 = vadd.f32 %v2376, %v2736
        %v2801 = vadd.f32 %v2377, %v2741
        %v2802 = vadd.f32 %v2378, %v2746
        %v2803 = vadd.f32 %v2379, %v2751
        %v2804 = vadd.f32 %v2380, %v2756
        %v2805 = vadd.f32 %v2381, %v2761
        %v2806 = vadd.f32 %v2382, %v2766
        %v2807 = vadd.f32 %v2383, %v2771
        %v2808 = vadd.f32 %v2384, %v2776
        %v2809 = vadd.f32 %v2385, %v2781
        %v2810 = vadd.f32 %v2386, %v2786
        %v2811 = vadd.f32 %v2387, %v2791
        %s2812 = scalar_lea.vmem [#allocation4], 1728
        %v2813 = vld [vmem:[%s2812] sm:$0xff]
        %v2814 = vld [vmem:[%s2812 + $0x8] sm:$0xff]
        %v2815 = vld [vmem:[%s2812 + $0x10] sm:$0xff]
        %v2816 = vld [vmem:[%s2812 + $0x18] sm:$0xff]
        %v2817 = vld [vmem:[%s2812 + $0x20] sm:$0xff]
        %v2818 = vld [vmem:[%s2812 + $0x28] sm:$0xff]
        %v2819 = vld [vmem:[%s2812 + $0x30] sm:$0xff]
        %v2820 = vld [vmem:[%s2812 + $0x38] sm:$0xff]
        %v2821 = vld [vmem:[%s2812 + $0x40] sm:$0xff]
        %v2822 = vld [vmem:[%s2812 + $0x48] sm:$0xff]
        %v2823 = vld [vmem:[%s2812 + $0x50] sm:$0xff]
        %v2824 = vld [vmem:[%s2812 + $0x58] sm:$0xff]
        %v2825 = vld [vmem:[%s2812 + $0x60] sm:$0xff]
        %v2826 = vld [vmem:[%s2812 + $0x68] sm:$0xff]
        %v2827 = vld [vmem:[%s2812 + $0x70] sm:$0xff]
        %v2828 = vld [vmem:[%s2812 + $0x78] sm:$0xff]
        %v2829 = vld [vmem:[%s2812 + $0x80] sm:$0xff]
        %v2830 = vld [vmem:[%s2812 + $0x88] sm:$0xff]
        %v2831 = vld [vmem:[%s2812 + $0x90] sm:$0xff]
        %v2832 = vld [vmem:[%s2812 + $0x98] sm:$0xff]
        %v2833 = vld [vmem:[%s2812 + $0xa0] sm:$0xff]
        %v2834 = vld [vmem:[%s2812 + $0xa8] sm:$0xff]
        %v2835 = vld [vmem:[%s2812 + $0xb0] sm:$0xff]
        %v2836 = vld [vmem:[%s2812 + $0xb8] sm:$0xff]
        %v2837 = vld [vmem:[%s2812 + $0xc0] sm:$0xff]
        %v2838 = vld [vmem:[%s2812 + $0xc8] sm:$0xff]
        %v2839 = vld [vmem:[%s2812 + $0xd0] sm:$0xff]
        %v2840 = vld [vmem:[%s2812 + $0xd8] sm:$0xff]
        %v2841 = vld [vmem:[%s2812 + $0xe0] sm:$0xff]
        %v2842 = vld [vmem:[%s2812 + $0xe8] sm:$0xff]
        %v2843 = vld [vmem:[%s2812 + $0xf0] sm:$0xff]
        %v2844 = vld [vmem:[%s2812 + $0xf8] sm:$0xff]
        %v2845 = vld [vmem:[%s2812 + $0x100] sm:$0xff]
        %v2846 = vld [vmem:[%s2812 + $0x108] sm:$0xff]
        %v2847 = vld [vmem:[%s2812 + $0x110] sm:$0xff]
        %v2848 = vld [vmem:[%s2812 + $0x118] sm:$0xff]
        %2849 = vmatprep.subr.mxu0 0.0
        %2850 = vmatpush1.msra.mxu0 %v272
        %2851 = vmatprep.subr.mxu0 0.0
        %2852 = vmatpush1.msra.mxu0 %v273
        %2853 = vmatprep.subr.mxu0 0.0
        %2854 = vmatpush1.msra.mxu0 %v274
        %2855 = vmatprep.subr.mxu0 0.0
        %2856 = vmatpush1.msra.mxu0 %v275
        %2857 = vmatprep.subr.mxu0 0.0
        %2858 = vmatpush1.msra.mxu0 %v276
        %2859 = vmatprep.subr.mxu0 0.0
        %2860 = vmatpush1.msra.mxu0 %v277
        %2861 = vmatprep.subr.mxu0 0.0
        %2862 = vmatpush1.msra.mxu0 %v278
        %2863 = vmatprep.subr.mxu0 0.0
        %2864 = vmatpush1.msra.mxu0 %v279
        %2865 = vmatprep.subr.mxu0 0.0
        %2866 = vmatpush1.msra.mxu0 %v280
        %2867 = vmatprep.subr.mxu0 0.0
        %2868 = vmatpush1.msra.mxu0 %v281
        %2869 = vmatprep.subr.mxu0 0.0
        %2870 = vmatpush1.msra.mxu0 %v282
        %2871 = vmatprep.subr.mxu0 0.0
        %2872 = vmatpush1.msra.mxu0 %v283
        %2873 = vmatprep.subr.mxu0 0.0
        %2874 = vmatpush1.msra.mxu0 %v284
        %2875 = vmatprep.subr.mxu0 0.0
        %2876 = vmatpush1.msra.mxu0 %v285
        %2877 = vmatprep.subr.mxu0 0.0
        %2878 = vmatpush1.msra.mxu0 %v286
        %2879 = vmatprep.subr.mxu0 0.0
        %2880 = vmatpush1.msra.mxu0 %v287
        %2881 = vmatprep.subr.mxu0 0.0
        %2882 = vmatpush1.msra.mxu0 %v288
        %2883 = vmatprep.subr.mxu0 0.0
        %2884 = vmatpush1.msra.mxu0 %v289
        %2885 = vmatprep.subr.mxu0 0.0
        %2886 = vmatpush1.msra.mxu0 %v290
        %2887 = vmatprep.subr.mxu0 0.0
        %2888 = vmatpush1.msra.mxu0 %v291
        %2889 = vmatprep.subr.mxu0 0.0
        %2890 = vmatpush1.msra.mxu0 %v292
        %2891 = vmatprep.subr.mxu0 0.0
        %2892 = vmatpush1.msra.mxu0 %v293
        %2893 = vmatprep.subr.mxu0 0.0
        %2894 = vmatpush1.msra.mxu0 %v294
        %2895 = vmatprep.subr.mxu0 0.0
        %2896 = vmatpush1.msra.mxu0 %v295
        %2897 = vmatprep.subr.mxu0 0.0
        %2898 = vmatpush1.msra.mxu0 %v296
        %2899 = vmatprep.subr.mxu0 0.0
        %2900 = vmatpush1.msra.mxu0 %v297
        %2901 = vmatprep.subr.mxu0 0.0
        %2902 = vmatpush1.msra.mxu0 %v298
        %2903 = vmatprep.subr.mxu0 0.0
        %2904 = vmatpush1.msra.mxu0 %v299
        %2905 = vmatprep.subr.mxu0 0.0
        %2906 = vmatpush1.msra.mxu0 %v300
        %2907 = vmatprep.subr.mxu0 0.0
        %2908 = vmatpush1.msra.mxu0 %v301
        %2909 = vmatprep.subr.mxu0 0.0
        %2910 = vmatpush1.msra.mxu0 %v302
        %2911 = vmatprep.subr.mxu0 0.0
        %2912 = vmatpush1.msra.mxu0 %v303
        %2913 = vmatprep.mubr.f32.mxu0 %v2814
        %2914 = vmatmul.mubr.f32.gmra.mrb[0].mxu0 %v2813
        %v2915 = vpop.f32.mrb[0].mxu0
        %v2916 = vadd.f32 0.0, %v2915
        %v2917 = vpop.f32.mrb[0].mxu0
        %2918 = vmatprep.mubr.f32.mxu0 %v2816
        %2919 = vmatmul.mubr.f32.gmra.mrb[0].mxu0 %v2815
        %v2920 = vpop.f32.mrb[0].mxu0
        %v2921 = vadd.f32 0.0, %v2920
        %v2922 = vpop.f32.mrb[0].mxu0
        %2923 = vmatprep.mubr.f32.mxu0 %v2818
        %2924 = vmatmul.mubr.f32.gmra.mrb[0].mxu0 %v2817
        %v2925 = vpop.f32.mrb[0].mxu0
        %v2926 = vadd.f32 0.0, %v2925
        %v2927 = vpop.f32.mrb[0].mxu0
        %2928 = vmatprep.mubr.f32.mxu0 %v2820
        %2929 = vmatmul.mubr.f32.gmra.mrb[0].mxu0 %v2819
        %v2930 = vpop.f32.mrb[0].mxu0
        %v2931 = vadd.f32 0.0, %v2930
        %v2932 = vpop.f32.mrb[0].mxu0
        %2933 = vmatprep.mubr.f32.mxu0 %v2822
        %2934 = vmatmul.mubr.f32.gmra.mrb[0].mxu0 %v2821
        %v2935 = vpop.f32.mrb[0].mxu0
        %v2936 = vadd.f32 0.0, %v2935
        %v2937 = vpop.f32.mrb[0].mxu0
        %2938 = vmatprep.mubr.f32.mxu0 %v2824
        %2939 = vmatmul.mubr.f32.gmra.mrb[0].mxu0 %v2823
        %v2940 = vpop.f32.mrb[0].mxu0
        %v2941 = vadd.f32 0.0, %v2940
        %v2942 = vpop.f32.mrb[0].mxu0
        %2943 = vmatprep.mubr.f32.mxu0 %v2826
        %2944 = vmatmul.mubr.f32.gmra.mrb[0].mxu0 %v2825
        %v2945 = vpop.f32.mrb[0].mxu0
        %v2946 = vadd.f32 0.0, %v2945
        %v2947 = vpop.f32.mrb[0].mxu0
        %2948 = vmatprep.mubr.f32.mxu0 %v2828
        %2949 = vmatmul.mubr.f32.gmra.mrb[0].mxu0 %v2827
        %v2950 = vpop.f32.mrb[0].mxu0
        %v2951 = vadd.f32 0.0, %v2950
        %v2952 = vpop.f32.mrb[0].mxu0
        %2953 = vmatprep.mubr.f32.mxu0 %v2830
        %2954 = vmatmul.mubr.f32.gmra.mrb[0].mxu0 %v2829
        %v2955 = vpop.f32.mrb[0].mxu0
        %v2956 = vadd.f32 0.0, %v2955
        %v2957 = vpop.f32.mrb[0].mxu0
        %2958 = vmatprep.mubr.f32.mxu0 %v2832
        %2959 = vmatmul.mubr.f32.gmra.mrb[0].mxu0 %v2831
        %v2960 = vpop.f32.mrb[0].mxu0
        %v2961 = vadd.f32 0.0, %v2960
        %v2962 = vpop.f32.mrb[0].mxu0
        %2963 = vmatprep.mubr.f32.mxu0 %v2834
        %2964 = vmatmul.mubr.f32.gmra.mrb[0].mxu0 %v2833
        %v2965 = vpop.f32.mrb[0].mxu0
        %v2966 = vadd.f32 0.0, %v2965
        %v2967 = vpop.f32.mrb[0].mxu0
        %2968 = vmatprep.mubr.f32.mxu0 %v2836
        %2969 = vmatmul.mubr.f32.gmra.mrb[0].mxu0 %v2835
        %v2970 = vpop.f32.mrb[0].mxu0
        %v2971 = vadd.f32 0.0, %v2970
        %v2972 = vpop.f32.mrb[0].mxu0
        %2973 = vmatprep.mubr.f32.mxu0 %v2838
        %2974 = vmatmul.mubr.f32.gmra.mrb[0].mxu0 %v2837
        %v2975 = vpop.f32.mrb[0].mxu0
        %v2976 = vadd.f32 0.0, %v2975
        %v2977 = vpop.f32.mrb[0].mxu0
        %2978 = vmatprep.mubr.f32.mxu0 %v2840
        %2979 = vmatmul.mubr.f32.gmra.mrb[0].mxu0 %v2839
        %v2980 = vpop.f32.mrb[0].mxu0
        %v2981 = vadd.f32 0.0, %v2980
        %v2982 = vpop.f32.mrb[0].mxu0
        %2983 = vmatprep.mubr.f32.mxu0 %v2842
        %2984 = vmatmul.mubr.f32.gmra.mrb[0].mxu0 %v2841
        %v2985 = vpop.f32.mrb[0].mxu0
        %v2986 = vadd.f32 0.0, %v2985
        %v2987 = vpop.f32.mrb[0].mxu0
        %2988 = vmatprep.mubr.f32.mxu0 %v2844
        %2989 = vmatmul.mubr.f32.gmra.mrb[0].mxu0 %v2843
        %v2990 = vpop.f32.mrb[0].mxu0
        %v2991 = vadd.f32 0.0, %v2990
        %v2992 = vpop.f32.mrb[0].mxu0
        %2993 = vmatprep.mubr.f32.mxu0 %v2846
        %2994 = vmatmul.mubr.f32.gmra.mrb[0].mxu0 %v2845
        %v2995 = vpop.f32.mrb[0].mxu0
        %v2996 = vadd.f32 0.0, %v2995
        %v2997 = vpop.f32.mrb[0].mxu0
        %2998 = vmatprep.mubr.f32.mxu0 %v2848
        %2999 = vmatmul.mubr.f32.gmra.mrb[0].mxu0 %v2847
        %v3000 = vpop.f32.mrb[0].mxu0
        %v3001 = vadd.f32 0.0, %v3000
        %v3002 = vpop.f32.mrb[0].mxu0
        %3003 = vdwg.mxu0
        %s3004 = scalar_lea.vmem [#allocation7], 24
        %v3005 = vld [vmem:[%s3004] sm:$0xf]
        %v3007 = vsel %vm690, %v2916, 0
        %v3010 = vsel %vm690, %v2921, 0
        %v3013 = vsel %vm690, %v2926, 0
        %v3016 = vsel %vm690, %v2931, 0
        %v3019 = vsel %vm690, %v2936, 0
        %v3022 = vsel %vm690, %v2941, 0
        %v3025 = vsel %vm690, %v2946, 0
        %v3028 = vsel %vm690, %v2951, 0
        %v3031 = vsel %vm690, %v2956, 0
        %v3034 = vsel %vm690, %v2961, 0
        %v3037 = vsel %vm690, %v2966, 0
        %v3040 = vsel %vm690, %v2971, 0
        %v3043 = vsel %vm690, %v2976, 0
        %v3046 = vsel %vm690, %v2981, 0
        %v3049 = vsel %vm690, %v2986, 0
        %v3052 = vsel %vm690, %v2991, 0
        %v3055 = vsel %vm690, %v2996, 0
        %v3058 = vsel %vm690, %v3001, 0
        %v3061 = vsel %vm745, %v3005, 0
        %3063 = vmatprep.subr.mxu0 0.0
        %3064 = vmatpush1.msra.mxu0 %v3061
        %3065 = vmatprep.subr.mxu0 0.0
        %3066 = vmatpush1.msra.mxu0 0.0
        %3067 = vmatprep.subr.mxu0 0.0
        %3068 = vmatpush1.msra.mxu0 0.0
        %3069 = vmatprep.subr.mxu0 0.0
        %3070 = vmatpush1.msra.mxu0 0.0
        %3071 = vmatprep.subr.mxu0 0.0
        %3072 = vmatpush1.msra.mxu0 0.0
        %3073 = vmatprep.subr.mxu0 0.0
        %3074 = vmatpush1.msra.mxu0 0.0
        %3075 = vmatprep.subr.mxu0 0.0
        %3076 = vmatpush1.msra.mxu0 0.0
        %3077 = vmatprep.subr.mxu0 0.0
        %3078 = vmatpush1.msra.mxu0 0.0
        %3079 = vmatprep.subr.mxu0 0.0
        %3080 = vmatpush1.msra.mxu0 0.0
        %3081 = vmatprep.subr.mxu0 0.0
        %3082 = vmatpush1.msra.mxu0 0.0
        %3083 = vmatprep.subr.mxu0 0.0
        %3084 = vmatpush1.msra.mxu0 0.0
        %3085 = vmatprep.subr.mxu0 0.0
        %3086 = vmatpush1.msra.mxu0 0.0
        %3087 = vmatprep.subr.mxu0 0.0
        %3088 = vmatpush1.msra.mxu0 0.0
        %3089 = vmatprep.subr.mxu0 0.0
        %3090 = vmatpush1.msra.mxu0 0.0
        %3091 = vmatprep.subr.mxu0 0.0
        %3092 = vmatpush1.msra.mxu0 0.0
        %3093 = vmatprep.subr.mxu0 0.0
        %3094 = vmatpush1.msra.mxu0 0.0
        %3095 = vmatprep.subr.mxu0 0.0
        %3096 = vmatpush1.msra.mxu0 0.0
        %3097 = vmatprep.subr.mxu0 0.0
        %3098 = vmatpush1.msra.mxu0 0.0
        %3099 = vmatprep.subr.mxu0 0.0
        %3100 = vmatpush1.msra.mxu0 0.0
        %3101 = vmatprep.subr.mxu0 0.0
        %3102 = vmatpush1.msra.mxu0 0.0
        %3103 = vmatprep.subr.mxu0 0.0
        %3104 = vmatpush1.msra.mxu0 0.0
        %3105 = vmatprep.subr.mxu0 0.0
        %3106 = vmatpush1.msra.mxu0 0.0
        %3107 = vmatprep.subr.mxu0 0.0
        %3108 = vmatpush1.msra.mxu0 0.0
        %3109 = vmatprep.subr.mxu0 0.0
        %3110 = vmatpush1.msra.mxu0 0.0
        %3111 = vmatprep.subr.mxu0 0.0
        %3112 = vmatpush1.msra.mxu0 0.0
        %3113 = vmatprep.subr.mxu0 0.0
        %3114 = vmatpush1.msra.mxu0 0.0
        %3115 = vmatprep.subr.mxu0 0.0
        %3116 = vmatpush1.msra.mxu0 0.0
        %3117 = vmatprep.subr.mxu0 0.0
        %3118 = vmatpush1.msra.mxu0 0.0
        %3119 = vmatprep.subr.mxu0 0.0
        %3120 = vmatpush1.msra.mxu0 0.0
        %3121 = vmatprep.subr.mxu0 0.0
        %3122 = vmatpush1.msra.mxu0 0.0
        %3123 = vmatprep.subr.mxu0 0.0
        %3124 = vmatpush1.msra.mxu0 0.0
        %3125 = vmatprep.subr.mxu0 0.0
        %3126 = vmatpush1.msra.mxu0 0.0
        %3127 = vmatprep.mubr.f32.mxu0 0.0
        %3128 = vmatmul.mubr.f32.gmra.mrb[0].mxu0 %v3007
        %v3129 = vpop.f32.mrb[0].mxu0
        %v3130 = vadd.f32 0.0, %v3129
        %v3131 = vpop.f32.mrb[0].mxu0
        %3132 = vmatprep.mubr.f32.mxu0 0.0
        %3133 = vmatmul.mubr.f32.gmra.mrb[0].mxu0 %v3010
        %v3134 = vpop.f32.mrb[0].mxu0
        %v3135 = vadd.f32 0.0, %v3134
        %v3136 = vpop.f32.mrb[0].mxu0
        %3137 = vmatprep.mubr.f32.mxu0 0.0
        %3138 = vmatmul.mubr.f32.gmra.mrb[0].mxu0 %v3013
        %v3139 = vpop.f32.mrb[0].mxu0
        %v3140 = vadd.f32 0.0, %v3139
        %v3141 = vpop.f32.mrb[0].mxu0
        %3142 = vmatprep.mubr.f32.mxu0 0.0
        %3143 = vmatmul.mubr.f32.gmra.mrb[0].mxu0 %v3016
        %v3144 = vpop.f32.mrb[0].mxu0
        %v3145 = vadd.f32 0.0, %v3144
        %v3146 = vpop.f32.mrb[0].mxu0
        %3147 = vmatprep.mubr.f32.mxu0 0.0
        %3148 = vmatmul.mubr.f32.gmra.mrb[0].mxu0 %v3019
        %v3149 = vpop.f32.mrb[0].mxu0
        %v3150 = vadd.f32 0.0, %v3149
        %v3151 = vpop.f32.mrb[0].mxu0
        %3152 = vmatprep.mubr.f32.mxu0 0.0
        %3153 = vmatmul.mubr.f32.gmra.mrb[0].mxu0 %v3022
        %v3154 = vpop.f32.mrb[0].mxu0
        %v3155 = vadd.f32 0.0, %v3154
        %v3156 = vpop.f32.mrb[0].mxu0
        %3157 = vmatprep.mubr.f32.mxu0 0.0
        %3158 = vmatmul.mubr.f32.gmra.mrb[0].mxu0 %v3025
        %v3159 = vpop.f32.mrb[0].mxu0
        %v3160 = vadd.f32 0.0, %v3159
        %v3161 = vpop.f32.mrb[0].mxu0
        %3162 = vmatprep.mubr.f32.mxu0 0.0
        %3163 = vmatmul.mubr.f32.gmra.mrb[0].mxu0 %v3028
        %v3164 = vpop.f32.mrb[0].mxu0
        %v3165 = vadd.f32 0.0, %v3164
        %v3166 = vpop.f32.mrb[0].mxu0
        %3167 = vmatprep.mubr.f32.mxu0 0.0
        %3168 = vmatmul.mubr.f32.gmra.mrb[0].mxu0 %v3031
        %v3169 = vpop.f32.mrb[0].mxu0
        %v3170 = vadd.f32 0.0, %v3169
        %v3171 = vpop.f32.mrb[0].mxu0
        %3172 = vmatprep.mubr.f32.mxu0 0.0
        %3173 = vmatmul.mubr.f32.gmra.mrb[0].mxu0 %v3034
        %v3174 = vpop.f32.mrb[0].mxu0
        %v3175 = vadd.f32 0.0, %v3174
        %v3176 = vpop.f32.mrb[0].mxu0
        %3177 = vmatprep.mubr.f32.mxu0 0.0
        %3178 = vmatmul.mubr.f32.gmra.mrb[0].mxu0 %v3037
        %v3179 = vpop.f32.mrb[0].mxu0
        %v3180 = vadd.f32 0.0, %v3179
        %v3181 = vpop.f32.mrb[0].mxu0
        %3182 = vmatprep.mubr.f32.mxu0 0.0
        %3183 = vmatmul.mubr.f32.gmra.mrb[0].mxu0 %v3040
        %v3184 = vpop.f32.mrb[0].mxu0
        %v3185 = vadd.f32 0.0, %v3184
        %v3186 = vpop.f32.mrb[0].mxu0
        %3187 = vmatprep.mubr.f32.mxu0 0.0
        %3188 = vmatmul.mubr.f32.gmra.mrb[0].mxu0 %v3043
        %v3189 = vpop.f32.mrb[0].mxu0
        %v3190 = vadd.f32 0.0, %v3189
        %v3191 = vpop.f32.mrb[0].mxu0
        %3192 = vmatprep.mubr.f32.mxu0 0.0
        %3193 = vmatmul.mubr.f32.gmra.mrb[0].mxu0 %v3046
        %v3194 = vpop.f32.mrb[0].mxu0
        %v3195 = vadd.f32 0.0, %v3194
        %v3196 = vpop.f32.mrb[0].mxu0
        %3197 = vmatprep.mubr.f32.mxu0 0.0
        %3198 = vmatmul.mubr.f32.gmra.mrb[0].mxu0 %v3049
        %v3199 = vpop.f32.mrb[0].mxu0
        %v3200 = vadd.f32 0.0, %v3199
        %v3201 = vpop.f32.mrb[0].mxu0
        %3202 = vmatprep.mubr.f32.mxu0 0.0
        %3203 = vmatmul.mubr.f32.gmra.mrb[0].mxu0 %v3052
        %v3204 = vpop.f32.mrb[0].mxu0
        %v3205 = vadd.f32 0.0, %v3204
        %v3206 = vpop.f32.mrb[0].mxu0
        %3207 = vmatprep.mubr.f32.mxu0 0.0
        %3208 = vmatmul.mubr.f32.gmra.mrb[0].mxu0 %v3055
        %v3209 = vpop.f32.mrb[0].mxu0
        %v3210 = vadd.f32 0.0, %v3209
        %v3211 = vpop.f32.mrb[0].mxu0
        %3212 = vmatprep.mubr.f32.mxu0 0.0
        %3213 = vmatmul.mubr.f32.gmra.mrb[0].mxu0 %v3058
        %v3214 = vpop.f32.mrb[0].mxu0
        %v3215 = vadd.f32 0.0, %v3214
        %v3216 = vpop.f32.mrb[0].mxu0
        %3217 = vdwg.mxu0
        %v3218 = vadd.f32 %v2794, %v3130
        %v3219 = vadd.f32 %v2795, %v3135
        %v3220 = vadd.f32 %v2796, %v3140
        %v3221 = vadd.f32 %v2797, %v3145
        %v3222 = vadd.f32 %v2798, %v3150
        %v3223 = vadd.f32 %v2799, %v3155
        %v3224 = vadd.f32 %v2800, %v3160
        %v3225 = vadd.f32 %v2801, %v3165
        %v3226 = vadd.f32 %v2802, %v3170
        %v3227 = vadd.f32 %v2803, %v3175
        %v3228 = vadd.f32 %v2804, %v3180
        %v3229 = vadd.f32 %v2805, %v3185
        %v3230 = vadd.f32 %v2806, %v3190
        %v3231 = vadd.f32 %v2807, %v3195
        %v3232 = vadd.f32 %v2808, %v3200
        %v3233 = vadd.f32 %v2809, %v3205
        %v3234 = vadd.f32 %v2810, %v3210
        %v3235 = vadd.f32 %v2811, %v3215
        %s3236 = scalar_lea.vmem [#allocation4], 2016
        %v3237 = vld [vmem:[%s3236] sm:$0xff]
        %v3238 = vld [vmem:[%s3236 + $0x8] sm:$0xff]
        %v3239 = vld [vmem:[%s3236 + $0x10] sm:$0xff]
        %v3240 = vld [vmem:[%s3236 + $0x18] sm:$0xff]
        %v3241 = vld [vmem:[%s3236 + $0x20] sm:$0xff]
        %v3242 = vld [vmem:[%s3236 + $0x28] sm:$0xff]
        %v3243 = vld [vmem:[%s3236 + $0x30] sm:$0xff]
        %v3244 = vld [vmem:[%s3236 + $0x38] sm:$0xff]
        %v3245 = vld [vmem:[%s3236 + $0x40] sm:$0xff]
        %v3246 = vld [vmem:[%s3236 + $0x48] sm:$0xff]
        %v3247 = vld [vmem:[%s3236 + $0x50] sm:$0xff]
        %v3248 = vld [vmem:[%s3236 + $0x58] sm:$0xff]
        %v3249 = vld [vmem:[%s3236 + $0x60] sm:$0xff]
        %v3250 = vld [vmem:[%s3236 + $0x68] sm:$0xff]
        %v3251 = vld [vmem:[%s3236 + $0x70] sm:$0xff]
        %v3252 = vld [vmem:[%s3236 + $0x78] sm:$0xff]
        %v3253 = vld [vmem:[%s3236 + $0x80] sm:$0xff]
        %v3254 = vld [vmem:[%s3236 + $0x88] sm:$0xff]
        %v3255 = vld [vmem:[%s3236 + $0x90] sm:$0xff]
        %v3256 = vld [vmem:[%s3236 + $0x98] sm:$0xff]
        %v3257 = vld [vmem:[%s3236 + $0xa0] sm:$0xff]
        %v3258 = vld [vmem:[%s3236 + $0xa8] sm:$0xff]
        %v3259 = vld [vmem:[%s3236 + $0xb0] sm:$0xff]
        %v3260 = vld [vmem:[%s3236 + $0xb8] sm:$0xff]
        %v3261 = vld [vmem:[%s3236 + $0xc0] sm:$0xff]
        %v3262 = vld [vmem:[%s3236 + $0xc8] sm:$0xff]
        %v3263 = vld [vmem:[%s3236 + $0xd0] sm:$0xff]
        %v3264 = vld [vmem:[%s3236 + $0xd8] sm:$0xff]
        %v3265 = vld [vmem:[%s3236 + $0xe0] sm:$0xff]
        %v3266 = vld [vmem:[%s3236 + $0xe8] sm:$0xff]
        %v3267 = vld [vmem:[%s3236 + $0xf0] sm:$0xff]
        %v3268 = vld [vmem:[%s3236 + $0xf8] sm:$0xff]
        %v3269 = vld [vmem:[%s3236 + $0x100] sm:$0xff]
        %v3270 = vld [vmem:[%s3236 + $0x108] sm:$0xff]
        %v3271 = vld [vmem:[%s3236 + $0x110] sm:$0xff]
        %v3272 = vld [vmem:[%s3236 + $0x118] sm:$0xff]
        %3273 = vmatprep.subr.mxu0 0.0
        %3274 = vmatpush1.msra.mxu0 %v272
        %3275 = vmatprep.subr.mxu0 0.0
        %3276 = vmatpush1.msra.mxu0 %v273
        %3277 = vmatprep.subr.mxu0 0.0
        %3278 = vmatpush1.msra.mxu0 %v274
        %3279 = vmatprep.subr.mxu0 0.0
        %3280 = vmatpush1.msra.mxu0 %v275
        %3281 = vmatprep.subr.mxu0 0.0
        %3282 = vmatpush1.msra.mxu0 %v276
        %3283 = vmatprep.subr.mxu0 0.0
        %3284 = vmatpush1.msra.mxu0 %v277
        %3285 = vmatprep.subr.mxu0 0.0
        %3286 = vmatpush1.msra.mxu0 %v278
        %3287 = vmatprep.subr.mxu0 0.0
        %3288 = vmatpush1.msra.mxu0 %v279
        %3289 = vmatprep.subr.mxu0 0.0
        %3290 = vmatpush1.msra.mxu0 %v280
        %3291 = vmatprep.subr.mxu0 0.0
        %3292 = vmatpush1.msra.mxu0 %v281
        %3293 = vmatprep.subr.mxu0 0.0
        %3294 = vmatpush1.msra.mxu0 %v282
        %3295 = vmatprep.subr.mxu0 0.0
        %3296 = vmatpush1.msra.mxu0 %v283
        %3297 = vmatprep.subr.mxu0 0.0
        %3298 = vmatpush1.msra.mxu0 %v284
        %3299 = vmatprep.subr.mxu0 0.0
        %3300 = vmatpush1.msra.mxu0 %v285
        %3301 = vmatprep.subr.mxu0 0.0
        %3302 = vmatpush1.msra.mxu0 %v286
        %3303 = vmatprep.subr.mxu0 0.0
        %3304 = vmatpush1.msra.mxu0 %v287
        %3305 = vmatprep.subr.mxu0 0.0
        %3306 = vmatpush1.msra.mxu0 %v288
        %3307 = vmatprep.subr.mxu0 0.0
        %3308 = vmatpush1.msra.mxu0 %v289
        %3309 = vmatprep.subr.mxu0 0.0
        %3310 = vmatpush1.msra.mxu0 %v290
        %3311 = vmatprep.subr.mxu0 0.0
        %3312 = vmatpush1.msra.mxu0 %v291
        %3313 = vmatprep.subr.mxu0 0.0
        %3314 = vmatpush1.msra.mxu0 %v292
        %3315 = vmatprep.subr.mxu0 0.0
        %3316 = vmatpush1.msra.mxu0 %v293
        %3317 = vmatprep.subr.mxu0 0.0
        %3318 = vmatpush1.msra.mxu0 %v294
        %3319 = vmatprep.subr.mxu0 0.0
        %3320 = vmatpush1.msra.mxu0 %v295
        %3321 = vmatprep.subr.mxu0 0.0
        %3322 = vmatpush1.msra.mxu0 %v296
        %3323 = vmatprep.subr.mxu0 0.0
        %3324 = vmatpush1.msra.mxu0 %v297
        %3325 = vmatprep.subr.mxu0 0.0
        %3326 = vmatpush1.msra.mxu0 %v298
        %3327 = vmatprep.subr.mxu0 0.0
        %3328 = vmatpush1.msra.mxu0 %v299
        %3329 = vmatprep.subr.mxu0 0.0
        %3330 = vmatpush1.msra.mxu0 %v300
        %3331 = vmatprep.subr.mxu0 0.0
        %3332 = vmatpush1.msra.mxu0 %v301
        %3333 = vmatprep.subr.mxu0 0.0
        %3334 = vmatpush1.msra.mxu0 %v302
        %3335 = vmatprep.subr.mxu0 0.0
        %3336 = vmatpush1.msra.mxu0 %v303
        %3337 = vmatprep.mubr.f32.mxu0 %v3238
        %3338 = vmatmul.mubr.f32.gmra.mrb[0].mxu0 %v3237
        %v3339 = vpop.f32.mrb[0].mxu0
        %v3340 = vadd.f32 0.0, %v3339
        %v3341 = vpop.f32.mrb[0].mxu0
        %3342 = vmatprep.mubr.f32.mxu0 %v3240
        %3343 = vmatmul.mubr.f32.gmra.mrb[0].mxu0 %v3239
        %v3344 = vpop.f32.mrb[0].mxu0
        %v3345 = vadd.f32 0.0, %v3344
        %v3346 = vpop.f32.mrb[0].mxu0
        %3347 = vmatprep.mubr.f32.mxu0 %v3242
        %3348 = vmatmul.mubr.f32.gmra.mrb[0].mxu0 %v3241
        %v3349 = vpop.f32.mrb[0].mxu0
        %v3350 = vadd.f32 0.0, %v3349
        %v3351 = vpop.f32.mrb[0].mxu0
        %3352 = vmatprep.mubr.f32.mxu0 %v3244
        %3353 = vmatmul.mubr.f32.gmra.mrb[0].mxu0 %v3243
        %v3354 = vpop.f32.mrb[0].mxu0
        %v3355 = vadd.f32 0.0, %v3354
        %v3356 = vpop.f32.mrb[0].mxu0
        %3357 = vmatprep.mubr.f32.mxu0 %v3246
        %3358 = vmatmul.mubr.f32.gmra.mrb[0].mxu0 %v3245
        %v3359 = vpop.f32.mrb[0].mxu0
        %v3360 = vadd.f32 0.0, %v3359
        %v3361 = vpop.f32.mrb[0].mxu0
        %3362 = vmatprep.mubr.f32.mxu0 %v3248
        %3363 = vmatmul.mubr.f32.gmra.mrb[0].mxu0 %v3247
        %v3364 = vpop.f32.mrb[0].mxu0
        %v3365 = vadd.f32 0.0, %v3364
        %v3366 = vpop.f32.mrb[0].mxu0
        %3367 = vmatprep.mubr.f32.mxu0 %v3250
        %3368 = vmatmul.mubr.f32.gmra.mrb[0].mxu0 %v3249
        %v3369 = vpop.f32.mrb[0].mxu0
        %v3370 = vadd.f32 0.0, %v3369
        %v3371 = vpop.f32.mrb[0].mxu0
        %3372 = vmatprep.mubr.f32.mxu0 %v3252
        %3373 = vmatmul.mubr.f32.gmra.mrb[0].mxu0 %v3251
        %v3374 = vpop.f32.mrb[0].mxu0
        %v3375 = vadd.f32 0.0, %v3374
        %v3376 = vpop.f32.mrb[0].mxu0
        %3377 = vmatprep.mubr.f32.mxu0 %v3254
        %3378 = vmatmul.mubr.f32.gmra.mrb[0].mxu0 %v3253
        %v3379 = vpop.f32.mrb[0].mxu0
        %v3380 = vadd.f32 0.0, %v3379
        %v3381 = vpop.f32.mrb[0].mxu0
        %3382 = vmatprep.mubr.f32.mxu0 %v3256
        %3383 = vmatmul.mubr.f32.gmra.mrb[0].mxu0 %v3255
        %v3384 = vpop.f32.mrb[0].mxu0
        %v3385 = vadd.f32 0.0, %v3384
        %v3386 = vpop.f32.mrb[0].mxu0
        %3387 = vmatprep.mubr.f32.mxu0 %v3258
        %3388 = vmatmul.mubr.f32.gmra.mrb[0].mxu0 %v3257
        %v3389 = vpop.f32.mrb[0].mxu0
        %v3390 = vadd.f32 0.0, %v3389
        %v3391 = vpop.f32.mrb[0].mxu0
        %3392 = vmatprep.mubr.f32.mxu0 %v3260
        %3393 = vmatmul.mubr.f32.gmra.mrb[0].mxu0 %v3259
        %v3394 = vpop.f32.mrb[0].mxu0
        %v3395 = vadd.f32 0.0, %v3394
        %v3396 = vpop.f32.mrb[0].mxu0
        %3397 = vmatprep.mubr.f32.mxu0 %v3262
        %3398 = vmatmul.mubr.f32.gmra.mrb[0].mxu0 %v3261
        %v3399 = vpop.f32.mrb[0].mxu0
        %v3400 = vadd.f32 0.0, %v3399
        %v3401 = vpop.f32.mrb[0].mxu0
        %3402 = vmatprep.mubr.f32.mxu0 %v3264
        %3403 = vmatmul.mubr.f32.gmra.mrb[0].mxu0 %v3263
        %v3404 = vpop.f32.mrb[0].mxu0
        %v3405 = vadd.f32 0.0, %v3404
        %v3406 = vpop.f32.mrb[0].mxu0
        %3407 = vmatprep.mubr.f32.mxu0 %v3266
        %3408 = vmatmul.mubr.f32.gmra.mrb[0].mxu0 %v3265
        %v3409 = vpop.f32.mrb[0].mxu0
        %v3410 = vadd.f32 0.0, %v3409
        %v3411 = vpop.f32.mrb[0].mxu0
        %3412 = vmatprep.mubr.f32.mxu0 %v3268
        %3413 = vmatmul.mubr.f32.gmra.mrb[0].mxu0 %v3267
        %v3414 = vpop.f32.mrb[0].mxu0
        %v3415 = vadd.f32 0.0, %v3414
        %v3416 = vpop.f32.mrb[0].mxu0
        %3417 = vmatprep.mubr.f32.mxu0 %v3270
        %3418 = vmatmul.mubr.f32.gmra.mrb[0].mxu0 %v3269
        %v3419 = vpop.f32.mrb[0].mxu0
        %v3420 = vadd.f32 0.0, %v3419
        %v3421 = vpop.f32.mrb[0].mxu0
        %3422 = vmatprep.mubr.f32.mxu0 %v3272
        %3423 = vmatmul.mubr.f32.gmra.mrb[0].mxu0 %v3271
        %v3424 = vpop.f32.mrb[0].mxu0
        %v3425 = vadd.f32 0.0, %v3424
        %v3426 = vpop.f32.mrb[0].mxu0
        %3427 = vdwg.mxu0
        %s3428 = scalar_lea.vmem [#allocation7], 28
        %v3429 = vld [vmem:[%s3428] sm:$0xf]
        %v3431 = vsel %vm690, %v3340, 0
        %v3434 = vsel %vm690, %v3345, 0
        %v3437 = vsel %vm690, %v3350, 0
        %v3440 = vsel %vm690, %v3355, 0
        %v3443 = vsel %vm690, %v3360, 0
        %v3446 = vsel %vm690, %v3365, 0
        %v3449 = vsel %vm690, %v3370, 0
        %v3452 = vsel %vm690, %v3375, 0
        %v3455 = vsel %vm690, %v3380, 0
        %v3458 = vsel %vm690, %v3385, 0
        %v3461 = vsel %vm690, %v3390, 0
        %v3464 = vsel %vm690, %v3395, 0
        %v3467 = vsel %vm690, %v3400, 0
        %v3470 = vsel %vm690, %v3405, 0
        %v3473 = vsel %vm690, %v3410, 0
        %v3476 = vsel %vm690, %v3415, 0
        %v3479 = vsel %vm690, %v3420, 0
        %v3482 = vsel %vm690, %v3425, 0
        %v3485 = vsel %vm745, %v3429, 0
        %3487 = vmatprep.subr.mxu0 0.0
        %3488 = vmatpush1.msra.mxu0 %v3485
        %3489 = vmatprep.subr.mxu0 0.0
        %3490 = vmatpush1.msra.mxu0 0.0
        %3491 = vmatprep.subr.mxu0 0.0
        %3492 = vmatpush1.msra.mxu0 0.0
        %3493 = vmatprep.subr.mxu0 0.0
        %3494 = vmatpush1.msra.mxu0 0.0
        %3495 = vmatprep.subr.mxu0 0.0
        %3496 = vmatpush1.msra.mxu0 0.0
        %3497 = vmatprep.subr.mxu0 0.0
        %3498 = vmatpush1.msra.mxu0 0.0
        %3499 = vmatprep.subr.mxu0 0.0
        %3500 = vmatpush1.msra.mxu0 0.0
        %3501 = vmatprep.subr.mxu0 0.0
        %3502 = vmatpush1.msra.mxu0 0.0
        %3503 = vmatprep.subr.mxu0 0.0
        %3504 = vmatpush1.msra.mxu0 0.0
        %3505 = vmatprep.subr.mxu0 0.0
        %3506 = vmatpush1.msra.mxu0 0.0
        %3507 = vmatprep.subr.mxu0 0.0
        %3508 = vmatpush1.msra.mxu0 0.0
        %3509 = vmatprep.subr.mxu0 0.0
        %3510 = vmatpush1.msra.mxu0 0.0
        %3511 = vmatprep.subr.mxu0 0.0
        %3512 = vmatpush1.msra.mxu0 0.0
        %3513 = vmatprep.subr.mxu0 0.0
        %3514 = vmatpush1.msra.mxu0 0.0
        %3515 = vmatprep.subr.mxu0 0.0
        %3516 = vmatpush1.msra.mxu0 0.0
        %3517 = vmatprep.subr.mxu0 0.0
        %3518 = vmatpush1.msra.mxu0 0.0
        %3519 = vmatprep.subr.mxu0 0.0
        %3520 = vmatpush1.msra.mxu0 0.0
        %3521 = vmatprep.subr.mxu0 0.0
        %3522 = vmatpush1.msra.mxu0 0.0
        %3523 = vmatprep.subr.mxu0 0.0
        %3524 = vmatpush1.msra.mxu0 0.0
        %3525 = vmatprep.subr.mxu0 0.0
        %3526 = vmatpush1.msra.mxu0 0.0
        %3527 = vmatprep.subr.mxu0 0.0
        %3528 = vmatpush1.msra.mxu0 0.0
        %3529 = vmatprep.subr.mxu0 0.0
        %3530 = vmatpush1.msra.mxu0 0.0
        %3531 = vmatprep.subr.mxu0 0.0
        %3532 = vmatpush1.msra.mxu0 0.0
        %3533 = vmatprep.subr.mxu0 0.0
        %3534 = vmatpush1.msra.mxu0 0.0
        %3535 = vmatprep.subr.mxu0 0.0
        %3536 = vmatpush1.msra.mxu0 0.0
        %3537 = vmatprep.subr.mxu0 0.0
        %3538 = vmatpush1.msra.mxu0 0.0
        %3539 = vmatprep.subr.mxu0 0.0
        %3540 = vmatpush1.msra.mxu0 0.0
        %3541 = vmatprep.subr.mxu0 0.0
        %3542 = vmatpush1.msra.mxu0 0.0
        %3543 = vmatprep.subr.mxu0 0.0
        %3544 = vmatpush1.msra.mxu0 0.0
        %3545 = vmatprep.subr.mxu0 0.0
        %3546 = vmatpush1.msra.mxu0 0.0
        %3547 = vmatprep.subr.mxu0 0.0
        %3548 = vmatpush1.msra.mxu0 0.0
        %3549 = vmatprep.subr.mxu0 0.0
        %3550 = vmatpush1.msra.mxu0 0.0
        %3551 = vmatprep.mubr.f32.mxu0 0.0
        %3552 = vmatmul.mubr.f32.gmra.mrb[0].mxu0 %v3431
        %v3553 = vpop.f32.mrb[0].mxu0
        %v3554 = vadd.f32 0.0, %v3553
        %v3555 = vpop.f32.mrb[0].mxu0
        %3556 = vmatprep.mubr.f32.mxu0 0.0
        %3557 = vmatmul.mubr.f32.gmra.mrb[0].mxu0 %v3434
        %v3558 = vpop.f32.mrb[0].mxu0
        %v3559 = vadd.f32 0.0, %v3558
        %v3560 = vpop.f32.mrb[0].mxu0
        %3561 = vmatprep.mubr.f32.mxu0 0.0
        %3562 = vmatmul.mubr.f32.gmra.mrb[0].mxu0 %v3437
        %v3563 = vpop.f32.mrb[0].mxu0
        %v3564 = vadd.f32 0.0, %v3563
        %v3565 = vpop.f32.mrb[0].mxu0
        %3566 = vmatprep.mubr.f32.mxu0 0.0
        %3567 = vmatmul.mubr.f32.gmra.mrb[0].mxu0 %v3440
        %v3568 = vpop.f32.mrb[0].mxu0
        %v3569 = vadd.f32 0.0, %v3568
        %v3570 = vpop.f32.mrb[0].mxu0
        %3571 = vmatprep.mubr.f32.mxu0 0.0
        %3572 = vmatmul.mubr.f32.gmra.mrb[0].mxu0 %v3443
        %v3573 = vpop.f32.mrb[0].mxu0
        %v3574 = vadd.f32 0.0, %v3573
        %v3575 = vpop.f32.mrb[0].mxu0
        %3576 = vmatprep.mubr.f32.mxu0 0.0
        %3577 = vmatmul.mubr.f32.gmra.mrb[0].mxu0 %v3446
        %v3578 = vpop.f32.mrb[0].mxu0
        %v3579 = vadd.f32 0.0, %v3578
        %v3580 = vpop.f32.mrb[0].mxu0
        %3581 = vmatprep.mubr.f32.mxu0 0.0
        %3582 = vmatmul.mubr.f32.gmra.mrb[0].mxu0 %v3449
        %v3583 = vpop.f32.mrb[0].mxu0
        %v3584 = vadd.f32 0.0, %v3583
        %v3585 = vpop.f32.mrb[0].mxu0
        %3586 = vmatprep.mubr.f32.mxu0 0.0
        %3587 = vmatmul.mubr.f32.gmra.mrb[0].mxu0 %v3452
        %v3588 = vpop.f32.mrb[0].mxu0
        %v3589 = vadd.f32 0.0, %v3588
        %v3590 = vpop.f32.mrb[0].mxu0
        %3591 = vmatprep.mubr.f32.mxu0 0.0
        %3592 = vmatmul.mubr.f32.gmra.mrb[0].mxu0 %v3455
        %v3593 = vpop.f32.mrb[0].mxu0
        %v3594 = vadd.f32 0.0, %v3593
        %v3595 = vpop.f32.mrb[0].mxu0
        %3596 = vmatprep.mubr.f32.mxu0 0.0
        %3597 = vmatmul.mubr.f32.gmra.mrb[0].mxu0 %v3458
        %v3598 = vpop.f32.mrb[0].mxu0
        %v3599 = vadd.f32 0.0, %v3598
        %v3600 = vpop.f32.mrb[0].mxu0
        %3601 = vmatprep.mubr.f32.mxu0 0.0
        %3602 = vmatmul.mubr.f32.gmra.mrb[0].mxu0 %v3461
        %v3603 = vpop.f32.mrb[0].mxu0
        %v3604 = vadd.f32 0.0, %v3603
        %v3605 = vpop.f32.mrb[0].mxu0
        %3606 = vmatprep.mubr.f32.mxu0 0.0
        %3607 = vmatmul.mubr.f32.gmra.mrb[0].mxu0 %v3464
        %v3608 = vpop.f32.mrb[0].mxu0
        %v3609 = vadd.f32 0.0, %v3608
        %v3610 = vpop.f32.mrb[0].mxu0
        %3611 = vmatprep.mubr.f32.mxu0 0.0
        %3612 = vmatmul.mubr.f32.gmra.mrb[0].mxu0 %v3467
        %v3613 = vpop.f32.mrb[0].mxu0
        %v3614 = vadd.f32 0.0, %v3613
        %v3615 = vpop.f32.mrb[0].mxu0
        %3616 = vmatprep.mubr.f32.mxu0 0.0
        %3617 = vmatmul.mubr.f32.gmra.mrb[0].mxu0 %v3470
        %v3618 = vpop.f32.mrb[0].mxu0
        %v3619 = vadd.f32 0.0, %v3618
        %v3620 = vpop.f32.mrb[0].mxu0
        %3621 = vmatprep.mubr.f32.mxu0 0.0
        %3622 = vmatmul.mubr.f32.gmra.mrb[0].mxu0 %v3473
        %v3623 = vpop.f32.mrb[0].mxu0
        %v3624 = vadd.f32 0.0, %v3623
        %v3625 = vpop.f32.mrb[0].mxu0
        %3626 = vmatprep.mubr.f32.mxu0 0.0
        %3627 = vmatmul.mubr.f32.gmra.mrb[0].mxu0 %v3476
        %v3628 = vpop.f32.mrb[0].mxu0
        %v3629 = vadd.f32 0.0, %v3628
        %v3630 = vpop.f32.mrb[0].mxu0
        %3631 = vmatprep.mubr.f32.mxu0 0.0
        %3632 = vmatmul.mubr.f32.gmra.mrb[0].mxu0 %v3479
        %v3633 = vpop.f32.mrb[0].mxu0
        %v3634 = vadd.f32 0.0, %v3633
        %v3635 = vpop.f32.mrb[0].mxu0
        %3636 = vmatprep.mubr.f32.mxu0 0.0
        %3637 = vmatmul.mubr.f32.gmra.mrb[0].mxu0 %v3482
        %v3638 = vpop.f32.mrb[0].mxu0
        %v3639 = vadd.f32 0.0, %v3638
        %v3640 = vpop.f32.mrb[0].mxu0
        %3641 = vdwg.mxu0
        %v3642 = vadd.f32 %v3218, %v3554
        %v3643 = vadd.f32 %v3219, %v3559
        %v3644 = vadd.f32 %v3220, %v3564
        %v3645 = vadd.f32 %v3221, %v3569
        %v3646 = vadd.f32 %v3222, %v3574
        %v3647 = vadd.f32 %v3223, %v3579
        %v3648 = vadd.f32 %v3224, %v3584
        %v3649 = vadd.f32 %v3225, %v3589
        %v3650 = vadd.f32 %v3226, %v3594
        %v3651 = vadd.f32 %v3227, %v3599
        %v3652 = vadd.f32 %v3228, %v3604
        %v3653 = vadd.f32 %v3229, %v3609
        %v3654 = vadd.f32 %v3230, %v3614
        %v3655 = vadd.f32 %v3231, %v3619
        %v3656 = vadd.f32 %v3232, %v3624
        %v3657 = vadd.f32 %v3233, %v3629
        %v3658 = vadd.f32 %v3234, %v3634
        %v3659 = vadd.f32 %v3235, %v3639
        %s3660 = scalar_lea.vmem [#allocation4], 2304
        %v3661 = vld [vmem:[%s3660] sm:$0xff]
        %v3662 = vld [vmem:[%s3660 + $0x8] sm:$0xff]
        %v3663 = vld [vmem:[%s3660 + $0x10] sm:$0xff]
        %v3664 = vld [vmem:[%s3660 + $0x18] sm:$0xff]
        %v3665 = vld [vmem:[%s3660 + $0x20] sm:$0xff]
        %v3666 = vld [vmem:[%s3660 + $0x28] sm:$0xff]
        %v3667 = vld [vmem:[%s3660 + $0x30] sm:$0xff]
        %v3668 = vld [vmem:[%s3660 + $0x38] sm:$0xff]
        %v3669 = vld [vmem:[%s3660 + $0x40] sm:$0xff]
        %v3670 = vld [vmem:[%s3660 + $0x48] sm:$0xff]
        %v3671 = vld [vmem:[%s3660 + $0x50] sm:$0xff]
        %v3672 = vld [vmem:[%s3660 + $0x58] sm:$0xff]
        %v3673 = vld [vmem:[%s3660 + $0x60] sm:$0xff]
        %v3674 = vld [vmem:[%s3660 + $0x68] sm:$0xff]
        %v3675 = vld [vmem:[%s3660 + $0x70] sm:$0xff]
        %v3676 = vld [vmem:[%s3660 + $0x78] sm:$0xff]
        %v3677 = vld [vmem:[%s3660 + $0x80] sm:$0xff]
        %v3678 = vld [vmem:[%s3660 + $0x88] sm:$0xff]
        %v3679 = vld [vmem:[%s3660 + $0x90] sm:$0xff]
        %v3680 = vld [vmem:[%s3660 + $0x98] sm:$0xff]
        %v3681 = vld [vmem:[%s3660 + $0xa0] sm:$0xff]
        %v3682 = vld [vmem:[%s3660 + $0xa8] sm:$0xff]
        %v3683 = vld [vmem:[%s3660 + $0xb0] sm:$0xff]
        %v3684 = vld [vmem:[%s3660 + $0xb8] sm:$0xff]
        %v3685 = vld [vmem:[%s3660 + $0xc0] sm:$0xff]
        %v3686 = vld [vmem:[%s3660 + $0xc8] sm:$0xff]
        %v3687 = vld [vmem:[%s3660 + $0xd0] sm:$0xff]
        %v3688 = vld [vmem:[%s3660 + $0xd8] sm:$0xff]
        %v3689 = vld [vmem:[%s3660 + $0xe0] sm:$0xff]
        %v3690 = vld [vmem:[%s3660 + $0xe8] sm:$0xff]
        %v3691 = vld [vmem:[%s3660 + $0xf0] sm:$0xff]
        %v3692 = vld [vmem:[%s3660 + $0xf8] sm:$0xff]
        %v3693 = vld [vmem:[%s3660 + $0x100] sm:$0xff]
        %v3694 = vld [vmem:[%s3660 + $0x108] sm:$0xff]
        %v3695 = vld [vmem:[%s3660 + $0x110] sm:$0xff]
        %v3696 = vld [vmem:[%s3660 + $0x118] sm:$0xff]
        %3697 = vmatprep.subr.mxu0 0.0
        %3698 = vmatpush1.msra.mxu0 %v272
        %3699 = vmatprep.subr.mxu0 0.0
        %3700 = vmatpush1.msra.mxu0 %v273
        %3701 = vmatprep.subr.mxu0 0.0
        %3702 = vmatpush1.msra.mxu0 %v274
        %3703 = vmatprep.subr.mxu0 0.0
        %3704 = vmatpush1.msra.mxu0 %v275
        %3705 = vmatprep.subr.mxu0 0.0
        %3706 = vmatpush1.msra.mxu0 %v276
        %3707 = vmatprep.subr.mxu0 0.0
        %3708 = vmatpush1.msra.mxu0 %v277
        %3709 = vmatprep.subr.mxu0 0.0
        %3710 = vmatpush1.msra.mxu0 %v278
        %3711 = vmatprep.subr.mxu0 0.0
        %3712 = vmatpush1.msra.mxu0 %v279
        %3713 = vmatprep.subr.mxu0 0.0
        %3714 = vmatpush1.msra.mxu0 %v280
        %3715 = vmatprep.subr.mxu0 0.0
        %3716 = vmatpush1.msra.mxu0 %v281
        %3717 = vmatprep.subr.mxu0 0.0
        %3718 = vmatpush1.msra.mxu0 %v282
        %3719 = vmatprep.subr.mxu0 0.0
        %3720 = vmatpush1.msra.mxu0 %v283
        %3721 = vmatprep.subr.mxu0 0.0
        %3722 = vmatpush1.msra.mxu0 %v284
        %3723 = vmatprep.subr.mxu0 0.0
        %3724 = vmatpush1.msra.mxu0 %v285
        %3725 = vmatprep.subr.mxu0 0.0
        %3726 = vmatpush1.msra.mxu0 %v286
        %3727 = vmatprep.subr.mxu0 0.0
        %3728 = vmatpush1.msra.mxu0 %v287
        %3729 = vmatprep.subr.mxu0 0.0
        %3730 = vmatpush1.msra.mxu0 %v288
        %3731 = vmatprep.subr.mxu0 0.0
        %3732 = vmatpush1.msra.mxu0 %v289
        %3733 = vmatprep.subr.mxu0 0.0
        %3734 = vmatpush1.msra.mxu0 %v290
        %3735 = vmatprep.subr.mxu0 0.0
        %3736 = vmatpush1.msra.mxu0 %v291
        %3737 = vmatprep.subr.mxu0 0.0
        %3738 = vmatpush1.msra.mxu0 %v292
        %3739 = vmatprep.subr.mxu0 0.0
        %3740 = vmatpush1.msra.mxu0 %v293
        %3741 = vmatprep.subr.mxu0 0.0
        %3742 = vmatpush1.msra.mxu0 %v294
        %3743 = vmatprep.subr.mxu0 0.0
        %3744 = vmatpush1.msra.mxu0 %v295
        %3745 = vmatprep.subr.mxu0 0.0
        %3746 = vmatpush1.msra.mxu0 %v296
        %3747 = vmatprep.subr.mxu0 0.0
        %3748 = vmatpush1.msra.mxu0 %v297
        %3749 = vmatprep.subr.mxu0 0.0
        %3750 = vmatpush1.msra.mxu0 %v298
        %3751 = vmatprep.subr.mxu0 0.0
        %3752 = vmatpush1.msra.mxu0 %v299
        %3753 = vmatprep.subr.mxu0 0.0
        %3754 = vmatpush1.msra.mxu0 %v300
        %3755 = vmatprep.subr.mxu0 0.0
        %3756 = vmatpush1.msra.mxu0 %v301
        %3757 = vmatprep.subr.mxu0 0.0
        %3758 = vmatpush1.msra.mxu0 %v302
        %3759 = vmatprep.subr.mxu0 0.0
        %3760 = vmatpush1.msra.mxu0 %v303
        %3761 = vmatprep.mubr.f32.mxu0 %v3662
        %3762 = vmatmul.mubr.f32.gmra.mrb[0].mxu0 %v3661
        %v3763 = vpop.f32.mrb[0].mxu0
        %v3764 = vadd.f32 0.0, %v3763
        %v3765 = vpop.f32.mrb[0].mxu0
        %3766 = vmatprep.mubr.f32.mxu0 %v3664
        %3767 = vmatmul.mubr.f32.gmra.mrb[0].mxu0 %v3663
        %v3768 = vpop.f32.mrb[0].mxu0
        %v3769 = vadd.f32 0.0, %v3768
        %v3770 = vpop.f32.mrb[0].mxu0
        %3771 = vmatprep.mubr.f32.mxu0 %v3666
        %3772 = vmatmul.mubr.f32.gmra.mrb[0].mxu0 %v3665
        %v3773 = vpop.f32.mrb[0].mxu0
        %v3774 = vadd.f32 0.0, %v3773
        %v3775 = vpop.f32.mrb[0].mxu0
        %3776 = vmatprep.mubr.f32.mxu0 %v3668
        %3777 = vmatmul.mubr.f32.gmra.mrb[0].mxu0 %v3667
        %v3778 = vpop.f32.mrb[0].mxu0
        %v3779 = vadd.f32 0.0, %v3778
        %v3780 = vpop.f32.mrb[0].mxu0
        %3781 = vmatprep.mubr.f32.mxu0 %v3670
        %3782 = vmatmul.mubr.f32.gmra.mrb[0].mxu0 %v3669
        %v3783 = vpop.f32.mrb[0].mxu0
        %v3784 = vadd.f32 0.0, %v3783
        %v3785 = vpop.f32.mrb[0].mxu0
        %3786 = vmatprep.mubr.f32.mxu0 %v3672
        %3787 = vmatmul.mubr.f32.gmra.mrb[0].mxu0 %v3671
        %v3788 = vpop.f32.mrb[0].mxu0
        %v3789 = vadd.f32 0.0, %v3788
        %v3790 = vpop.f32.mrb[0].mxu0
        %3791 = vmatprep.mubr.f32.mxu0 %v3674
        %3792 = vmatmul.mubr.f32.gmra.mrb[0].mxu0 %v3673
        %v3793 = vpop.f32.mrb[0].mxu0
        %v3794 = vadd.f32 0.0, %v3793
        %v3795 = vpop.f32.mrb[0].mxu0
        %3796 = vmatprep.mubr.f32.mxu0 %v3676
        %3797 = vmatmul.mubr.f32.gmra.mrb[0].mxu0 %v3675
        %v3798 = vpop.f32.mrb[0].mxu0
        %v3799 = vadd.f32 0.0, %v3798
        %v3800 = vpop.f32.mrb[0].mxu0
        %3801 = vmatprep.mubr.f32.mxu0 %v3678
        %3802 = vmatmul.mubr.f32.gmra.mrb[0].mxu0 %v3677
        %v3803 = vpop.f32.mrb[0].mxu0
        %v3804 = vadd.f32 0.0, %v3803
        %v3805 = vpop.f32.mrb[0].mxu0
        %3806 = vmatprep.mubr.f32.mxu0 %v3680
        %3807 = vmatmul.mubr.f32.gmra.mrb[0].mxu0 %v3679
        %v3808 = vpop.f32.mrb[0].mxu0
        %v3809 = vadd.f32 0.0, %v3808
        %v3810 = vpop.f32.mrb[0].mxu0
        %3811 = vmatprep.mubr.f32.mxu0 %v3682
        %3812 = vmatmul.mubr.f32.gmra.mrb[0].mxu0 %v3681
        %v3813 = vpop.f32.mrb[0].mxu0
        %v3814 = vadd.f32 0.0, %v3813
        %v3815 = vpop.f32.mrb[0].mxu0
        %3816 = vmatprep.mubr.f32.mxu0 %v3684
        %3817 = vmatmul.mubr.f32.gmra.mrb[0].mxu0 %v3683
        %v3818 = vpop.f32.mrb[0].mxu0
        %v3819 = vadd.f32 0.0, %v3818
        %v3820 = vpop.f32.mrb[0].mxu0
        %3821 = vmatprep.mubr.f32.mxu0 %v3686
        %3822 = vmatmul.mubr.f32.gmra.mrb[0].mxu0 %v3685
        %v3823 = vpop.f32.mrb[0].mxu0
        %v3824 = vadd.f32 0.0, %v3823
        %v3825 = vpop.f32.mrb[0].mxu0
        %3826 = vmatprep.mubr.f32.mxu0 %v3688
        %3827 = vmatmul.mubr.f32.gmra.mrb[0].mxu0 %v3687
        %v3828 = vpop.f32.mrb[0].mxu0
        %v3829 = vadd.f32 0.0, %v3828
        %v3830 = vpop.f32.mrb[0].mxu0
        %3831 = vmatprep.mubr.f32.mxu0 %v3690
        %3832 = vmatmul.mubr.f32.gmra.mrb[0].mxu0 %v3689
        %v3833 = vpop.f32.mrb[0].mxu0
        %v3834 = vadd.f32 0.0, %v3833
        %v3835 = vpop.f32.mrb[0].mxu0
        %3836 = vmatprep.mubr.f32.mxu0 %v3692
        %3837 = vmatmul.mubr.f32.gmra.mrb[0].mxu0 %v3691
        %v3838 = vpop.f32.mrb[0].mxu0
        %v3839 = vadd.f32 0.0, %v3838
        %v3840 = vpop.f32.mrb[0].mxu0
        %3841 = vmatprep.mubr.f32.mxu0 %v3694
        %3842 = vmatmul.mubr.f32.gmra.mrb[0].mxu0 %v3693
        %v3843 = vpop.f32.mrb[0].mxu0
        %v3844 = vadd.f32 0.0, %v3843
        %v3845 = vpop.f32.mrb[0].mxu0
        %3846 = vmatprep.mubr.f32.mxu0 %v3696
        %3847 = vmatmul.mubr.f32.gmra.mrb[0].mxu0 %v3695
        %v3848 = vpop.f32.mrb[0].mxu0
        %v3849 = vadd.f32 0.0, %v3848
        %v3850 = vpop.f32.mrb[0].mxu0
        %3851 = vdwg.mxu0
        %s3852 = scalar_lea.vmem [#allocation7], 32
        %v3853 = vld [vmem:[%s3852] sm:$0xf]
        %v3855 = vsel %vm690, %v3764, 0
        %v3858 = vsel %vm690, %v3769, 0
        %v3861 = vsel %vm690, %v3774, 0
        %v3864 = vsel %vm690, %v3779, 0
        %v3867 = vsel %vm690, %v3784, 0
        %v3870 = vsel %vm690, %v3789, 0
        %v3873 = vsel %vm690, %v3794, 0
        %v3876 = vsel %vm690, %v3799, 0
        %v3879 = vsel %vm690, %v3804, 0
        %v3882 = vsel %vm690, %v3809, 0
        %v3885 = vsel %vm690, %v3814, 0
        %v3888 = vsel %vm690, %v3819, 0
        %v3891 = vsel %vm690, %v3824, 0
        %v3894 = vsel %vm690, %v3829, 0
        %v3897 = vsel %vm690, %v3834, 0
        %v3900 = vsel %vm690, %v3839, 0
        %v3903 = vsel %vm690, %v3844, 0
        %v3906 = vsel %vm690, %v3849, 0
        %v3909 = vsel %vm745, %v3853, 0
        %3911 = vmatprep.subr.mxu0 0.0
        %3912 = vmatpush1.msra.mxu0 %v3909
        %3913 = vmatprep.subr.mxu0 0.0
        %3914 = vmatpush1.msra.mxu0 0.0
        %3915 = vmatprep.subr.mxu0 0.0
        %3916 = vmatpush1.msra.mxu0 0.0
        %3917 = vmatprep.subr.mxu0 0.0
        %3918 = vmatpush1.msra.mxu0 0.0
        %3919 = vmatprep.subr.mxu0 0.0
        %3920 = vmatpush1.msra.mxu0 0.0
        %3921 = vmatprep.subr.mxu0 0.0
        %3922 = vmatpush1.msra.mxu0 0.0
        %3923 = vmatprep.subr.mxu0 0.0
        %3924 = vmatpush1.msra.mxu0 0.0
        %3925 = vmatprep.subr.mxu0 0.0
        %3926 = vmatpush1.msra.mxu0 0.0
        %3927 = vmatprep.subr.mxu0 0.0
        %3928 = vmatpush1.msra.mxu0 0.0
        %3929 = vmatprep.subr.mxu0 0.0
        %3930 = vmatpush1.msra.mxu0 0.0
        %3931 = vmatprep.subr.mxu0 0.0
        %3932 = vmatpush1.msra.mxu0 0.0
        %3933 = vmatprep.subr.mxu0 0.0
        %3934 = vmatpush1.msra.mxu0 0.0
        %3935 = vmatprep.subr.mxu0 0.0
        %3936 = vmatpush1.msra.mxu0 0.0
        %3937 = vmatprep.subr.mxu0 0.0
        %3938 = vmatpush1.msra.mxu0 0.0
        %3939 = vmatprep.subr.mxu0 0.0
        %3940 = vmatpush1.msra.mxu0 0.0
        %3941 = vmatprep.subr.mxu0 0.0
        %3942 = vmatpush1.msra.mxu0 0.0
        %3943 = vmatprep.subr.mxu0 0.0
        %3944 = vmatpush1.msra.mxu0 0.0
        %3945 = vmatprep.subr.mxu0 0.0
        %3946 = vmatpush1.msra.mxu0 0.0
        %3947 = vmatprep.subr.mxu0 0.0
        %3948 = vmatpush1.msra.mxu0 0.0
        %3949 = vmatprep.subr.mxu0 0.0
        %3950 = vmatpush1.msra.mxu0 0.0
        %3951 = vmatprep.subr.mxu0 0.0
        %3952 = vmatpush1.msra.mxu0 0.0
        %3953 = vmatprep.subr.mxu0 0.0
        %3954 = vmatpush1.msra.mxu0 0.0
        %3955 = vmatprep.subr.mxu0 0.0
        %3956 = vmatpush1.msra.mxu0 0.0
        %3957 = vmatprep.subr.mxu0 0.0
        %3958 = vmatpush1.msra.mxu0 0.0
        %3959 = vmatprep.subr.mxu0 0.0
        %3960 = vmatpush1.msra.mxu0 0.0
        %3961 = vmatprep.subr.mxu0 0.0
        %3962 = vmatpush1.msra.mxu0 0.0
        %3963 = vmatprep.subr.mxu0 0.0
        %3964 = vmatpush1.msra.mxu0 0.0
        %3965 = vmatprep.subr.mxu0 0.0
        %3966 = vmatpush1.msra.mxu0 0.0
        %3967 = vmatprep.subr.mxu0 0.0
        %3968 = vmatpush1.msra.mxu0 0.0
        %3969 = vmatprep.subr.mxu0 0.0
        %3970 = vmatpush1.msra.mxu0 0.0
        %3971 = vmatprep.subr.mxu0 0.0
        %3972 = vmatpush1.msra.mxu0 0.0
        %3973 = vmatprep.subr.mxu0 0.0
        %3974 = vmatpush1.msra.mxu0 0.0
        %3975 = vmatprep.mubr.f32.mxu0 0.0
        %3976 = vmatmul.mubr.f32.gmra.mrb[0].mxu0 %v3855
        %v3977 = vpop.f32.mrb[0].mxu0
        %v3978 = vadd.f32 0.0, %v3977
        %v3979 = vpop.f32.mrb[0].mxu0
        %3980 = vmatprep.mubr.f32.mxu0 0.0
        %3981 = vmatmul.mubr.f32.gmra.mrb[0].mxu0 %v3858
        %v3982 = vpop.f32.mrb[0].mxu0
        %v3983 = vadd.f32 0.0, %v3982
        %v3984 = vpop.f32.mrb[0].mxu0
        %3985 = vmatprep.mubr.f32.mxu0 0.0
        %3986 = vmatmul.mubr.f32.gmra.mrb[0].mxu0 %v3861
        %v3987 = vpop.f32.mrb[0].mxu0
        %v3988 = vadd.f32 0.0, %v3987
        %v3989 = vpop.f32.mrb[0].mxu0
        %3990 = vmatprep.mubr.f32.mxu0 0.0
        %3991 = vmatmul.mubr.f32.gmra.mrb[0].mxu0 %v3864
        %v3992 = vpop.f32.mrb[0].mxu0
        %v3993 = vadd.f32 0.0, %v3992
        %v3994 = vpop.f32.mrb[0].mxu0
        %3995 = vmatprep.mubr.f32.mxu0 0.0
        %3996 = vmatmul.mubr.f32.gmra.mrb[0].mxu0 %v3867
        %v3997 = vpop.f32.mrb[0].mxu0
        %v3998 = vadd.f32 0.0, %v3997
        %v3999 = vpop.f32.mrb[0].mxu0
        %4000 = vmatprep.mubr.f32.mxu0 0.0
        %4001 = vmatmul.mubr.f32.gmra.mrb[0].mxu0 %v3870
        %v4002 = vpop.f32.mrb[0].mxu0
        %v4003 = vadd.f32 0.0, %v4002
        %v4004 = vpop.f32.mrb[0].mxu0
        %4005 = vmatprep.mubr.f32.mxu0 0.0
        %4006 = vmatmul.mubr.f32.gmra.mrb[0].mxu0 %v3873
        %v4007 = vpop.f32.mrb[0].mxu0
        %v4008 = vadd.f32 0.0, %v4007
        %v4009 = vpop.f32.mrb[0].mxu0
        %4010 = vmatprep.mubr.f32.mxu0 0.0
        %4011 = vmatmul.mubr.f32.gmra.mrb[0].mxu0 %v3876
        %v4012 = vpop.f32.mrb[0].mxu0
        %v4013 = vadd.f32 0.0, %v4012
        %v4014 = vpop.f32.mrb[0].mxu0
        %4015 = vmatprep.mubr.f32.mxu0 0.0
        %4016 = vmatmul.mubr.f32.gmra.mrb[0].mxu0 %v3879
        %v4017 = vpop.f32.mrb[0].mxu0
        %v4018 = vadd.f32 0.0, %v4017
        %v4019 = vpop.f32.mrb[0].mxu0
        %4020 = vmatprep.mubr.f32.mxu0 0.0
        %4021 = vmatmul.mubr.f32.gmra.mrb[0].mxu0 %v3882
        %v4022 = vpop.f32.mrb[0].mxu0
        %v4023 = vadd.f32 0.0, %v4022
        %v4024 = vpop.f32.mrb[0].mxu0
        %4025 = vmatprep.mubr.f32.mxu0 0.0
        %4026 = vmatmul.mubr.f32.gmra.mrb[0].mxu0 %v3885
        %v4027 = vpop.f32.mrb[0].mxu0
        %v4028 = vadd.f32 0.0, %v4027
        %v4029 = vpop.f32.mrb[0].mxu0
        %4030 = vmatprep.mubr.f32.mxu0 0.0
        %4031 = vmatmul.mubr.f32.gmra.mrb[0].mxu0 %v3888
        %v4032 = vpop.f32.mrb[0].mxu0
        %v4033 = vadd.f32 0.0, %v4032
        %v4034 = vpop.f32.mrb[0].mxu0
        %4035 = vmatprep.mubr.f32.mxu0 0.0
        %4036 = vmatmul.mubr.f32.gmra.mrb[0].mxu0 %v3891
        %v4037 = vpop.f32.mrb[0].mxu0
        %v4038 = vadd.f32 0.0, %v4037
        %v4039 = vpop.f32.mrb[0].mxu0
        %4040 = vmatprep.mubr.f32.mxu0 0.0
        %4041 = vmatmul.mubr.f32.gmra.mrb[0].mxu0 %v3894
        %v4042 = vpop.f32.mrb[0].mxu0
        %v4043 = vadd.f32 0.0, %v4042
        %v4044 = vpop.f32.mrb[0].mxu0
        %4045 = vmatprep.mubr.f32.mxu0 0.0
        %4046 = vmatmul.mubr.f32.gmra.mrb[0].mxu0 %v3897
        %v4047 = vpop.f32.mrb[0].mxu0
        %v4048 = vadd.f32 0.0, %v4047
        %v4049 = vpop.f32.mrb[0].mxu0
        %4050 = vmatprep.mubr.f32.mxu0 0.0
        %4051 = vmatmul.mubr.f32.gmra.mrb[0].mxu0 %v3900
        %v4052 = vpop.f32.mrb[0].mxu0
        %v4053 = vadd.f32 0.0, %v4052
        %v4054 = vpop.f32.mrb[0].mxu0
        %4055 = vmatprep.mubr.f32.mxu0 0.0
        %4056 = vmatmul.mubr.f32.gmra.mrb[0].mxu0 %v3903
        %v4057 = vpop.f32.mrb[0].mxu0
        %v4058 = vadd.f32 0.0, %v4057
        %v4059 = vpop.f32.mrb[0].mxu0
        %4060 = vmatprep.mubr.f32.mxu0 0.0
        %4061 = vmatmul.mubr.f32.gmra.mrb[0].mxu0 %v3906
        %v4062 = vpop.f32.mrb[0].mxu0
        %v4063 = vadd.f32 0.0, %v4062
        %v4064 = vpop.f32.mrb[0].mxu0
        %4065 = vdwg.mxu0
        %v4066 = vadd.f32 %v3642, %v3978
        %v4067 = vadd.f32 %v3643, %v3983
        %v4068 = vadd.f32 %v3644, %v3988
        %v4069 = vadd.f32 %v3645, %v3993
        %v4070 = vadd.f32 %v3646, %v3998
        %v4071 = vadd.f32 %v3647, %v4003
        %v4072 = vadd.f32 %v3648, %v4008
        %v4073 = vadd.f32 %v3649, %v4013
        %v4074 = vadd.f32 %v3650, %v4018
        %v4075 = vadd.f32 %v3651, %v4023
        %v4076 = vadd.f32 %v3652, %v4028
        %v4077 = vadd.f32 %v3653, %v4033
        %v4078 = vadd.f32 %v3654, %v4038
        %v4079 = vadd.f32 %v3655, %v4043
        %v4080 = vadd.f32 %v3656, %v4048
        %v4081 = vadd.f32 %v3657, %v4053
        %v4082 = vadd.f32 %v3658, %v4058
        %v4083 = vadd.f32 %v3659, %v4063
        %s4084 = smul.u32 %s20, 144
        %s4085 = scalar_lea.vmem [#allocation12], %s4084
        %4086 = vst [vmem:[%s4085] sm:$0xff] %v4066
        %4087 = vst [vmem:[%s4085 + $0x8] sm:$0xff] %v4067
        %4088 = vst [vmem:[%s4085 + $0x10] sm:$0xff] %v4068
        %4089 = vst [vmem:[%s4085 + $0x18] sm:$0xff] %v4069
        %4090 = vst [vmem:[%s4085 + $0x20] sm:$0xff] %v4070
        %4091 = vst [vmem:[%s4085 + $0x28] sm:$0xff] %v4071
        %4092 = vst [vmem:[%s4085 + $0x30] sm:$0xff] %v4072
        %4093 = vst [vmem:[%s4085 + $0x38] sm:$0xff] %v4073
        %4094 = vst [vmem:[%s4085 + $0x40] sm:$0xff] %v4074
        %4095 = vst [vmem:[%s4085 + $0x48] sm:$0xff] %v4075
        %4096 = vst [vmem:[%s4085 + $0x50] sm:$0xff] %v4076
        %4097 = vst [vmem:[%s4085 + $0x58] sm:$0xff] %v4077
        %4098 = vst [vmem:[%s4085 + $0x60] sm:$0xff] %v4078
        %4099 = vst [vmem:[%s4085 + $0x68] sm:$0xff] %v4079
        %4100 = vst [vmem:[%s4085 + $0x70] sm:$0xff] %v4080
        %4101 = vst [vmem:[%s4085 + $0x78] sm:$0xff] %v4081
        %4102 = vst [vmem:[%s4085 + $0x80] sm:$0xff] %v4082
        %4103 = vst [vmem:[%s4085 + $0x88] sm:$0xff] %v4083
        %v4104 = vld [vmem:[#allocation2] sm:$0x1]
        %v4105 = vadd.f32 %v4066, %v4067
        %v4106 = vadd.f32 %v4105, %v4068
        %v4107 = vadd.f32 %v4106, %v4069
        %v4108 = vadd.f32 %v4107, %v4070
        %v4109 = vadd.f32 %v4108, %v4071
        %v4110 = vadd.f32 %v4109, %v4072
        %v4111 = vadd.f32 %v4110, %v4073
        %v4112 = vadd.f32 %v4111, %v4074
        %v4113 = vadd.f32 %v4112, %v4075
        %v4114 = vadd.f32 %v4113, %v4076
        %v4115 = vadd.f32 %v4114, %v4077
        %v4116 = vadd.f32 %v4115, %v4078
        %v4117 = vadd.f32 %v4116, %v4079
        %v4118 = vadd.f32 %v4117, %v4080
        %v4119 = vadd.f32 %v4118, %v4081
        %v4120 = vadd.f32 %v4119, %v4082
        %v4121 = vadd.f32 %v4120, %v4083
        %v4122 = vrot.slane %v4121, 4
        %v4123 = vadd.f32 %v4121, %v4122
        %v4124 = vrot.slane %v4123, 2
        %v4125 = vadd.f32 %v4123, %v4124
        %v4126 = vrot.slane %v4125, 1
        %v4127 = vadd.f32 %v4125, %v4126
        %v4128 = vadd.f32 %v4104, %v4127
        %4129 = vst [vmem:[#allocation2] sm:$0x1] %v4128
        %v4130 = vld [vmem:[#allocation3] sm:$0x1]
        %v4131 = vmul.f32 %v4066, %v4066
        %v4132 = vmul.f32 %v4067, %v4067
        %v4133 = vmul.f32 %v4068, %v4068
        %v4134 = vmul.f32 %v4069, %v4069
        %v4135 = vmul.f32 %v4070, %v4070
        %v4136 = vmul.f32 %v4071, %v4071
        %v4137 = vmul.f32 %v4072, %v4072
        %v4138 = vmul.f32 %v4073, %v4073
        %v4139 = vmul.f32 %v4074, %v4074
        %v4140 = vmul.f32 %v4075, %v4075
        %v4141 = vmul.f32 %v4076, %v4076
        %v4142 = vmul.f32 %v4077, %v4077
        %v4143 = vmul.f32 %v4078, %v4078
        %v4144 = vmul.f32 %v4079, %v4079
        %v4145 = vmul.f32 %v4080, %v4080
        %v4146 = vmul.f32 %v4081, %v4081
        %v4147 = vmul.f32 %v4082, %v4082
        %v4148 = vmul.f32 %v4083, %v4083
        %v4149 = vadd.f32 %v4131, %v4132
        %v4150 = vadd.f32 %v4149, %v4133
        %v4151 = vadd.f32 %v4150, %v4134
        %v4152 = vadd.f32 %v4151, %v4135
        %v4153 = vadd.f32 %v4152, %v4136
        %v4154 = vadd.f32 %v4153, %v4137
        %v4155 = vadd.f32 %v4154, %v4138
        %v4156 = vadd.f32 %v4155, %v4139
        %v4157 = vadd.f32 %v4156, %v4140
        %v4158 = vadd.f32 %v4157, %v4141
        %v4159 = vadd.f32 %v4158, %v4142
        %v4160 = vadd.f32 %v4159, %v4143
        %v4161 = vadd.f32 %v4160, %v4144
        %v4162 = vadd.f32 %v4161, %v4145
        %v4163 = vadd.f32 %v4162, %v4146
        %v4164 = vadd.f32 %v4163, %v4147
        %v4165 = vadd.f32 %v4164, %v4148
        %v4166 = vrot.slane %v4165, 4
        %v4167 = vadd.f32 %v4165, %v4166
        %v4168 = vrot.slane %v4167, 2
        %v4169 = vadd.f32 %v4167, %v4168
        %v4170 = vrot.slane %v4169, 1
        %v4171 = vadd.f32 %v4169, %v4170
        %v4172 = vadd.f32 %v4130, %v4171
        %4173 = vst [vmem:[#allocation3] sm:$0x1] %v4172
        %p4174 = scmp.eq.s32.totalorder %s20, 1
        // Predicated region
        $region61: #{tpu_custom_call.1} parent=39 // pred_check
          %p4175 = pneg %p4174
        $region62: #{tpu_custom_call.1} parent=39 // pred_check_branch
          %4177 = sbr.rel (%p4175) target = $region64
        $region63: #{tpu_custom_call.1} parent=39 // pred_region
          %v4178 = vld [vmem:[#allocation2] sm:$0x1]
          %v4179 = vrcp.pop 288.0
          %v4180 = vmul.f32 %v4178, %v4179
          %v4181 = vld [vmem:[#allocation3] sm:$0x1]
          %v4182 = vmul.f32 %v4181, %v4179
          %v4183 = vmul.f32 %v4180, %v4180
          %v4184 = vsub.f32 %v4182, %v4183
          %v4185 = vld [vmem:[#allocation9] sm:$0x1]
          %v4186 = vadd.f32 %v4184, 1e-05
          %v4187 = vrsqrt.pop %v4186
          %v4188 = vmul.f32 %v4185, %v4187
          %v4189 = vld [vmem:[#allocation10] sm:$0x1]
          %v4190 = vmul.f32 %v4180, %v4188
          %v4191 = vsub.f32 %v4189, %v4190
          %v4192 = vld [vmem:[#allocation12] sm:$0xff]
          %v4193 = vld [vmem:[#allocation12 + $0x8] sm:$0xff]
          %v4194 = vld [vmem:[#allocation12 + $0x10] sm:$0xff]
          %v4195 = vld [vmem:[#allocation12 + $0x18] sm:$0xff]
          %v4196 = vld [vmem:[#allocation12 + $0x20] sm:$0xff]
          %v4197 = vld [vmem:[#allocation12 + $0x28] sm:$0xff]
          %v4198 = vld [vmem:[#allocation12 + $0x30] sm:$0xff]
          %v4199 = vld [vmem:[#allocation12 + $0x38] sm:$0xff]
          %v4200 = vld [vmem:[#allocation12 + $0x40] sm:$0xff]
          %v4201 = vld [vmem:[#allocation12 + $0x48] sm:$0xff]
          %v4202 = vld [vmem:[#allocation12 + $0x50] sm:$0xff]
          %v4203 = vld [vmem:[#allocation12 + $0x58] sm:$0xff]
          %v4204 = vld [vmem:[#allocation12 + $0x60] sm:$0xff]
          %v4205 = vld [vmem:[#allocation12 + $0x68] sm:$0xff]
          %v4206 = vld [vmem:[#allocation12 + $0x70] sm:$0xff]
          %v4207 = vld [vmem:[#allocation12 + $0x78] sm:$0xff]
          %v4208 = vld [vmem:[#allocation12 + $0x80] sm:$0xff]
          %v4209 = vld [vmem:[#allocation12 + $0x88] sm:$0xff]
          %v4210 = vld [vmem:[#allocation12 + $0x90] sm:$0xff]
          %v4211 = vld [vmem:[#allocation12 + $0x98] sm:$0xff]
          %v4212 = vld [vmem:[#allocation12 + $0xa0] sm:$0xff]
          %v4213 = vld [vmem:[#allocation12 + $0xa8] sm:$0xff]
          %v4214 = vld [vmem:[#allocation12 + $0xb0] sm:$0xff]
          %v4215 = vld [vmem:[#allocation12 + $0xb8] sm:$0xff]
          %v4216 = vld [vmem:[#allocation12 + $0xc0] sm:$0xff]
          %v4217 = vld [vmem:[#allocation12 + $0xc8] sm:$0xff]
          %v4218 = vld [vmem:[#allocation12 + $0xd0] sm:$0xff]
          %v4219 = vld [vmem:[#allocation12 + $0xd8] sm:$0xff]
          %v4220 = vld [vmem:[#allocation12 + $0xe0] sm:$0xff]
          %v4221 = vld [vmem:[#allocation12 + $0xe8] sm:$0xff]
          %v4222 = vld [vmem:[#allocation12 + $0xf0] sm:$0xff]
          %v4223 = vld [vmem:[#allocation12 + $0xf8] sm:$0xff]
          %v4224 = vld [vmem:[#allocation12 + $0x100] sm:$0xff]
          %v4225 = vld [vmem:[#allocation12 + $0x108] sm:$0xff]
          %v4226 = vld [vmem:[#allocation12 + $0x110] sm:$0xff]
          %v4227 = vld [vmem:[#allocation12 + $0x118] sm:$0xff]
          %v4229 = vlaneseq
          %v4230 = vshrl.u32 %v4229, 7
          %v4231 = vsub.s32 0, %v4230
          %v4232 = vrot.slane %v4188, %v4231
          %v4234 = vmul.f32 %v4192, %v4232
          %v4235 = vmul.f32 %v4193, %v4232
          %v4236 = vmul.f32 %v4194, %v4232
          %v4237 = vmul.f32 %v4195, %v4232
          %v4238 = vmul.f32 %v4196, %v4232
          %v4239 = vmul.f32 %v4197, %v4232
          %v4240 = vmul.f32 %v4198, %v4232
          %v4241 = vmul.f32 %v4199, %v4232
          %v4242 = vmul.f32 %v4200, %v4232
          %v4243 = vmul.f32 %v4201, %v4232
          %v4244 = vmul.f32 %v4202, %v4232
          %v4245 = vmul.f32 %v4203, %v4232
          %v4246 = vmul.f32 %v4204, %v4232
          %v4247 = vmul.f32 %v4205, %v4232
          %v4248 = vmul.f32 %v4206, %v4232
          %v4249 = vmul.f32 %v4207, %v4232
          %v4250 = vmul.f32 %v4208, %v4232
          %v4251 = vmul.f32 %v4209, %v4232
          %v4252 = vmul.f32 %v4210, %v4232
          %v4253 = vmul.f32 %v4211, %v4232
          %v4254 = vmul.f32 %v4212, %v4232
          %v4255 = vmul.f32 %v4213, %v4232
          %v4256 = vmul.f32 %v4214, %v4232
          %v4257 = vmul.f32 %v4215, %v4232
          %v4258 = vmul.f32 %v4216, %v4232
          %v4259 = vmul.f32 %v4217, %v4232
          %v4260 = vmul.f32 %v4218, %v4232
          %v4261 = vmul.f32 %v4219, %v4232
          %v4262 = vmul.f32 %v4220, %v4232
          %v4263 = vmul.f32 %v4221, %v4232
          %v4264 = vmul.f32 %v4222, %v4232
          %v4265 = vmul.f32 %v4223, %v4232
          %v4266 = vmul.f32 %v4224, %v4232
          %v4267 = vmul.f32 %v4225, %v4232
          %v4268 = vmul.f32 %v4226, %v4232
          %v4269 = vmul.f32 %v4227, %v4232
          %v4271 = vlaneseq
          %v4272 = vshrl.u32 %v4271, 7
          %v4273 = vsub.s32 0, %v4272
          %v4274 = vrot.slane %v4191, %v4273
          %v4276 = vadd.f32 %v4234, %v4274
          %v4277 = vadd.f32 %v4235, %v4274
          %v4278 = vadd.f32 %v4236, %v4274
          %v4279 = vadd.f32 %v4237, %v4274
          %v4280 = vadd.f32 %v4238, %v4274
          %v4281 = vadd.f32 %v4239, %v4274
          %v4282 = vadd.f32 %v4240, %v4274
          %v4283 = vadd.f32 %v4241, %v4274
          %v4284 = vadd.f32 %v4242, %v4274
          %v4285 = vadd.f32 %v4243, %v4274
          %v4286 = vadd.f32 %v4244, %v4274
          %v4287 = vadd.f32 %v4245, %v4274
          %v4288 = vadd.f32 %v4246, %v4274
          %v4289 = vadd.f32 %v4247, %v4274
          %v4290 = vadd.f32 %v4248, %v4274
          %v4291 = vadd.f32 %v4249, %v4274
          %v4292 = vadd.f32 %v4250, %v4274
          %v4293 = vadd.f32 %v4251, %v4274
          %v4294 = vadd.f32 %v4252, %v4274
          %v4295 = vadd.f32 %v4253, %v4274
          %v4296 = vadd.f32 %v4254, %v4274
          %v4297 = vadd.f32 %v4255, %v4274
          %v4298 = vadd.f32 %v4256, %v4274
          %v4299 = vadd.f32 %v4257, %v4274
          %v4300 = vadd.f32 %v4258, %v4274
          %v4301 = vadd.f32 %v4259, %v4274
          %v4302 = vadd.f32 %v4260, %v4274
          %v4303 = vadd.f32 %v4261, %v4274
          %v4304 = vadd.f32 %v4262, %v4274
          %v4305 = vadd.f32 %v4263, %v4274
          %v4306 = vadd.f32 %v4264, %v4274
          %v4307 = vadd.f32 %v4265, %v4274
          %v4308 = vadd.f32 %v4266, %v4274
          %v4309 = vadd.f32 %v4267, %v4274
          %v4310 = vadd.f32 %v4268, %v4274
          %v4311 = vadd.f32 %v4269, %v4274
          %4312 = vst [vmem:[#allocation12] sm:$0xff] %v4276
          %4313 = vst [vmem:[#allocation12 + $0x8] sm:$0xff] %v4277
          %4314 = vst [vmem:[#allocation12 + $0x10] sm:$0xff] %v4278
          %4315 = vst [vmem:[#allocation12 + $0x18] sm:$0xff] %v4279
          %4316 = vst [vmem:[#allocation12 + $0x20] sm:$0xff] %v4280
          %4317 = vst [vmem:[#allocation12 + $0x28] sm:$0xff] %v4281
          %4318 = vst [vmem:[#allocation12 + $0x30] sm:$0xff] %v4282
          %4319 = vst [vmem:[#allocation12 + $0x38] sm:$0xff] %v4283
          %4320 = vst [vmem:[#allocation12 + $0x40] sm:$0xff] %v4284
          %4321 = vst [vmem:[#allocation12 + $0x48] sm:$0xff] %v4285
          %4322 = vst [vmem:[#allocation12 + $0x50] sm:$0xff] %v4286
          %4323 = vst [vmem:[#allocation12 + $0x58] sm:$0xff] %v4287
          %4324 = vst [vmem:[#allocation12 + $0x60] sm:$0xff] %v4288
          %4325 = vst [vmem:[#allocation12 + $0x68] sm:$0xff] %v4289
          %4326 = vst [vmem:[#allocation12 + $0x70] sm:$0xff] %v4290
          %4327 = vst [vmem:[#allocation12 + $0x78] sm:$0xff] %v4291
          %4328 = vst [vmem:[#allocation12 + $0x80] sm:$0xff] %v4292
          %4329 = vst [vmem:[#allocation12 + $0x88] sm:$0xff] %v4293
          %4330 = vst [vmem:[#allocation12 + $0x90] sm:$0xff] %v4294
          %4331 = vst [vmem:[#allocation12 + $0x98] sm:$0xff] %v4295
          %4332 = vst [vmem:[#allocation12 + $0xa0] sm:$0xff] %v4296
          %4333 = vst [vmem:[#allocation12 + $0xa8] sm:$0xff] %v4297
          %4334 = vst [vmem:[#allocation12 + $0xb0] sm:$0xff] %v4298
          %4335 = vst [vmem:[#allocation12 + $0xb8] sm:$0xff] %v4299
          %4336 = vst [vmem:[#allocation12 + $0xc0] sm:$0xff] %v4300
          %4337 = vst [vmem:[#allocation12 + $0xc8] sm:$0xff] %v4301
          %4338 = vst [vmem:[#allocation12 + $0xd0] sm:$0xff] %v4302
          %4339 = vst [vmem:[#allocation12 + $0xd8] sm:$0xff] %v4303
          %4340 = vst [vmem:[#allocation12 + $0xe0] sm:$0xff] %v4304
          %4341 = vst [vmem:[#allocation12 + $0xe8] sm:$0xff] %v4305
          %4342 = vst [vmem:[#allocation12 + $0xf0] sm:$0xff] %v4306
          %4343 = vst [vmem:[#allocation12 + $0xf8] sm:$0xff] %v4307
          %4344 = vst [vmem:[#allocation12 + $0x100] sm:$0xff] %v4308
          %4345 = vst [vmem:[#allocation12 + $0x108] sm:$0xff] %v4309
          %4346 = vst [vmem:[#allocation12 + $0x110] sm:$0xff] %v4310
          %4347 = vst [vmem:[#allocation12 + $0x118] sm:$0xff] %v4311
        $region64: #{tpu_custom_call.1} parent=39 // pred_fallthru
          _
        // Predicated region
        $region65: #{tpu_custom_call.1} parent=39 // pred_check
          %p4348 = pneg %p143
        $region66: #{tpu_custom_call.1} parent=39 // pred_check_branch
          %4350 = sbr.rel (%p4348) target = $region68
        $region67: #{tpu_custom_call.1} parent=39 // pred_region
          %s4352 = ssub.s32 4608, 4608
          %4353 = vsyncadd [#allocation6], %s4352
          %s4354 = sshll.u32 [#allocation12], 4
          %s4355 = int_to_ptr.vmem [resolvable:$true] %s4354
          %4360 = dma.vmem_to_hbm [thread:$0]  %s4355, 4608, %s5, [#allocation6], 128, 128, 8
        $region68: #{tpu_custom_call.1} parent=39 // pred_fallthru
          _
        // Predicated region
        $region69: #{tpu_custom_call.1} parent=39 // pred_check
          %p4361 = pneg %p143
        $region70: #{tpu_custom_call.1} parent=39 // pred_check_branch
          %4363 = sbr.rel (%p4361) target = $region72
        $region71: #{tpu_custom_call.1} parent=39 // pred_region
          %4364 = dma.done [#allocation6], 4608
        $region72: #{tpu_custom_call.1} parent=39 // pred_fallthru
          _
      $region40: #{tpu_custom_call.1} parent=5 // pred_fallthru
        _
      %p4365 = scmp.le.s32.totalorder 2, %s15
      // Predicated region
      $region73: #{tpu_custom_call.1} parent=5 // pred_check
        %p4366 = pneg %p4365
      $region74: #{tpu_custom_call.1} parent=5 // pred_check_branch
        %4368 = sbr.rel (%p4366) target = $region76
      $region75: #{tpu_custom_call.1} parent=5 // pred_region
        %s4369 = ssub.s32 %s15, 2
      $region76: #{tpu_custom_call.1} parent=5 // pred_fallthru
        _
    $region6: #{tpu_custom_call.1} parent=1 // loop_footer
      %s19 = sadd.s32 1, %s15
    $region7: #{tpu_custom_call.1} parent=1 // loop_footer_branch
      %14 = sbr.rel target = $region3
    $region8: #{tpu_custom_call.1} parent=1 // loop_exit
      _
    %4370 = vsyncpa [#allocation5], 1
    %s4371 = scalar_lea.sflag [#allocation5], 1
    %4372 = vsyncpa %s4371, 1
    %4373 = vsyncpa [#allocation8], 1
    %4374 = vsyncpa [#allocation11], 1
    %4375 = vsyncpa [#allocation6], 1
    %s4376 = scalar_lea.sflag [#allocation6], 1
    %4377 = vsyncpa %s4376, 1

</llo_original>
